<compile_context>
chip_gen: v7x
topology: tpu7x:2x2x1
jax: 0.10.0
libtpu: 0.0.40
codegen_flags: <defaults>
</compile_context>

<pallas_src>
import functools
import math

import jax
import jax.numpy as jnp
import numpy as np
from jax.experimental import pallas as pl
from jax.experimental.pallas import tpu as pltpu

# ---------------- small, deterministic configuration (consistent with MSDeformAttn) ----------
D_MODEL = 32          # d_model
N_HEADS = 4           # n_heads
N_LEVELS = 4          # n_levels
N_POINTS = 4          # n_points
D_HEAD = D_MODEL // N_HEADS
BATCH = 2
LEN_Q = 8
SPATIAL_SHAPES = ((8, 8), (4, 4), (2, 4), (2, 2))   # (H_l, W_l) per level
LEVEL_START = tuple(int(x) for x in np.cumsum([0] + [h * w for h, w in SPATIAL_SHAPES])[:-1])
LEN_IN = int(sum(h * w for h, w in SPATIAL_SHAPES))

# Per-level band offset for the flattened tent-weight sampling.  Sampling y-coords are clamped
# to [-2, H_l + 1] (a zero-contribution-preserving clamp) before the offset is added, so any
# OFFSET > max(H_l) + 3 makes cross-level tent weights exactly zero.
LEVEL_Y_OFFSET = 64.0


def _tensorcores_per_chip() -> int:
    """Best-effort detection of TensorCores addressable by one Pallas grid ('megacore')."""
    try:
        kind = jax.devices()[0].device_kind.lower()
    except Exception:  # pragma: no cover - defensive
        return 1
    return 2 if any(tag in kind for tag in ("v4", "v5p", "v7", "7x")) else 1


def _msdeform_kernel(q_ref, x_ref, ref_ref,
                     wv_ref, bv_ref, woa_ref, boa_ref, wout_ref, bout_ref,
                     nrm_ref, ytab_ref, pos_ref, hmask_ref,
                     out_ref,
                     *, NB, Lq, Len_in, H, L, P, C):
    LP = L * P
    HLP = H * LP
    R = NB * Lq                                   # rows processed this grid step

    q = q_ref[...].reshape(R, C)                  # row-stacked queries (all NB batches)
    refxy = ref_ref[...].reshape(R, 2 * HLP)      # [x-block | y-block], cols ordered (h, l, p)

    # ---- ONE fused matmul for sampling offsets + attention logits -------------------------
    proj = jnp.dot(q, woa_ref[...], preferred_element_type=jnp.float32) + boa_ref[...]
    offs = proj[:, :2 * HLP]                      # (R, 2*HLP)
    logits = proj[:, 2 * HLP:]                    # (R, HLP)

    # ---- exact per-head softmax over (level, point) ---------------------------------------
    # per-head max (not global) so a low-logit head can never underflow to a 0 denominator;
    # the divide is pushed to the EUP via an approximate reciprocal (tiny tensor, free slot).
    lg = logits.reshape(R, H, LP)
    lg = lg - jnp.max(lg, axis=-1, keepdims=True)
    e = jnp.exp(lg)
    denom = jnp.sum(e, axis=-1, keepdims=True)
    attw = (e * pl.reciprocal(denom, approx=True)).reshape(R, HLP)

    # ---- sampling locations -> pixel coords (grid_sample, align_corners=False) ------------
    loc = refxy + offs * nrm_ref[0:1, :]          # sampling_locations in [0, 1]
    pix = loc * nrm_ref[1:2, :] - 0.5             # pixel coords
    pix_x = pix[:, :HLP]                          # (R, HLP)
    # clamp y into the level band (preserves the zero-contribution region exactly), then shift
    # each level into its own disjoint band so the single flattened tent pass cannot mix levels.
    pix_y = jnp.clip(pix[:, HLP:], -2.0, ytab_ref[0:1, :]) + ytab_ref[1:2, :]

    xi = pos_ref[0:1, :].reshape(1, 1, Len_in)    # pixel x per flat position
    yi = pos_ref[1:2, :].reshape(1, 1, Len_in)    # pixel y + level*OFFSET per flat position

    # ---- tent-weight bilinear sampling matrix, built per head (small live set) ------------
    #   B_h[r, i] = sum_{l,p} attw[r,h,l,p] * relu(1-|x_i - px|) * relu(1-|y_i - py|)
    # which is exactly bilinear interpolation with zero padding, with the (l, p) reduction
    # folded in immediately so nothing bigger than (R, L*P, Len_in) is ever live.
    b_heads = []
    for h in range(H):
        cs = slice(h * LP, (h + 1) * LP)
        wx = jnp.maximum(1.0 - jnp.abs(xi - pix_x[:, cs, None]), 0.0)   # (R, LP, Len_in)
        wy = jnp.maximum(1.0 - jnp.abs(yi - pix_y[:, cs, None]), 0.0)   # (R, LP, Len_in)
        w = wx * wy * attw[:, cs, None]
        b_heads.append(jnp.sum(w, axis=1))                              # (R, Len_in)

    # ---- per-batch value projection + sampling matmul + head combine -----------------------
    # NOTE: the value projection is kept per batch: at Len_in = 86 vs a 128/256-row MXU,
    # row-stacking the batches does not improve fill enough to pay for the unaligned
    # (Len_in not a multiple of 8) row split it would require.
    hmask = hmask_ref[...]                                              # (H, C) head->channel-block
    outs = []
    for b in range(NB):
        value_b = (jnp.dot(x_ref[b], wv_ref[...], preferred_element_type=jnp.float32)
                   + bv_ref[...])                                       # (Len_in, C)
        bb = jnp.concatenate([bh[b * Lq:(b + 1) * Lq] for bh in b_heads], axis=0)  # (H*Lq, Len_in)
        rb = jnp.dot(bb, value_b, preferred_element_type=jnp.float32)   # (H*Lq, C)
        # cross-head channel blocks are discarded exactly by the head-selection mask
        outs.append(jnp.sum(rb.reshape(H, Lq, C) * hmask[:, None, :], axis=0))     # (Lq, C)
    core = jnp.concatenate(outs, axis=0) if NB > 1 else outs[0]         # (R, C), head-major chans

    out = jnp.dot(core, wout_ref[...], preferred_element_type=jnp.float32) + bout_ref[...]
    out_ref[...] = out.reshape(NB, Lq, C)


def msdeform_attn_forward(query, reference_points, input_flatten, params, batches_per_step=None):
    N, Lq, C = query.shape
    Len_in = input_flatten.shape[1]
    H, L, P = N_HEADS, N_LEVELS, N_POINTS
    D = C // H
    LP = L * P
    HLP = H * LP

    # generation-aware batching: merge batches on single-TC chips (v5e/v6e), keep the
    # "parallel" batch grid on multi-TC chips (v4/v5p megacore, v7x) so both cores stay busy.
    if batches_per_step is None:
        batches_per_step = 1 if _tensorcores_per_chip() > 1 else N
    NB = max(1, min(N, int(batches_per_step)))
    while N % NB != 0:
        NB -= 1

    # ---- weight prep: permute sampling-offset columns to [x-block | y-block] (each (H,L,P))
    # and fuse with the attention-weight projection into one (C, 3*HLP) matmul.
    wo = params["Wo"].reshape(C, H, L, P, 2).transpose(0, 4, 1, 2, 3).reshape(C, 2 * HLP)
    bo = params["bo"].reshape(H, L, P, 2).transpose(3, 0, 1, 2).reshape(2 * HLP)
    woa = jnp.concatenate([wo, params["Wa"]], axis=1)                     # (C, 3*HLP)
    boa = jnp.concatenate([bo, params["ba"]], axis=0).reshape(1, 3 * HLP)

    # ---- reference points broadcast to the same column ordering as the offsets
    ref_e = jnp.broadcast_to(reference_points[:, :, None, :, None, :], (N, Lq, H, L, P, 2))
    ref_e = ref_e.transpose(0, 1, 5, 2, 3, 4).reshape(N, Lq, 2 * HLP)

    # ---- static per-column / per-position tables (tiny; passed as plain kernel inputs) ----
    wl_lv = np.array([w for (_, w) in SPATIAL_SHAPES], np.float32)
    hl_lv = np.array([h for (h, _) in SPATIAL_SHAPES], np.float32)
    wl_c = np.tile(np.repeat(wl_lv, P), H)                                # (HLP,) W_l per column
    hl_c = np.tile(np.repeat(hl_lv, P), H)                                # (HLP,) H_l per column
    lvl_c = np.tile(np.repeat(np.arange(L, dtype=np.float32), P), H)      # (HLP,) level per column

    nrm_tab = jnp.asarray(np.stack([np.concatenate([1.0 / wl_c, 1.0 / hl_c]),
                                    np.concatenate([wl_c, hl_c])],
                                   axis=0).astype(np.float32))            # (2, 2*HLP)
    ytab = jnp.asarray(np.stack([hl_c + 1.0,
                                 lvl_c * LEVEL_Y_OFFSET], axis=0).astype(np.float32))  # (2, HLP)

    xi = np.concatenate([np.tile(np.arange(w, dtype=np.float32), h)
                         for (h, w) in SPATIAL_SHAPES])
    yi = np.concatenate([np.repeat(np.arange(h, dtype=np.float32), w) + l * LEVEL_Y_OFFSET
                         for l, (h, w) in enumerate(SPATIAL_SHAPES)])
    pos_tab = jnp.asarray(np.stack([xi, yi], axis=0).astype(np.float32))  # (2, Len_in)

    hmask = jnp.asarray(np.kron(np.eye(H, dtype=np.float32),
                                np.ones((1, D), np.float32)))             # (H, C)

    kernel = functools.partial(_msdeform_kernel, NB=NB, Lq=Lq, Len_in=Len_in,
                               H=H, L=L, P=P, C=C)

    flops = int(N * (2 * Len_in * C * C + 2 * Lq * C * (3 * HLP)
                     + 2 * (H * Lq) * Len_in * C + 2 * Lq * C * C))
    bytes_accessed = int(4 * (query.size + input_flatten.size + ref_e.size
                              + 2 * C * C + 2 * C + C * 3 * HLP + 3 * HLP
                              + nrm_tab.size + ytab.size + pos_tab.size + hmask.size
                              + N * Lq * C))

    out = pl.pallas_call(
        kernel,
        out_shape=jax.ShapeDtypeStruct((N, Lq, C), jnp.float32),
        grid_spec=pltpu.PrefetchScalarGridSpec(
            num_scalar_prefetch=0,
            grid=(N // NB,),
            in_specs=[
                pl.BlockSpec((NB, Lq, C), lambda b: (b, 0, 0)),            # query
                pl.BlockSpec((NB, Len_in, C), lambda b: (b, 0, 0)),        # input_flatten
                pl.BlockSpec((NB, Lq, 2 * HLP), lambda b: (b, 0, 0)),      # reference points (expanded)
                pl.BlockSpec((C, C), lambda b: (0, 0)),                    # Wv
                pl.BlockSpec((1, C), lambda b: (0, 0)),                    # bv
                pl.BlockSpec((C, 3 * HLP), lambda b: (0, 0)),              # Wo|Wa fused (permuted)
                pl.BlockSpec((1, 3 * HLP), lambda b: (0, 0)),              # bo|ba fused (permuted)
                pl.BlockSpec((C, C), lambda b: (0, 0)),                    # Wout
                pl.BlockSpec((1, C), lambda b: (0, 0)),                    # bout
                pl.BlockSpec((2, 2 * HLP), lambda b: (0, 0)),              # inverse normalizer / size
                pl.BlockSpec((2, HLP), lambda b: (0, 0)),                  # y clamp-hi / level y-offset
                pl.BlockSpec((2, Len_in), lambda b: (0, 0)),               # flat-position x / banded y
                pl.BlockSpec((H, C), lambda b: (0, 0)),                    # head-selection mask
            ],
            out_specs=pl.BlockSpec((NB, Lq, C), lambda b: (b, 0, 0)),
        ),
        compiler_params=pltpu.CompilerParams(dimension_semantics=("parallel",)),
        cost_estimate=pl.CostEstimate(flops=flops,
                                      transcendentals=N * Lq * HLP,
                                      bytes_accessed=bytes_accessed),
    )(query, input_flatten, ref_e,
      params["Wv"], params["bv"].reshape(1, C),
      woa, boa,
      params["Wout"], params["bout"].reshape(1, C),
      nrm_tab, ytab, pos_tab, hmask)
    return out


def init_params(key):
    C, H, L, P = D_MODEL, N_HEADS, N_LEVELS, N_POINTS
    k1, k2, k3, k4 = jax.random.split(key, 4)

    def xavier(k, fan_in, fan_out):
        bound = math.sqrt(6.0 / (fan_in + fan_out))
        return jax.random.uniform(k, (fan_in, fan_out), jnp.float32, -bound, bound)

    # sampling_offsets bias follows MSDeformAttn._reset_parameters exactly
    thetas = np.arange(H, dtype=np.float32) * (2.0 * math.pi / H)
    grid = np.stack([np.cos(thetas), np.sin(thetas)], -1)
    grid = grid / np.abs(grid).max(-1, keepdims=True)
    grid = np.tile(grid[:, None, None, :], (1, L, P, 1))
    for i in range(P):
        grid[:, :, i, :] *= (i + 1)
    bo = jnp.asarray(grid.reshape(-1), jnp.float32)

    return {
        # NOTE: Wo / Wa are zero-init in the PyTorch module; small deterministic random
        # values are used instead so the offset / softmax paths are non-degenerate.
        "Wo": 0.01 * jax.random.normal(k1, (C, H * L * P * 2), jnp.float32),
        "bo": bo,
        "Wa": 0.1 * jax.random.normal(k2, (C, H * L * P), jnp.float32),
        "ba": jnp.zeros((H * L * P,), jnp.float32),
        "Wv": xavier(k3, C, C),
        "bv": jnp.zeros((C,), jnp.float32),
        "Wout": xavier(k4, C, C),
        "bout": jnp.zeros((C,), jnp.float32),
    }


def reference_forward(query, reference_points, input_flatten, params):
    """Pure-JAX reference mirroring ms_deform_attn_core_pytorch (gather-based)."""
    N, Lq, C = query.shape
    H, L, P = N_HEADS, N_LEVELS, N_POINTS
    D = C // H
    value = (input_flatten @ params["Wv"] + params["bv"]).reshape(N, -1, H, D)
    offs = (query @ params["Wo"] + params["bo"]).reshape(N, Lq, H, L, P, 2)
    aw = (query @ params["Wa"] + params["ba"]).reshape(N, Lq, H, L * P)
    aw = jax.nn.softmax(aw, axis=-1).reshape(N, Lq, H, L, P)
    norm = jnp.array([[w, h] for (h, w) in SPATIAL_SHAPES], jnp.float32)
    loc = reference_points[:, :, None, :, None, :] + offs / norm[None, None, None, :, None, :]
    out = jnp.zeros((N, Lq, H, D), jnp.float32)
    n_idx = jnp.arange(N)[:, None, None, None]
    h_idx = jnp.arange(H)[None, None, :, None]
    for l, (Hl, Wl) in enumerate(SPATIAL_SHAPES):
        s = LEVEL_START[l]
        v_l = value[:, s:s + Hl * Wl]                     # (N, HW, H, D)
        xg = loc[:, :, :, l, :, 0] * Wl - 0.5             # (N, Lq, H, P)
        yg = loc[:, :, :, l, :, 1] * Hl - 0.5
        x0 = jnp.floor(xg)
        y0 = jnp.floor(yg)
        for xc, yc, w in ((x0, y0, (x0 + 1 - xg) * (y0 + 1 - yg)),
                          (x0 + 1, y0, (xg - x0) * (y0 + 1 - yg)),
                          (x0, y0 + 1, (x0 + 1 - xg) * (yg - y0)),
                          (x0 + 1, y0 + 1, (xg - x0) * (yg - y0))):
            valid = (xc >= 0) & (xc <= Wl - 1) & (yc >= 0) & (yc <= Hl - 1)
            flat = jnp.clip((yc * Wl + xc).astype(jnp.int32), 0, Hl * Wl - 1)
            g = v_l[n_idx, flat, h_idx]                   # (N, Lq, H, P, D)
            wm = jnp.where(valid, w, 0.0)
            out = out + jnp.sum(aw[:, :, :, l, :, None] * wm[..., None] * g, axis=3)
    out = out.reshape(N, Lq, C)
    return out @ params["Wout"] + params["bout"]


if __name__ == "__main__":
    key = jax.random.PRNGKey(0)
    kq, kx, kr, kp = jax.random.split(key, 4)
    params = init_params(kp)

    query = jax.random.normal(kq, (BATCH, LEN_Q, D_MODEL), jnp.float32)
    input_flatten = jax.random.normal(kx, (BATCH, LEN_IN, D_MODEL), jnp.float32)
    reference_points = jax.random.uniform(kr, (BATCH, LEN_Q, N_LEVELS, 2), dtype=jnp.float32)

    out = msdeform_attn_forward(query, reference_points, input_flatten, params)
    out = jax.block_until_ready(out)

    ref = reference_forward(query, reference_points, input_flatten, params)
    ref = jax.block_until_ready(ref)

    assert out.shape == (BATCH, LEN_Q, D_MODEL)
    if not bool(jnp.all(jnp.isfinite(out))):
        raise RuntimeError("non-finite kernel output")
    # Tolerance: the tent-weight sampling is algebraically identical to the reference; the only
    # non-trivial deviation is the EUP approximate reciprocal in the softmax (<~1e-3 here).
    # A real indexing / weighting bug shows up at >= 1e-1.
    err = float(jnp.max(jnp.abs(out - ref)))
    if err > 5e-3:
        raise RuntimeError(f"mismatch vs reference: max abs err = {err}")
    print("KERNEL_OK")
</pallas_src>

<mosaic_0001>
module attributes {stable_mosaic.version = 11 : i64} {
  func.func @_msdeform_kernel(%arg0: i32, %arg1: memref<2x8x32xf32, #tpu.memory_space<vmem>>, %arg2: memref<2x92x32xf32, #tpu.memory_space<vmem>>, %arg3: memref<2x8x128xf32, #tpu.memory_space<vmem>>, %arg4: memref<32x32xf32, #tpu.memory_space<vmem>>, %arg5: memref<1x32xf32, #tpu.memory_space<vmem>>, %arg6: memref<32x192xf32, #tpu.memory_space<vmem>>, %arg7: memref<1x192xf32, #tpu.memory_space<vmem>>, %arg8: memref<32x32xf32, #tpu.memory_space<vmem>>, %arg9: memref<1x32xf32, #tpu.memory_space<vmem>>, %arg10: memref<2x128xf32, #tpu.memory_space<vmem>>, %arg11: memref<2x64xf32, #tpu.memory_space<vmem>>, %arg12: memref<2x92xf32, #tpu.memory_space<vmem>>, %arg13: memref<4x32xf32, #tpu.memory_space<vmem>>, %arg14: memref<2x8x32xf32, #tpu.memory_space<vmem>>) attributes {dimension_semantics = [#tpu.dimension_semantics<parallel>], iteration_bounds = array<i64: 1>, scalar_prefetch = 0 : i64, scratch_operands = 0 : i64, tpu.core_type = #tpu.core_type<tc>, window_params = [{transform_indices = @transform_0, window_bounds = array<i64: 2, 8, 32>}, {transform_indices = @transform_1, window_bounds = array<i64: 2, 92, 32>}, {transform_indices = @transform_2, window_bounds = array<i64: 2, 8, 128>}, {pipeline_mode = #tpu.pipeline_mode<synchronous>, transform_indices = @transform_3, window_bounds = array<i64: 32, 32>}, {pipeline_mode = #tpu.pipeline_mode<synchronous>, transform_indices = @transform_4, window_bounds = array<i64: 1, 32>}, {pipeline_mode = #tpu.pipeline_mode<synchronous>, transform_indices = @transform_5, window_bounds = array<i64: 32, 192>}, {pipeline_mode = #tpu.pipeline_mode<synchronous>, transform_indices = @transform_6, window_bounds = array<i64: 1, 192>}, {pipeline_mode = #tpu.pipeline_mode<synchronous>, transform_indices = @transform_7, window_bounds = array<i64: 32, 32>}, {pipeline_mode = #tpu.pipeline_mode<synchronous>, transform_indices = @transform_8, window_bounds = array<i64: 1, 32>}, {pipeline_mode = #tpu.pipeline_mode<synchronous>, transform_indices = @transform_9, window_bounds = array<i64: 2, 128>}, {pipeline_mode = #tpu.pipeline_mode<synchronous>, transform_indices = @transform_10, window_bounds = array<i64: 2, 64>}, {pipeline_mode = #tpu.pipeline_mode<synchronous>, transform_indices = @transform_11, window_bounds = array<i64: 2, 92>}, {pipeline_mode = #tpu.pipeline_mode<synchronous>, transform_indices = @transform_12, window_bounds = array<i64: 4, 32>}, {transform_indices = @transform_13, window_bounds = array<i64: 2, 8, 32>}]} {
    %c0 = arith.constant 0 : index
    %c0_0 = arith.constant 0 : index
    %c0_1 = arith.constant 0 : index
    %0 = vector.load %arg1[%c0, %c0_0, %c0_1] : memref<2x8x32xf32, #tpu.memory_space<vmem>>, vector<2x8x32xf32>
    %1 = vector.shape_cast %0 : vector<2x8x32xf32> to vector<16x32xf32>
    %c0_2 = arith.constant 0 : index
    %c0_3 = arith.constant 0 : index
    %c0_4 = arith.constant 0 : index
    %2 = vector.load %arg3[%c0_2, %c0_3, %c0_4] : memref<2x8x128xf32, #tpu.memory_space<vmem>>, vector<2x8x128xf32>
    %3 = vector.shape_cast %2 : vector<2x8x128xf32> to vector<16x128xf32>
    %c0_5 = arith.constant 0 : index
    %c0_6 = arith.constant 0 : index
    %4 = vector.load %arg6[%c0_5, %c0_6] : memref<32x192xf32, #tpu.memory_space<vmem>>, vector<32x192xf32>
    %cst = arith.constant dense<0.000000e+00> : vector<16x192xf32>
    %5 = tpu.matmul %1, %4, %cst {dimension_numbers = #tpu.dot_dimension_numbers<[1], [0], [0], [1], [0, 0, 1, 1], [], []>} : vector<16x32xf32>, vector<32x192xf32>, vector<16x192xf32> -> vector<16x192xf32>
    %c0_7 = arith.constant 0 : index
    %c0_8 = arith.constant 0 : index
    %6 = vector.load %arg7[%c0_7, %c0_8] : memref<1x192xf32, #tpu.memory_space<vmem>>, vector<1x192xf32>
    %7 = vector.broadcast %6 : vector<1x192xf32> to vector<16x192xf32>
    %8 = arith.addf %5, %7 : vector<16x192xf32>
    %9 = vector.extract_strided_slice %8 {offsets = [0, 0], sizes = [16, 128], strides = [1, 1]} : vector<16x192xf32> to vector<16x128xf32>
    %10 = vector.extract_strided_slice %8 {offsets = [0, 128], sizes = [16, 64], strides = [1, 1]} : vector<16x192xf32> to vector<16x64xf32>
    %11 = vector.shape_cast %10 : vector<16x64xf32> to vector<16x4x16xf32>
    %cst_9 = arith.constant dense<0xFF800000> : vector<16x4xf32>
    %12 = vector.multi_reduction <maximumf>, %11, %cst_9 [2] : vector<16x4x16xf32> to vector<16x4xf32>
    %13 = vector.shape_cast %12 : vector<16x4xf32> to vector<16x4x1xf32>
    %14 = vector.broadcast %13 : vector<16x4x1xf32> to vector<16x4x16xf32>
    %15 = arith.subf %11, %14 : vector<16x4x16xf32>
    %16 = math.exp %15 : vector<16x4x16xf32>
    %cst_10 = arith.constant dense<0.000000e+00> : vector<16x4xf32>
    %17 = vector.multi_reduction <add>, %16, %cst_10 [2] : vector<16x4x16xf32> to vector<16x4xf32>
    %18 = vector.shape_cast %17 : vector<16x4xf32> to vector<16x4x1xf32>
    %19 = tpu.reciprocal %18 {approx = true} : vector<16x4x1xf32> -> vector<16x4x1xf32>
    %20 = vector.broadcast %19 : vector<16x4x1xf32> to vector<16x4x16xf32>
    %21 = arith.mulf %16, %20 : vector<16x4x16xf32>
    %22 = vector.shape_cast %21 : vector<16x4x16xf32> to vector<16x64xf32>
    %c0_11 = arith.constant 0 : index
    %c0_12 = arith.constant 0 : index
    %23 = vector.load %arg10[%c0_11, %c0_12] : memref<2x128xf32, #tpu.memory_space<vmem>>, vector<1x128xf32>
    %24 = vector.broadcast %23 : vector<1x128xf32> to vector<16x128xf32>
    %25 = arith.mulf %9, %24 : vector<16x128xf32>
    %26 = arith.addf %3, %25 : vector<16x128xf32>
    %c1 = arith.constant 1 : index
    %c0_13 = arith.constant 0 : index
    %27 = vector.load %arg10[%c1, %c0_13] : memref<2x128xf32, #tpu.memory_space<vmem>>, vector<1x128xf32>
    %28 = vector.broadcast %27 : vector<1x128xf32> to vector<16x128xf32>
    %29 = arith.mulf %26, %28 : vector<16x128xf32>
    %cst_14 = arith.constant 5.000000e-01 : f32
    %30 = vector.broadcast %cst_14 : f32 to vector<16x128xf32>
    %31 = arith.subf %29, %30 : vector<16x128xf32>
    %32 = vector.extract_strided_slice %31 {offsets = [0, 0], sizes = [16, 64], strides = [1, 1]} : vector<16x128xf32> to vector<16x64xf32>
    %33 = vector.extract_strided_slice %31 {offsets = [0, 64], sizes = [16, 64], strides = [1, 1]} : vector<16x128xf32> to vector<16x64xf32>
    %c0_15 = arith.constant 0 : index
    %c0_16 = arith.constant 0 : index
    %34 = vector.load %arg11[%c0_15, %c0_16] : memref<2x64xf32, #tpu.memory_space<vmem>>, vector<1x64xf32>
    %cst_17 = arith.constant -2.000000e+00 : f32
    %35 = vector.broadcast %cst_17 : f32 to vector<16x64xf32>
    %36 = arith.maximumf %35, %33 : vector<16x64xf32>
    %37 = vector.broadcast %34 : vector<1x64xf32> to vector<16x64xf32>
    %38 = arith.minimumf %37, %36 : vector<16x64xf32>
    %c1_18 = arith.constant 1 : index
    %c0_19 = arith.constant 0 : index
    %39 = vector.load %arg11[%c1_18, %c0_19] : memref<2x64xf32, #tpu.memory_space<vmem>>, vector<1x64xf32>
    %40 = vector.broadcast %39 : vector<1x64xf32> to vector<16x64xf32>
    %41 = arith.addf %38, %40 : vector<16x64xf32>
    %c0_20 = arith.constant 0 : index
    %c0_21 = arith.constant 0 : index
    %42 = vector.load %arg12[%c0_20, %c0_21] : memref<2x92xf32, #tpu.memory_space<vmem>>, vector<1x92xf32>
    %43 = vector.shape_cast %42 : vector<1x92xf32> to vector<1x1x92xf32>
    %c1_22 = arith.constant 1 : index
    %c0_23 = arith.constant 0 : index
    %44 = vector.load %arg12[%c1_22, %c0_23] : memref<2x92xf32, #tpu.memory_space<vmem>>, vector<1x92xf32>
    %45 = vector.shape_cast %44 : vector<1x92xf32> to vector<1x1x92xf32>
    %46 = vector.extract_strided_slice %32 {offsets = [0, 0], sizes = [16, 16], strides = [1, 1]} : vector<16x64xf32> to vector<16x16xf32>
    %47 = vector.shape_cast %46 : vector<16x16xf32> to vector<16x16x1xf32>
    %48 = vector.broadcast %43 : vector<1x1x92xf32> to vector<16x16x92xf32>
    %49 = vector.broadcast %47 : vector<16x16x1xf32> to vector<16x16x92xf32>
    %50 = arith.subf %48, %49 : vector<16x16x92xf32>
    %51 = math.absf %50 : vector<16x16x92xf32>
    %cst_24 = arith.constant 1.000000e+00 : f32
    %52 = vector.broadcast %cst_24 : f32 to vector<16x16x92xf32>
    %53 = arith.subf %52, %51 : vector<16x16x92xf32>
    %cst_25 = arith.constant 0.000000e+00 : f32
    %54 = vector.broadcast %cst_25 : f32 to vector<16x16x92xf32>
    %55 = arith.maximumf %53, %54 : vector<16x16x92xf32>
    %56 = vector.extract_strided_slice %41 {offsets = [0, 0], sizes = [16, 16], strides = [1, 1]} : vector<16x64xf32> to vector<16x16xf32>
    %57 = vector.shape_cast %56 : vector<16x16xf32> to vector<16x16x1xf32>
    %58 = vector.broadcast %45 : vector<1x1x92xf32> to vector<16x16x92xf32>
    %59 = vector.broadcast %57 : vector<16x16x1xf32> to vector<16x16x92xf32>
    %60 = arith.subf %58, %59 : vector<16x16x92xf32>
    %61 = math.absf %60 : vector<16x16x92xf32>
    %cst_26 = arith.constant 1.000000e+00 : f32
    %62 = vector.broadcast %cst_26 : f32 to vector<16x16x92xf32>
    %63 = arith.subf %62, %61 : vector<16x16x92xf32>
    %cst_27 = arith.constant 0.000000e+00 : f32
    %64 = vector.broadcast %cst_27 : f32 to vector<16x16x92xf32>
    %65 = arith.maximumf %63, %64 : vector<16x16x92xf32>
    %66 = arith.mulf %55, %65 : vector<16x16x92xf32>
    %67 = vector.extract_strided_slice %22 {offsets = [0, 0], sizes = [16, 16], strides = [1, 1]} : vector<16x64xf32> to vector<16x16xf32>
    %68 = vector.shape_cast %67 : vector<16x16xf32> to vector<16x16x1xf32>
    %69 = vector.broadcast %68 : vector<16x16x1xf32> to vector<16x16x92xf32>
    %70 = arith.mulf %66, %69 : vector<16x16x92xf32>
    %cst_28 = arith.constant dense<0.000000e+00> : vector<16x92xf32>
    %71 = vector.multi_reduction <add>, %70, %cst_28 [1] : vector<16x16x92xf32> to vector<16x92xf32>
    %72 = vector.extract_strided_slice %32 {offsets = [0, 16], sizes = [16, 16], strides = [1, 1]} : vector<16x64xf32> to vector<16x16xf32>
    %73 = vector.shape_cast %72 : vector<16x16xf32> to vector<16x16x1xf32>
    %74 = vector.broadcast %43 : vector<1x1x92xf32> to vector<16x16x92xf32>
    %75 = vector.broadcast %73 : vector<16x16x1xf32> to vector<16x16x92xf32>
    %76 = arith.subf %74, %75 : vector<16x16x92xf32>
    %77 = math.absf %76 : vector<16x16x92xf32>
    %cst_29 = arith.constant 1.000000e+00 : f32
    %78 = vector.broadcast %cst_29 : f32 to vector<16x16x92xf32>
    %79 = arith.subf %78, %77 : vector<16x16x92xf32>
    %cst_30 = arith.constant 0.000000e+00 : f32
    %80 = vector.broadcast %cst_30 : f32 to vector<16x16x92xf32>
    %81 = arith.maximumf %79, %80 : vector<16x16x92xf32>
    %82 = vector.extract_strided_slice %41 {offsets = [0, 16], sizes = [16, 16], strides = [1, 1]} : vector<16x64xf32> to vector<16x16xf32>
    %83 = vector.shape_cast %82 : vector<16x16xf32> to vector<16x16x1xf32>
    %84 = vector.broadcast %45 : vector<1x1x92xf32> to vector<16x16x92xf32>
    %85 = vector.broadcast %83 : vector<16x16x1xf32> to vector<16x16x92xf32>
    %86 = arith.subf %84, %85 : vector<16x16x92xf32>
    %87 = math.absf %86 : vector<16x16x92xf32>
    %cst_31 = arith.constant 1.000000e+00 : f32
    %88 = vector.broadcast %cst_31 : f32 to vector<16x16x92xf32>
    %89 = arith.subf %88, %87 : vector<16x16x92xf32>
    %cst_32 = arith.constant 0.000000e+00 : f32
    %90 = vector.broadcast %cst_32 : f32 to vector<16x16x92xf32>
    %91 = arith.maximumf %89, %90 : vector<16x16x92xf32>
    %92 = arith.mulf %81, %91 : vector<16x16x92xf32>
    %93 = vector.extract_strided_slice %22 {offsets = [0, 16], sizes = [16, 16], strides = [1, 1]} : vector<16x64xf32> to vector<16x16xf32>
    %94 = vector.shape_cast %93 : vector<16x16xf32> to vector<16x16x1xf32>
    %95 = vector.broadcast %94 : vector<16x16x1xf32> to vector<16x16x92xf32>
    %96 = arith.mulf %92, %95 : vector<16x16x92xf32>
    %cst_33 = arith.constant dense<0.000000e+00> : vector<16x92xf32>
    %97 = vector.multi_reduction <add>, %96, %cst_33 [1] : vector<16x16x92xf32> to vector<16x92xf32>
    %98 = vector.extract_strided_slice %32 {offsets = [0, 32], sizes = [16, 16], strides = [1, 1]} : vector<16x64xf32> to vector<16x16xf32>
    %99 = vector.shape_cast %98 : vector<16x16xf32> to vector<16x16x1xf32>
    %100 = vector.broadcast %43 : vector<1x1x92xf32> to vector<16x16x92xf32>
    %101 = vector.broadcast %99 : vector<16x16x1xf32> to vector<16x16x92xf32>
    %102 = arith.subf %100, %101 : vector<16x16x92xf32>
    %103 = math.absf %102 : vector<16x16x92xf32>
    %cst_34 = arith.constant 1.000000e+00 : f32
    %104 = vector.broadcast %cst_34 : f32 to vector<16x16x92xf32>
    %105 = arith.subf %104, %103 : vector<16x16x92xf32>
    %cst_35 = arith.constant 0.000000e+00 : f32
    %106 = vector.broadcast %cst_35 : f32 to vector<16x16x92xf32>
    %107 = arith.maximumf %105, %106 : vector<16x16x92xf32>
    %108 = vector.extract_strided_slice %41 {offsets = [0, 32], sizes = [16, 16], strides = [1, 1]} : vector<16x64xf32> to vector<16x16xf32>
    %109 = vector.shape_cast %108 : vector<16x16xf32> to vector<16x16x1xf32>
    %110 = vector.broadcast %45 : vector<1x1x92xf32> to vector<16x16x92xf32>
    %111 = vector.broadcast %109 : vector<16x16x1xf32> to vector<16x16x92xf32>
    %112 = arith.subf %110, %111 : vector<16x16x92xf32>
    %113 = math.absf %112 : vector<16x16x92xf32>
    %cst_36 = arith.constant 1.000000e+00 : f32
    %114 = vector.broadcast %cst_36 : f32 to vector<16x16x92xf32>
    %115 = arith.subf %114, %113 : vector<16x16x92xf32>
    %cst_37 = arith.constant 0.000000e+00 : f32
    %116 = vector.broadcast %cst_37 : f32 to vector<16x16x92xf32>
    %117 = arith.maximumf %115, %116 : vector<16x16x92xf32>
    %118 = arith.mulf %107, %117 : vector<16x16x92xf32>
    %119 = vector.extract_strided_slice %22 {offsets = [0, 32], sizes = [16, 16], strides = [1, 1]} : vector<16x64xf32> to vector<16x16xf32>
    %120 = vector.shape_cast %119 : vector<16x16xf32> to vector<16x16x1xf32>
    %121 = vector.broadcast %120 : vector<16x16x1xf32> to vector<16x16x92xf32>
    %122 = arith.mulf %118, %121 : vector<16x16x92xf32>
    %cst_38 = arith.constant dense<0.000000e+00> : vector<16x92xf32>
    %123 = vector.multi_reduction <add>, %122, %cst_38 [1] : vector<16x16x92xf32> to vector<16x92xf32>
    %124 = vector.extract_strided_slice %32 {offsets = [0, 48], sizes = [16, 16], strides = [1, 1]} : vector<16x64xf32> to vector<16x16xf32>
    %125 = vector.shape_cast %124 : vector<16x16xf32> to vector<16x16x1xf32>
    %126 = vector.broadcast %43 : vector<1x1x92xf32> to vector<16x16x92xf32>
    %127 = vector.broadcast %125 : vector<16x16x1xf32> to vector<16x16x92xf32>
    %128 = arith.subf %126, %127 : vector<16x16x92xf32>
    %129 = math.absf %128 : vector<16x16x92xf32>
    %cst_39 = arith.constant 1.000000e+00 : f32
    %130 = vector.broadcast %cst_39 : f32 to vector<16x16x92xf32>
    %131 = arith.subf %130, %129 : vector<16x16x92xf32>
    %cst_40 = arith.constant 0.000000e+00 : f32
    %132 = vector.broadcast %cst_40 : f32 to vector<16x16x92xf32>
    %133 = arith.maximumf %131, %132 : vector<16x16x92xf32>
    %134 = vector.extract_strided_slice %41 {offsets = [0, 48], sizes = [16, 16], strides = [1, 1]} : vector<16x64xf32> to vector<16x16xf32>
    %135 = vector.shape_cast %134 : vector<16x16xf32> to vector<16x16x1xf32>
    %136 = vector.broadcast %45 : vector<1x1x92xf32> to vector<16x16x92xf32>
    %137 = vector.broadcast %135 : vector<16x16x1xf32> to vector<16x16x92xf32>
    %138 = arith.subf %136, %137 : vector<16x16x92xf32>
    %139 = math.absf %138 : vector<16x16x92xf32>
    %cst_41 = arith.constant 1.000000e+00 : f32
    %140 = vector.broadcast %cst_41 : f32 to vector<16x16x92xf32>
    %141 = arith.subf %140, %139 : vector<16x16x92xf32>
    %cst_42 = arith.constant 0.000000e+00 : f32
    %142 = vector.broadcast %cst_42 : f32 to vector<16x16x92xf32>
    %143 = arith.maximumf %141, %142 : vector<16x16x92xf32>
    %144 = arith.mulf %133, %143 : vector<16x16x92xf32>
    %145 = vector.extract_strided_slice %22 {offsets = [0, 48], sizes = [16, 16], strides = [1, 1]} : vector<16x64xf32> to vector<16x16xf32>
    %146 = vector.shape_cast %145 : vector<16x16xf32> to vector<16x16x1xf32>
    %147 = vector.broadcast %146 : vector<16x16x1xf32> to vector<16x16x92xf32>
    %148 = arith.mulf %144, %147 : vector<16x16x92xf32>
    %cst_43 = arith.constant dense<0.000000e+00> : vector<16x92xf32>
    %149 = vector.multi_reduction <add>, %148, %cst_43 [1] : vector<16x16x92xf32> to vector<16x92xf32>
    %c0_44 = arith.constant 0 : index
    %c0_45 = arith.constant 0 : index
    %150 = vector.load %arg13[%c0_44, %c0_45] : memref<4x32xf32, #tpu.memory_space<vmem>>, vector<4x32xf32>
    %c0_46 = arith.constant 0 : index
    %c0_47 = arith.constant 0 : index
    %c0_48 = arith.constant 0 : index
    %151 = vector.load %arg2[%c0_46, %c0_47, %c0_48] : memref<2x92x32xf32, #tpu.memory_space<vmem>>, vector<1x92x32xf32>
    %152 = vector.shape_cast %151 : vector<1x92x32xf32> to vector<92x32xf32>
    %c0_49 = arith.constant 0 : index
    %c0_50 = arith.constant 0 : index
    %153 = vector.load %arg4[%c0_49, %c0_50] : memref<32x32xf32, #tpu.memory_space<vmem>>, vector<32x32xf32>
    %cst_51 = arith.constant dense<0.000000e+00> : vector<92x32xf32>
    %154 = tpu.matmul %152, %153, %cst_51 {dimension_numbers = #tpu.dot_dimension_numbers<[1], [0], [0], [1], [0, 0, 1, 1], [], []>} : vector<92x32xf32>, vector<32x32xf32>, vector<92x32xf32> -> vector<92x32xf32>
    %c0_52 = arith.constant 0 : index
    %c0_53 = arith.constant 0 : index
    %155 = vector.load %arg5[%c0_52, %c0_53] : memref<1x32xf32, #tpu.memory_space<vmem>>, vector<1x32xf32>
    %156 = vector.broadcast %155 : vector<1x32xf32> to vector<92x32xf32>
    %157 = arith.addf %154, %156 : vector<92x32xf32>
    %158 = vector.extract_strided_slice %71 {offsets = [0, 0], sizes = [8, 92], strides = [1, 1]} : vector<16x92xf32> to vector<8x92xf32>
    %159 = vector.extract_strided_slice %97 {offsets = [0, 0], sizes = [8, 92], strides = [1, 1]} : vector<16x92xf32> to vector<8x92xf32>
    %160 = vector.extract_strided_slice %123 {offsets = [0, 0], sizes = [8, 92], strides = [1, 1]} : vector<16x92xf32> to vector<8x92xf32>
    %161 = vector.extract_strided_slice %149 {offsets = [0, 0], sizes = [8, 92], strides = [1, 1]} : vector<16x92xf32> to vector<8x92xf32>
    %162 = tpu.concatenate %158, %159, %160, %161 in 0 : vector<8x92xf32>, vector<8x92xf32>, vector<8x92xf32>, vector<8x92xf32> -> vector<32x92xf32>
    %cst_54 = arith.constant dense<0.000000e+00> : vector<32x32xf32>
    %163 = tpu.matmul %162, %157, %cst_54 {dimension_numbers = #tpu.dot_dimension_numbers<[1], [0], [0], [1], [0, 0, 1, 1], [], []>} : vector<32x92xf32>, vector<92x32xf32>, vector<32x32xf32> -> vector<32x32xf32>
    %164 = vector.shape_cast %163 : vector<32x32xf32> to vector<4x8x32xf32>
    %165 = vector.shape_cast %150 : vector<4x32xf32> to vector<4x1x32xf32>
    %166 = vector.broadcast %165 : vector<4x1x32xf32> to vector<4x8x32xf32>
    %167 = arith.mulf %164, %166 : vector<4x8x32xf32>
    %cst_55 = arith.constant dense<0.000000e+00> : vector<8x32xf32>
    %168 = vector.multi_reduction <add>, %167, %cst_55 [0] : vector<4x8x32xf32> to vector<8x32xf32>
    %c1_56 = arith.constant 1 : index
    %c0_57 = arith.constant 0 : index
    %c0_58 = arith.constant 0 : index
    %169 = vector.load %arg2[%c1_56, %c0_57, %c0_58] : memref<2x92x32xf32, #tpu.memory_space<vmem>>, vector<1x92x32xf32>
    %170 = vector.shape_cast %169 : vector<1x92x32xf32> to vector<92x32xf32>
    %c0_59 = arith.constant 0 : index
    %c0_60 = arith.constant 0 : index
    %171 = vector.load %arg4[%c0_59, %c0_60] : memref<32x32xf32, #tpu.memory_space<vmem>>, vector<32x32xf32>
    %cst_61 = arith.constant dense<0.000000e+00> : vector<92x32xf32>
    %172 = tpu.matmul %170, %171, %cst_61 {dimension_numbers = #tpu.dot_dimension_numbers<[1], [0], [0], [1], [0, 0, 1, 1], [], []>} : vector<92x32xf32>, vector<32x32xf32>, vector<92x32xf32> -> vector<92x32xf32>
    %c0_62 = arith.constant 0 : index
    %c0_63 = arith.constant 0 : index
    %173 = vector.load %arg5[%c0_62, %c0_63] : memref<1x32xf32, #tpu.memory_space<vmem>>, vector<1x32xf32>
    %174 = vector.broadcast %173 : vector<1x32xf32> to vector<92x32xf32>
    %175 = arith.addf %172, %174 : vector<92x32xf32>
    %176 = vector.extract_strided_slice %71 {offsets = [8, 0], sizes = [8, 92], strides = [1, 1]} : vector<16x92xf32> to vector<8x92xf32>
    %177 = vector.extract_strided_slice %97 {offsets = [8, 0], sizes = [8, 92], strides = [1, 1]} : vector<16x92xf32> to vector<8x92xf32>
    %178 = vector.extract_strided_slice %123 {offsets = [8, 0], sizes = [8, 92], strides = [1, 1]} : vector<16x92xf32> to vector<8x92xf32>
    %179 = vector.extract_strided_slice %149 {offsets = [8, 0], sizes = [8, 92], strides = [1, 1]} : vector<16x92xf32> to vector<8x92xf32>
    %180 = tpu.concatenate %176, %177, %178, %179 in 0 : vector<8x92xf32>, vector<8x92xf32>, vector<8x92xf32>, vector<8x92xf32> -> vector<32x92xf32>
    %cst_64 = arith.constant dense<0.000000e+00> : vector<32x32xf32>
    %181 = tpu.matmul %180, %175, %cst_64 {dimension_numbers = #tpu.dot_dimension_numbers<[1], [0], [0], [1], [0, 0, 1, 1], [], []>} : vector<32x92xf32>, vector<92x32xf32>, vector<32x32xf32> -> vector<32x32xf32>
    %182 = vector.shape_cast %181 : vector<32x32xf32> to vector<4x8x32xf32>
    %183 = vector.shape_cast %150 : vector<4x32xf32> to vector<4x1x32xf32>
    %184 = vector.broadcast %183 : vector<4x1x32xf32> to vector<4x8x32xf32>
    %185 = arith.mulf %182, %184 : vector<4x8x32xf32>
    %cst_65 = arith.constant dense<0.000000e+00> : vector<8x32xf32>
    %186 = vector.multi_reduction <add>, %185, %cst_65 [0] : vector<4x8x32xf32> to vector<8x32xf32>
    %187 = tpu.concatenate %168, %186 in 0 : vector<8x32xf32>, vector<8x32xf32> -> vector<16x32xf32>
    %c0_66 = arith.constant 0 : index
    %c0_67 = arith.constant 0 : index
    %188 = vector.load %arg8[%c0_66, %c0_67] : memref<32x32xf32, #tpu.memory_space<vmem>>, vector<32x32xf32>
    %cst_68 = arith.constant dense<0.000000e+00> : vector<16x32xf32>
    %189 = tpu.matmul %187, %188, %cst_68 {dimension_numbers = #tpu.dot_dimension_numbers<[1], [0], [0], [1], [0, 0, 1, 1], [], []>} : vector<16x32xf32>, vector<32x32xf32>, vector<16x32xf32> -> vector<16x32xf32>
    %c0_69 = arith.constant 0 : index
    %c0_70 = arith.constant 0 : index
    %190 = vector.load %arg9[%c0_69, %c0_70] : memref<1x32xf32, #tpu.memory_space<vmem>>, vector<1x32xf32>
    %191 = vector.broadcast %190 : vector<1x32xf32> to vector<16x32xf32>
    %192 = arith.addf %189, %191 : vector<16x32xf32>
    %193 = vector.shape_cast %192 : vector<16x32xf32> to vector<2x8x32xf32>
    %c0_71 = arith.constant 0 : index
    %c0_72 = arith.constant 0 : index
    %c0_73 = arith.constant 0 : index
    %194 = vector.load %arg14[%c0_71, %c0_72, %c0_73] : memref<2x8x32xf32, #tpu.memory_space<vmem>>, vector<2x8x32xf32>
    tpu.vector_store %arg14[%c0_71, %c0_72, %c0_73], %193 {strides = array<i32>} : memref<2x8x32xf32, #tpu.memory_space<vmem>>, vector<2x8x32xf32>,
    return
  }
  func.func @transform_0(%arg0: i32) -> (i32, i32, i32) {
    %c0_i32 = arith.constant 0 : i32
    %c0_i32_0 = arith.constant 0 : i32
    %c0_i32_1 = arith.constant 0 : i32
    return %arg0, %c0_i32, %c0_i32_0 : i32, i32, i32
  }
  func.func @transform_1(%arg0: i32) -> (i32, i32, i32) {
    %c0_i32 = arith.constant 0 : i32
    %c0_i32_0 = arith.constant 0 : i32
    %c0_i32_1 = arith.constant 0 : i32
    return %arg0, %c0_i32, %c0_i32_0 : i32, i32, i32
  }
  func.func @transform_2(%arg0: i32) -> (i32, i32, i32) {
    %c0_i32 = arith.constant 0 : i32
    %c0_i32_0 = arith.constant 0 : i32
    %c0_i32_1 = arith.constant 0 : i32
    return %arg0, %c0_i32, %c0_i32_0 : i32, i32, i32
  }
  func.func @transform_3(%arg0: i32) -> (i32, i32) {
    %c0_i32 = arith.constant 0 : i32
    %c0_i32_0 = arith.constant 0 : i32
    %c0_i32_1 = arith.constant 0 : i32
    return %c0_i32, %c0_i32_0 : i32, i32
  }
  func.func @transform_4(%arg0: i32) -> (i32, i32) {
    %c0_i32 = arith.constant 0 : i32
    %c0_i32_0 = arith.constant 0 : i32
    %c0_i32_1 = arith.constant 0 : i32
    return %c0_i32, %c0_i32_0 : i32, i32
  }
  func.func @transform_5(%arg0: i32) -> (i32, i32) {
    %c0_i32 = arith.constant 0 : i32
    %c0_i32_0 = arith.constant 0 : i32
    %c0_i32_1 = arith.constant 0 : i32
    return %c0_i32, %c0_i32_0 : i32, i32
  }
  func.func @transform_6(%arg0: i32) -> (i32, i32) {
    %c0_i32 = arith.constant 0 : i32
    %c0_i32_0 = arith.constant 0 : i32
    %c0_i32_1 = arith.constant 0 : i32
    return %c0_i32, %c0_i32_0 : i32, i32
  }
  func.func @transform_7(%arg0: i32) -> (i32, i32) {
    %c0_i32 = arith.constant 0 : i32
    %c0_i32_0 = arith.constant 0 : i32
    %c0_i32_1 = arith.constant 0 : i32
    return %c0_i32, %c0_i32_0 : i32, i32
  }
  func.func @transform_8(%arg0: i32) -> (i32, i32) {
    %c0_i32 = arith.constant 0 : i32
    %c0_i32_0 = arith.constant 0 : i32
    %c0_i32_1 = arith.constant 0 : i32
    return %c0_i32, %c0_i32_0 : i32, i32
  }
  func.func @transform_9(%arg0: i32) -> (i32, i32) {
    %c0_i32 = arith.constant 0 : i32
    %c0_i32_0 = arith.constant 0 : i32
    %c0_i32_1 = arith.constant 0 : i32
    return %c0_i32, %c0_i32_0 : i32, i32
  }
  func.func @transform_10(%arg0: i32) -> (i32, i32) {
    %c0_i32 = arith.constant 0 : i32
    %c0_i32_0 = arith.constant 0 : i32
    %c0_i32_1 = arith.constant 0 : i32
    return %c0_i32, %c0_i32_0 : i32, i32
  }
  func.func @transform_11(%arg0: i32) -> (i32, i32) {
    %c0_i32 = arith.constant 0 : i32
    %c0_i32_0 = arith.constant 0 : i32
    %c0_i32_1 = arith.constant 0 : i32
    return %c0_i32, %c0_i32_0 : i32, i32
  }
  func.func @transform_12(%arg0: i32) -> (i32, i32) {
    %c0_i32 = arith.constant 0 : i32
    %c0_i32_0 = arith.constant 0 : i32
    %c0_i32_1 = arith.constant 0 : i32
    return %c0_i32, %c0_i32_0 : i32, i32
  }
  func.func @transform_13(%arg0: i32) -> (i32, i32, i32) {
    %c0_i32 = arith.constant 0 : i32
    %c0_i32_0 = arith.constant 0 : i32
    %c0_i32_1 = arith.constant 0 : i32
    return %arg0, %c0_i32, %c0_i32_0 : i32, i32, i32
  }
}

</mosaic_0001>

<llo_original>
// kernel: tpu_custom_call.1
$region0: #{tpu_custom_call.1}
  #allocation0 [shape = 'u32[]', space=smem, size = 0x4, offset = 0x4, fixed_abs, tag = 'smem constant byte address 0x4 - core index']
  #allocation1 [shape = 'u32[144,128]{1,0:T(1,128)}', space=vmem, size = 0x12000, scoped, tag = 'internal scratch']
  %s0 = inlined_call_operand.vmem [shape: f32[2,8,32], index: 0, kind: input, shape index: {}]
  %s1 = inlined_call_operand.vmem [shape: f32[2,92,32], index: 1, kind: input, shape index: {}]
  %s2 = inlined_call_operand.vmem [shape: f32[2,8,128], index: 2, kind: input, shape index: {}]
  %s3 = inlined_call_operand.vmem [shape: f32[32,32], index: 3, kind: input, shape index: {}]
  %s4 = inlined_call_operand.vmem [shape: f32[1,32], index: 4, kind: input, shape index: {}]
  %s5 = inlined_call_operand.vmem [shape: f32[32,192], index: 5, kind: input, shape index: {}]
  %s6 = inlined_call_operand.vmem [shape: f32[1,192], index: 6, kind: input, shape index: {}]
  %s7 = inlined_call_operand.vmem [shape: f32[32,32], index: 7, kind: input, shape index: {}]
  %s8 = inlined_call_operand.vmem [shape: f32[1,32], index: 8, kind: input, shape index: {}]
  %s9 = inlined_call_operand.vmem [shape: f32[2,128], index: 9, kind: input, shape index: {}]
  %s10 = inlined_call_operand.vmem [shape: f32[2,64], index: 10, kind: input, shape index: {}]
  %s11 = inlined_call_operand.vmem [shape: f32[2,92], index: 11, kind: input, shape index: {}]
  %s12 = inlined_call_operand.vmem [shape: f32[4,32], index: 12, kind: input, shape index: {}]
  %s13 = inlined_call_operand.hbm [shape: f32[2,8,32], index: 13, kind: output, shape index: {}]
  %s14 = sld [smem:[#allocation0]]
  $region62: #{tpu_custom_call.1} parent=0
    _
  %s16 = ssub.s32 1, %s14
  %s17 = scalar_select 0, %s16, %s14
  $region1: #{tpu_custom_call.1} parent=0
    #allocation2 [shape = 'u8[8192]{0}', space=vmem, size = 0x2000, scoped, tag = 'output window, operand 0, single buffered']
    #allocation3 [shape = 's32[1]{0}', space=sflag, size = 0x4, scoped, tag = 'scoped memory for tpu_custom_call.1']
    %18 = vsyncpa [#allocation3], 0
    // Predicated region
    $region2: #{tpu_custom_call.1} parent=1 // pred_check
      _
    $region3: #{tpu_custom_call.1} parent=1 // pred_check_branch
      %20 = sbr.rel (0) target = $region5
    $region4: #{tpu_custom_call.1} parent=1 // pred_region
      _
    $region5: #{tpu_custom_call.1} parent=1 // pred_fallthru
      _
    // Predicated region
    $region6: #{tpu_custom_call.1} parent=1 // pred_check
      _
    $region7: #{tpu_custom_call.1} parent=1 // pred_check_branch
      %22 = sbr.rel (0) target = $region9
    $region8: #{tpu_custom_call.1} parent=1 // pred_region
      _
    $region9: #{tpu_custom_call.1} parent=1 // pred_fallthru
      _
    // Predicated region
    $region10: #{tpu_custom_call.1} parent=1 // pred_check
      _
    $region11: #{tpu_custom_call.1} parent=1 // pred_check_branch
      %24 = sbr.rel (0) target = $region13
    $region12: #{tpu_custom_call.1} parent=1 // pred_region
      _
    $region13: #{tpu_custom_call.1} parent=1 // pred_fallthru
      _
    // Predicated region
    $region14: #{tpu_custom_call.1} parent=1 // pred_check
      _
    $region15: #{tpu_custom_call.1} parent=1 // pred_check_branch
      %26 = sbr.rel (0) target = $region17
    $region16: #{tpu_custom_call.1} parent=1 // pred_region
      _
    $region17: #{tpu_custom_call.1} parent=1 // pred_fallthru
      _
    // Predicated region
    $region18: #{tpu_custom_call.1} parent=1 // pred_check
      _
    $region19: #{tpu_custom_call.1} parent=1 // pred_check_branch
      %28 = sbr.rel (0) target = $region21
    $region20: #{tpu_custom_call.1} parent=1 // pred_region
      _
    $region21: #{tpu_custom_call.1} parent=1 // pred_fallthru
      _
    // Predicated region
    $region22: #{tpu_custom_call.1} parent=1 // pred_check
      _
    $region23: #{tpu_custom_call.1} parent=1 // pred_check_branch
      %30 = sbr.rel (0) target = $region25
    $region24: #{tpu_custom_call.1} parent=1 // pred_region
      _
    $region25: #{tpu_custom_call.1} parent=1 // pred_fallthru
      _
    // Predicated region
    $region26: #{tpu_custom_call.1} parent=1 // pred_check
      _
    $region27: #{tpu_custom_call.1} parent=1 // pred_check_branch
      %32 = sbr.rel (0) target = $region29
    $region28: #{tpu_custom_call.1} parent=1 // pred_region
      _
    $region29: #{tpu_custom_call.1} parent=1 // pred_fallthru
      _
    // Predicated region
    $region30: #{tpu_custom_call.1} parent=1 // pred_check
      _
    $region31: #{tpu_custom_call.1} parent=1 // pred_check_branch
      %34 = sbr.rel (0) target = $region33
    $region32: #{tpu_custom_call.1} parent=1 // pred_region
      _
    $region33: #{tpu_custom_call.1} parent=1 // pred_fallthru
      _
    // Predicated region
    $region34: #{tpu_custom_call.1} parent=1 // pred_check
      _
    $region35: #{tpu_custom_call.1} parent=1 // pred_check_branch
      %36 = sbr.rel (0) target = $region37
    $region36: #{tpu_custom_call.1} parent=1 // pred_region
      _
    $region37: #{tpu_custom_call.1} parent=1 // pred_fallthru
      _
    // Predicated region
    $region38: #{tpu_custom_call.1} parent=1 // pred_check
      _
    $region39: #{tpu_custom_call.1} parent=1 // pred_check_branch
      %38 = sbr.rel (0) target = $region41
    $region40: #{tpu_custom_call.1} parent=1 // pred_region
      _
    $region41: #{tpu_custom_call.1} parent=1 // pred_fallthru
      _
    // Predicated region
    $region42: #{tpu_custom_call.1} parent=1 // pred_check
      _
    $region43: #{tpu_custom_call.1} parent=1 // pred_check_branch
      %40 = sbr.rel (0) target = $region45
    $region44: #{tpu_custom_call.1} parent=1 // pred_region
      _
    $region45: #{tpu_custom_call.1} parent=1 // pred_fallthru
      _
    // Predicated region
    $region46: #{tpu_custom_call.1} parent=1 // pred_check
      _
    $region47: #{tpu_custom_call.1} parent=1 // pred_check_branch
      %42 = sbr.rel (0) target = $region49
    $region48: #{tpu_custom_call.1} parent=1 // pred_region
      _
    $region49: #{tpu_custom_call.1} parent=1 // pred_fallthru
      _
    // Predicated region
    $region50: #{tpu_custom_call.1} parent=1 // pred_check
      _
    $region51: #{tpu_custom_call.1} parent=1 // pred_check_branch
      %44 = sbr.rel (0) target = $region53
    $region52: #{tpu_custom_call.1} parent=1 // pred_region
      _
    $region53: #{tpu_custom_call.1} parent=1 // pred_fallthru
      _
    %v45 = vld [vmem:[%s0] sm:$0xff]
    %v46 = vld [vmem:[%s0 + $0x8] sm:$0xff]
    %v47 = vld [vmem:[%s2] sm:$0xff]
    %v48 = vld [vmem:[%s2 + $0x8] sm:$0xff]
    %v49 = vld [vmem:[%s5] sm:$0xff]
    %v50 = vld [vmem:[%s5 + $0x8] sm:$0xff]
    %v51 = vld [vmem:[%s5 + $0x10] sm:$0xff]
    %v52 = vld [vmem:[%s5 + $0x18] sm:$0xff]
    %v53 = vld [vmem:[%s5 + $0x20] sm:$0xff]
    %v54 = vld [vmem:[%s5 + $0x28] sm:$0xff]
    %v55 = vld [vmem:[%s5 + $0x30] sm:$0xff]
    %v56 = vld [vmem:[%s5 + $0x38] sm:$0xff]
    %v57 = vld [vmem:[%s6] sm:$0x3]
    %v59 = vlaneseq
    %v60 = vshrl.u32 %v59, 7
    %v61 = vsub.s32 0, %v60
    %v62 = vrot.slane %v57, %v61
    %v63 = vlaneseq
    %v64 = vshrl.u32 %v63, 7
    %v65 = vsub.s32 1, %v64
    %v66 = vrot.slane %v57, %v65
    %vm69 = vcmask 261120
    %v71 = vsel %vm69, %v45, 0
    %v74 = vsel %vm69, %v46, 0
    %76 = vmatprep.subr.mxu0 %v50
    %77 = vmatpush1.msra.mxu0 %v49
    %78 = vmatprep.subr.mxu0 %v52
    %79 = vmatpush1.msra.mxu0 %v51
    %80 = vmatprep.subr.mxu0 %v54
    %81 = vmatpush1.msra.mxu0 %v53
    %82 = vmatprep.subr.mxu0 %v56
    %83 = vmatpush1.msra.mxu0 %v55
    %84 = vmatprep.subr.mxu0 0.0
    %85 = vmatpush1.msra.mxu0 0.0
    %86 = vmatprep.subr.mxu0 0.0
    %87 = vmatpush1.msra.mxu0 0.0
    %88 = vmatprep.subr.mxu0 0.0
    %89 = vmatpush1.msra.mxu0 0.0
    %90 = vmatprep.subr.mxu0 0.0
    %91 = vmatpush1.msra.mxu0 0.0
    %92 = vmatprep.subr.mxu0 0.0
    %93 = vmatpush1.msra.mxu0 0.0
    %94 = vmatprep.subr.mxu0 0.0
    %95 = vmatpush1.msra.mxu0 0.0
    %96 = vmatprep.subr.mxu0 0.0
    %97 = vmatpush1.msra.mxu0 0.0
    %98 = vmatprep.subr.mxu0 0.0
    %99 = vmatpush1.msra.mxu0 0.0
    %100 = vmatprep.subr.mxu0 0.0
    %101 = vmatpush1.msra.mxu0 0.0
    %102 = vmatprep.subr.mxu0 0.0
    %103 = vmatpush1.msra.mxu0 0.0
    %104 = vmatprep.subr.mxu0 0.0
    %105 = vmatpush1.msra.mxu0 0.0
    %106 = vmatprep.subr.mxu0 0.0
    %107 = vmatpush1.msra.mxu0 0.0
    %108 = vmatprep.subr.mxu0 0.0
    %109 = vmatpush1.msra.mxu0 0.0
    %110 = vmatprep.subr.mxu0 0.0
    %111 = vmatpush1.msra.mxu0 0.0
    %112 = vmatprep.subr.mxu0 0.0
    %113 = vmatpush1.msra.mxu0 0.0
    %114 = vmatprep.subr.mxu0 0.0
    %115 = vmatpush1.msra.mxu0 0.0
    %116 = vmatprep.subr.mxu0 0.0
    %117 = vmatpush1.msra.mxu0 0.0
    %118 = vmatprep.subr.mxu0 0.0
    %119 = vmatpush1.msra.mxu0 0.0
    %120 = vmatprep.subr.mxu0 0.0
    %121 = vmatpush1.msra.mxu0 0.0
    %122 = vmatprep.subr.mxu0 0.0
    %123 = vmatpush1.msra.mxu0 0.0
    %124 = vmatprep.subr.mxu0 0.0
    %125 = vmatpush1.msra.mxu0 0.0
    %126 = vmatprep.subr.mxu0 0.0
    %127 = vmatpush1.msra.mxu0 0.0
    %128 = vmatprep.subr.mxu0 0.0
    %129 = vmatpush1.msra.mxu0 0.0
    %130 = vmatprep.subr.mxu0 0.0
    %131 = vmatpush1.msra.mxu0 0.0
    %132 = vmatprep.subr.mxu0 0.0
    %133 = vmatpush1.msra.mxu0 0.0
    %134 = vmatprep.subr.mxu0 0.0
    %135 = vmatpush1.msra.mxu0 0.0
    %136 = vmatprep.subr.mxu0 0.0
    %137 = vmatpush1.msra.mxu0 0.0
    %138 = vmatprep.subr.mxu0 0.0
    %139 = vmatpush1.msra.mxu0 0.0
    %140 = vmatprep.mubr.f32.mxu0 0.0
    %141 = vmatmul.mubr.f32.gmra.mrb[0].mxu0 %v71
    %v142 = vpop.f32.mrb[0].mxu0
    %v143 = vadd.f32 %v62, %v142
    %v144 = vpop.f32.mrb[0].mxu0
    %v145 = vadd.f32 %v66, %v144
    %146 = vmatprep.mubr.f32.mxu0 0.0
    %147 = vmatmul.mubr.f32.gmra.mrb[0].mxu0 %v74
    %v148 = vpop.f32.mrb[0].mxu0
    %v149 = vadd.f32 %v62, %v148
    %v150 = vpop.f32.mrb[0].mxu0
    %v151 = vadd.f32 %v66, %v150
    %152 = vdwg.mxu0
    %155 = vrot.lane.b32.xlu0 %v145, 112
    %v156 = vpop.permute.xlu0 %155
    %157 = vrot.lane.b32.xlu0 %v151, 112
    %v158 = vpop.permute.xlu0 %157
    %161 = vrot.lane.b32.xlu0 %v145, 96
    %v162 = vpop.permute.xlu0 %161
    %163 = vrot.lane.b32.xlu0 %v151, 96
    %v164 = vpop.permute.xlu0 %163
    %167 = vrot.lane.b32.xlu0 %v145, 80
    %v168 = vpop.permute.xlu0 %167
    %169 = vrot.lane.b32.xlu0 %v151, 80
    %v170 = vpop.permute.xlu0 %169
    %v173 = vcombine.low %v145, %v162
    %v174 = vcombine.high %v145, %v162
    %v176 = vunpack.c.l.s4 1983009808
    %v177 = vunpack.c.0.s8 %v176
    %v178 = vlaneseq
    %v179 = vshrl.u32 %v178, 7
    %v180 = vsub.s32 %v177, %v179
    %v181 = vrot.slane %v173, %v180
    %v183 = vunpack.c.l.s4 1983009808
    %v184 = vunpack.c.0.s8 %v183
    %v185 = vlaneseq
    %v186 = vshrl.u32 %v185, 7
    %v187 = vsub.s32 %v184, %v186
    %v188 = vrot.slane %v174, %v187
    %v189 = vcombine.low %v156, %v168
    %v190 = vcombine.high %v156, %v168
    %v192 = vunpack.c.l.s4 1983009808
    %v193 = vunpack.c.0.s8 %v192
    %v194 = vlaneseq
    %v195 = vshrl.u32 %v194, 7
    %v196 = vsub.s32 %v193, %v195
    %v197 = vrot.slane %v189, %v196
    %v199 = vunpack.c.l.s4 1983009808
    %v200 = vunpack.c.0.s8 %v199
    %v201 = vlaneseq
    %v202 = vshrl.u32 %v201, 7
    %v203 = vsub.s32 %v200, %v202
    %v204 = vrot.slane %v190, %v203
    %v205 = vcombine.low %v181, %v197
    %v206 = vcombine.high %v181, %v197
    %v208 = vunpack.c.l.s4 1934713408
    %v209 = vunpack.c.0.s8 %v208
    %v210 = vlaneseq
    %v211 = vshrl.u32 %v210, 7
    %v212 = vsub.s32 %v209, %v211
    %v213 = vrot.slane %v205, %v212
    %v215 = vunpack.c.l.s4 1934713408
    %v216 = vunpack.c.0.s8 %v215
    %v217 = vlaneseq
    %v218 = vshrl.u32 %v217, 7
    %v219 = vsub.s32 %v216, %v218
    %v220 = vrot.slane %v206, %v219
    %v221 = vcombine.low %v188, %v204
    %v222 = vcombine.high %v188, %v204
    %v224 = vunpack.c.l.s4 1934713408
    %v225 = vunpack.c.0.s8 %v224
    %v226 = vlaneseq
    %v227 = vshrl.u32 %v226, 7
    %v228 = vsub.s32 %v225, %v227
    %v229 = vrot.slane %v221, %v228
    %v231 = vunpack.c.l.s4 1934713408
    %v232 = vunpack.c.0.s8 %v231
    %v233 = vlaneseq
    %v234 = vshrl.u32 %v233, 7
    %v235 = vsub.s32 %v232, %v234
    %v236 = vrot.slane %v222, %v235
    %v237 = vcombine.high %v213, 0.0
    %v238 = vcombine.high %v220, 0.0
    %v239 = vcombine.high %v229, 0.0
    %v240 = vcombine.high %v236, 0.0
    %v241 = vcombine.low %v151, %v164
    %v242 = vcombine.high %v151, %v164
    %v244 = vunpack.c.l.s4 1983009808
    %v245 = vunpack.c.0.s8 %v244
    %v246 = vlaneseq
    %v247 = vshrl.u32 %v246, 7
    %v248 = vsub.s32 %v245, %v247
    %v249 = vrot.slane %v241, %v248
    %v251 = vunpack.c.l.s4 1983009808
    %v252 = vunpack.c.0.s8 %v251
    %v253 = vlaneseq
    %v254 = vshrl.u32 %v253, 7
    %v255 = vsub.s32 %v252, %v254
    %v256 = vrot.slane %v242, %v255
    %v257 = vcombine.low %v158, %v170
    %v258 = vcombine.high %v158, %v170
    %v260 = vunpack.c.l.s4 1983009808
    %v261 = vunpack.c.0.s8 %v260
    %v262 = vlaneseq
    %v263 = vshrl.u32 %v262, 7
    %v264 = vsub.s32 %v261, %v263
    %v265 = vrot.slane %v257, %v264
    %v267 = vunpack.c.l.s4 1983009808
    %v268 = vunpack.c.0.s8 %v267
    %v269 = vlaneseq
    %v270 = vshrl.u32 %v269, 7
    %v271 = vsub.s32 %v268, %v270
    %v272 = vrot.slane %v258, %v271
    %v273 = vcombine.low %v249, %v265
    %v274 = vcombine.high %v249, %v265
    %v276 = vunpack.c.l.s4 1934713408
    %v277 = vunpack.c.0.s8 %v276
    %v278 = vlaneseq
    %v279 = vshrl.u32 %v278, 7
    %v280 = vsub.s32 %v277, %v279
    %v281 = vrot.slane %v273, %v280
    %v283 = vunpack.c.l.s4 1934713408
    %v284 = vunpack.c.0.s8 %v283
    %v285 = vlaneseq
    %v286 = vshrl.u32 %v285, 7
    %v287 = vsub.s32 %v284, %v286
    %v288 = vrot.slane %v274, %v287
    %v289 = vcombine.low %v256, %v272
    %v290 = vcombine.high %v256, %v272
    %v292 = vunpack.c.l.s4 1934713408
    %v293 = vunpack.c.0.s8 %v292
    %v294 = vlaneseq
    %v295 = vshrl.u32 %v294, 7
    %v296 = vsub.s32 %v293, %v295
    %v297 = vrot.slane %v289, %v296
    %v299 = vunpack.c.l.s4 1934713408
    %v300 = vunpack.c.0.s8 %v299
    %v301 = vlaneseq
    %v302 = vshrl.u32 %v301, 7
    %v303 = vsub.s32 %v300, %v302
    %v304 = vrot.slane %v290, %v303
    %v305 = vcombine.high %v281, 0.0
    %v306 = vcombine.high %v288, 0.0
    %v307 = vcombine.high %v297, 0.0
    %v308 = vcombine.high %v304, 0.0
    %vm309 = vcmask 125952
    %v310 = vsel %vm309, %v213, -inf
    %311 = vmax.xlane.f32.xlu0 %v310
    %v312 = vpop.xlane.xlu0 %311
    %v313 = vsel %vm309, %v237, -inf
    %314 = vmax.xlane.f32.xlu0 %v313
    %v315 = vpop.xlane.xlu0 %314
    %v316 = vsel %vm309, %v220, -inf
    %317 = vmax.xlane.f32.xlu0 %v316
    %v318 = vpop.xlane.xlu0 %317
    %v319 = vsel %vm309, %v238, -inf
    %320 = vmax.xlane.f32.xlu0 %v319
    %v321 = vpop.xlane.xlu0 %320
    %v322 = vsel %vm309, %v229, -inf
    %323 = vmax.xlane.f32.xlu0 %v322
    %v324 = vpop.xlane.xlu0 %323
    %v325 = vsel %vm309, %v239, -inf
    %326 = vmax.xlane.f32.xlu0 %v325
    %v327 = vpop.xlane.xlu0 %326
    %v328 = vsel %vm309, %v236, -inf
    %329 = vmax.xlane.f32.xlu0 %v328
    %v330 = vpop.xlane.xlu0 %329
    %v331 = vsel %vm309, %v240, -inf
    %332 = vmax.xlane.f32.xlu0 %v331
    %v333 = vpop.xlane.xlu0 %332
    %v334 = vsel %vm309, %v281, -inf
    %335 = vmax.xlane.f32.xlu0 %v334
    %v336 = vpop.xlane.xlu0 %335
    %v337 = vsel %vm309, %v305, -inf
    %338 = vmax.xlane.f32.xlu0 %v337
    %v339 = vpop.xlane.xlu0 %338
    %v340 = vsel %vm309, %v288, -inf
    %341 = vmax.xlane.f32.xlu0 %v340
    %v342 = vpop.xlane.xlu0 %341
    %v343 = vsel %vm309, %v306, -inf
    %344 = vmax.xlane.f32.xlu0 %v343
    %v345 = vpop.xlane.xlu0 %344
    %v346 = vsel %vm309, %v297, -inf
    %347 = vmax.xlane.f32.xlu0 %v346
    %v348 = vpop.xlane.xlu0 %347
    %v349 = vsel %vm309, %v307, -inf
    %350 = vmax.xlane.f32.xlu0 %v349
    %v351 = vpop.xlane.xlu0 %350
    %v352 = vsel %vm309, %v304, -inf
    %353 = vmax.xlane.f32.xlu0 %v352
    %v354 = vpop.xlane.xlu0 %353
    %v355 = vsel %vm309, %v308, -inf
    %356 = vmax.xlane.f32.xlu0 %v355
    %v357 = vpop.xlane.xlu0 %356
    %v358 = vsub.f32 %v213, %v312
    %v359 = vsub.f32 %v237, %v315
    %v360 = vsub.f32 %v220, %v318
    %v361 = vsub.f32 %v238, %v321
    %v362 = vsub.f32 %v229, %v324
    %v363 = vsub.f32 %v239, %v327
    %v364 = vsub.f32 %v236, %v330
    %v365 = vsub.f32 %v240, %v333
    %v366 = vsub.f32 %v281, %v336
    %v367 = vsub.f32 %v305, %v339
    %v368 = vsub.f32 %v288, %v342
    %v369 = vsub.f32 %v306, %v345
    %v370 = vsub.f32 %v297, %v348
    %v371 = vsub.f32 %v307, %v351
    %v372 = vsub.f32 %v304, %v354
    %v373 = vsub.f32 %v308, %v357
    %v374 = vmul.f32 %v358, 1.442695
    %v375 = vpow.pop %v374
    %v376 = vmul.f32 %v359, 1.442695
    %v377 = vpow.pop %v376
    %v378 = vmul.f32 %v360, 1.442695
    %v379 = vpow.pop %v378
    %v380 = vmul.f32 %v361, 1.442695
    %v381 = vpow.pop %v380
    %v382 = vmul.f32 %v362, 1.442695
    %v383 = vpow.pop %v382
    %v384 = vmul.f32 %v363, 1.442695
    %v385 = vpow.pop %v384
    %v386 = vmul.f32 %v364, 1.442695
    %v387 = vpow.pop %v386
    %v388 = vmul.f32 %v365, 1.442695
    %v389 = vpow.pop %v388
    %v390 = vmul.f32 %v366, 1.442695
    %v391 = vpow.pop %v390
    %v392 = vmul.f32 %v367, 1.442695
    %v393 = vpow.pop %v392
    %v394 = vmul.f32 %v368, 1.442695
    %v395 = vpow.pop %v394
    %v396 = vmul.f32 %v369, 1.442695
    %v397 = vpow.pop %v396
    %v398 = vmul.f32 %v370, 1.442695
    %v399 = vpow.pop %v398
    %v400 = vmul.f32 %v371, 1.442695
    %v401 = vpow.pop %v400
    %v402 = vmul.f32 %v372, 1.442695
    %v403 = vpow.pop %v402
    %v404 = vmul.f32 %v373, 1.442695
    %v405 = vpow.pop %v404
    %v406 = vsel %vm309, %v375, 0.0
    %407 = vadd.xlane.f32.xlu0 %v406
    %v408 = vpop.xlane.xlu0 %407
    %v409 = vsel %vm309, %v377, 0.0
    %410 = vadd.xlane.f32.xlu0 %v409
    %v411 = vpop.xlane.xlu0 %410
    %v412 = vsel %vm309, %v379, 0.0
    %413 = vadd.xlane.f32.xlu0 %v412
    %v414 = vpop.xlane.xlu0 %413
    %v415 = vsel %vm309, %v381, 0.0
    %416 = vadd.xlane.f32.xlu0 %v415
    %v417 = vpop.xlane.xlu0 %416
    %v418 = vsel %vm309, %v383, 0.0
    %419 = vadd.xlane.f32.xlu0 %v418
    %v420 = vpop.xlane.xlu0 %419
    %v421 = vsel %vm309, %v385, 0.0
    %422 = vadd.xlane.f32.xlu0 %v421
    %v423 = vpop.xlane.xlu0 %422
    %v424 = vsel %vm309, %v387, 0.0
    %425 = vadd.xlane.f32.xlu0 %v424
    %v426 = vpop.xlane.xlu0 %425
    %v427 = vsel %vm309, %v389, 0.0
    %428 = vadd.xlane.f32.xlu0 %v427
    %v429 = vpop.xlane.xlu0 %428
    %v430 = vsel %vm309, %v391, 0.0
    %431 = vadd.xlane.f32.xlu0 %v430
    %v432 = vpop.xlane.xlu0 %431
    %v433 = vsel %vm309, %v393, 0.0
    %434 = vadd.xlane.f32.xlu0 %v433
    %v435 = vpop.xlane.xlu0 %434
    %v436 = vsel %vm309, %v395, 0.0
    %437 = vadd.xlane.f32.xlu0 %v436
    %v438 = vpop.xlane.xlu0 %437
    %v439 = vsel %vm309, %v397, 0.0
    %440 = vadd.xlane.f32.xlu0 %v439
    %v441 = vpop.xlane.xlu0 %440
    %v442 = vsel %vm309, %v399, 0.0
    %443 = vadd.xlane.f32.xlu0 %v442
    %v444 = vpop.xlane.xlu0 %443
    %v445 = vsel %vm309, %v401, 0.0
    %446 = vadd.xlane.f32.xlu0 %v445
    %v447 = vpop.xlane.xlu0 %446
    %v448 = vsel %vm309, %v403, 0.0
    %449 = vadd.xlane.f32.xlu0 %v448
    %v450 = vpop.xlane.xlu0 %449
    %v451 = vsel %vm309, %v405, 0.0
    %452 = vadd.xlane.f32.xlu0 %v451
    %v453 = vpop.xlane.xlu0 %452
    %v454 = vrcp.pop %v408
    %v455 = vrcp.pop %v411
    %v456 = vrcp.pop %v414
    %v457 = vrcp.pop %v417
    %v458 = vrcp.pop %v420
    %v459 = vrcp.pop %v423
    %v460 = vrcp.pop %v426
    %v461 = vrcp.pop %v429
    %v462 = vrcp.pop %v432
    %v463 = vrcp.pop %v435
    %v464 = vrcp.pop %v438
    %v465 = vrcp.pop %v441
    %v466 = vrcp.pop %v444
    %v467 = vrcp.pop %v447
    %v468 = vrcp.pop %v450
    %v469 = vrcp.pop %v453
    %v470 = vmul.f32 %v375, %v454
    %v471 = vmul.f32 %v377, %v455
    %v472 = vmul.f32 %v379, %v456
    %v473 = vmul.f32 %v381, %v457
    %v474 = vmul.f32 %v383, %v458
    %v475 = vmul.f32 %v385, %v459
    %v476 = vmul.f32 %v387, %v460
    %v477 = vmul.f32 %v389, %v461
    %v478 = vmul.f32 %v391, %v462
    %v479 = vmul.f32 %v393, %v463
    %v480 = vmul.f32 %v395, %v464
    %v481 = vmul.f32 %v397, %v465
    %v482 = vmul.f32 %v399, %v466
    %v483 = vmul.f32 %v401, %v467
    %v484 = vmul.f32 %v403, %v468
    %v485 = vmul.f32 %v405, %v469
    %v486 = vcombine.low %v470, %v472
    %v488 = vunpack.c.l.s4 1983009808
    %v489 = vunpack.c.0.s8 %v488
    %v490 = vlaneseq
    %v491 = vshrl.u32 %v490, 7
    %v492 = vsub.s32 %v489, %v491
    %v493 = vrot.slane %v486, %v492
    %v494 = vcombine.low %v471, %v473
    %v496 = vunpack.c.l.s4 1983009808
    %v497 = vunpack.c.0.s8 %v496
    %v498 = vlaneseq
    %v499 = vshrl.u32 %v498, 7
    %v500 = vsub.s32 %v497, %v499
    %v501 = vrot.slane %v494, %v500
    %v502 = vcombine.low %v474, %v476
    %v504 = vunpack.c.l.s4 1983009808
    %v505 = vunpack.c.0.s8 %v504
    %v506 = vlaneseq
    %v507 = vshrl.u32 %v506, 7
    %v508 = vsub.s32 %v505, %v507
    %v509 = vrot.slane %v502, %v508
    %v510 = vcombine.low %v475, %v477
    %v512 = vunpack.c.l.s4 1983009808
    %v513 = vunpack.c.0.s8 %v512
    %v514 = vlaneseq
    %v515 = vshrl.u32 %v514, 7
    %v516 = vsub.s32 %v513, %v515
    %v517 = vrot.slane %v510, %v516
    %v518 = vcombine.low %v493, %v501
    %v519 = vcombine.high %v493, %v501
    %v521 = vunpack.c.l.s4 1934713408
    %v522 = vunpack.c.0.s8 %v521
    %v523 = vlaneseq
    %v524 = vshrl.u32 %v523, 7
    %v525 = vsub.s32 %v522, %v524
    %v526 = vrot.slane %v518, %v525
    %v528 = vunpack.c.l.s4 1934713408
    %v529 = vunpack.c.0.s8 %v528
    %v530 = vlaneseq
    %v531 = vshrl.u32 %v530, 7
    %v532 = vsub.s32 %v529, %v531
    %v533 = vrot.slane %v519, %v532
    %v534 = vcombine.low %v509, %v517
    %v535 = vcombine.high %v509, %v517
    %v537 = vunpack.c.l.s4 1934713408
    %v538 = vunpack.c.0.s8 %v537
    %v539 = vlaneseq
    %v540 = vshrl.u32 %v539, 7
    %v541 = vsub.s32 %v538, %v540
    %v542 = vrot.slane %v534, %v541
    %v544 = vunpack.c.l.s4 1934713408
    %v545 = vunpack.c.0.s8 %v544
    %v546 = vlaneseq
    %v547 = vshrl.u32 %v546, 7
    %v548 = vsub.s32 %v545, %v547
    %v549 = vrot.slane %v535, %v548
    %v550 = vcombine.low %v526, %v542
    %v551 = vcombine.high %v526, %v542
    %v552 = vcombine.low %v533, %v549
    %v553 = vcombine.high %v533, %v549
    %v554 = vcombine.low %v478, %v480
    %v556 = vunpack.c.l.s4 1983009808
    %v557 = vunpack.c.0.s8 %v556
    %v558 = vlaneseq
    %v559 = vshrl.u32 %v558, 7
    %v560 = vsub.s32 %v557, %v559
    %v561 = vrot.slane %v554, %v560
    %v562 = vcombine.low %v479, %v481
    %v564 = vunpack.c.l.s4 1983009808
    %v565 = vunpack.c.0.s8 %v564
    %v566 = vlaneseq
    %v567 = vshrl.u32 %v566, 7
    %v568 = vsub.s32 %v565, %v567
    %v569 = vrot.slane %v562, %v568
    %v570 = vcombine.low %v482, %v484
    %v572 = vunpack.c.l.s4 1983009808
    %v573 = vunpack.c.0.s8 %v572
    %v574 = vlaneseq
    %v575 = vshrl.u32 %v574, 7
    %v576 = vsub.s32 %v573, %v575
    %v577 = vrot.slane %v570, %v576
    %v578 = vcombine.low %v483, %v485
    %v580 = vunpack.c.l.s4 1983009808
    %v581 = vunpack.c.0.s8 %v580
    %v582 = vlaneseq
    %v583 = vshrl.u32 %v582, 7
    %v584 = vsub.s32 %v581, %v583
    %v585 = vrot.slane %v578, %v584
    %v586 = vcombine.low %v561, %v569
    %v587 = vcombine.high %v561, %v569
    %v589 = vunpack.c.l.s4 1934713408
    %v590 = vunpack.c.0.s8 %v589
    %v591 = vlaneseq
    %v592 = vshrl.u32 %v591, 7
    %v593 = vsub.s32 %v590, %v592
    %v594 = vrot.slane %v586, %v593
    %v596 = vunpack.c.l.s4 1934713408
    %v597 = vunpack.c.0.s8 %v596
    %v598 = vlaneseq
    %v599 = vshrl.u32 %v598, 7
    %v600 = vsub.s32 %v597, %v599
    %v601 = vrot.slane %v587, %v600
    %v602 = vcombine.low %v577, %v585
    %v603 = vcombine.high %v577, %v585
    %v605 = vunpack.c.l.s4 1934713408
    %v606 = vunpack.c.0.s8 %v605
    %v607 = vlaneseq
    %v608 = vshrl.u32 %v607, 7
    %v609 = vsub.s32 %v606, %v608
    %v610 = vrot.slane %v602, %v609
    %v612 = vunpack.c.l.s4 1934713408
    %v613 = vunpack.c.0.s8 %v612
    %v614 = vlaneseq
    %v615 = vshrl.u32 %v614, 7
    %v616 = vsub.s32 %v613, %v615
    %v617 = vrot.slane %v603, %v616
    %v618 = vcombine.low %v594, %v610
    %v619 = vcombine.high %v594, %v610
    %v620 = vcombine.low %v601, %v617
    %v621 = vcombine.high %v601, %v617
    %624 = vrot.lane.b32.xlu0 %v551, 16
    %v625 = vpop.permute.xlu0 %624
    %626 = vrot.lane.b32.xlu0 %v619, 16
    %v627 = vpop.permute.xlu0 %626
    %632 = vrot.lane.b32.xlu0 %v552, 32
    %v633 = vpop.permute.xlu0 %632
    %634 = vrot.lane.b32.xlu0 %v620, 32
    %v635 = vpop.permute.xlu0 %634
    %640 = vrot.lane.b32.xlu0 %v553, 48
    %v641 = vpop.permute.xlu0 %640
    %642 = vrot.lane.b32.xlu0 %v621, 48
    %v643 = vpop.permute.xlu0 %642
    %vm646 = vcmask 130048
    %v647 = vsel %vm646, %v550, %v625
    %v648 = vsel %vm646, %v618, %v627
    %v649 = vsel %vm69, %v647, %v633
    %v650 = vsel %vm69, %v648, %v635
    %vm651 = vcmask 392192
    %v652 = vsel %vm651, %v649, %v641
    %v653 = vsel %vm651, %v650, %v643
    %v654 = vld [vmem:[%s9] sm:$0x1]
    %v655 = vlaneseq
    %v656 = vshrl.u32 %v655, 7
    %v657 = vsub.s32 0, %v656
    %v658 = vrot.slane %v654, %v657
    %v659 = vmul.f32 %v143, %v658
    %v660 = vmul.f32 %v149, %v658
    %v661 = vadd.f32 %v47, %v659
    %v662 = vadd.f32 %v48, %v660
    %v663 = vld [vmem:[%s9 + $0x1] sm:$0x1]
    %v664 = vlaneseq
    %v665 = vshrl.u32 %v664, 7
    %v666 = vsub.s32 0, %v665
    %v667 = vrot.slane %v663, %v666
    %v668 = vmul.f32 %v661, %v667
    %v669 = vmul.f32 %v662, %v667
    %v670 = vsub.f32 %v668, 0.5
    %v671 = vsub.f32 %v669, 0.5
    %v672 = vld [vmem:[%s10] sm:$0x1]
    %v673 = vmax.f32 %v670, -2.0
    %v674 = vmax.f32 %v671, -2.0
    %v675 = vlaneseq
    %v676 = vshrl.u32 %v675, 7
    %v677 = vsub.s32 0, %v676
    %v678 = vrot.slane %v672, %v677
    %681 = vrot.lane.b32.xlu0 %v673, 64
    %v682 = vpop.permute.xlu0 %681
    %683 = vrot.lane.b32.xlu0 %v674, 64
    %v684 = vpop.permute.xlu0 %683
    %v687 = vmin.f32 %v678, %v682
    %v688 = vmin.f32 %v678, %v684
    %v689 = vld [vmem:[%s10 + $0x1] sm:$0x1]
    %v690 = vlaneseq
    %v691 = vshrl.u32 %v690, 7
    %v692 = vsub.s32 0, %v691
    %v693 = vrot.slane %v689, %v692
    %v694 = vadd.f32 %v687, %v693
    %v695 = vadd.f32 %v688, %v693
    %v696 = vld [vmem:[%s11] sm:$0x1]
    %v697 = vld [vmem:[%s11 + $0x1] sm:$0x1]
    %v698 = vlaneseq
    %v699 = vshrl.u32 %v698, 7
    %v700 = vsub.s32 0, %v699
    %v701 = vrot.slane %v670, %v700
    %703 = vbcast.lane.b32.xlu0 %v701, 256
    %v704 = vpop.permute.xlu0 %703
    %s706 = sor.u32 256, 8
    %707 = vbcast.lane.b32.xlu0 %v701, %s706
    %v708 = vpop.permute.xlu0 %707
    %v709 = vlaneseq
    %v710 = vshrl.u32 %v709, 7
    %v711 = vsub.s32 1, %v710
    %v712 = vrot.slane %v670, %v711
    %714 = vbcast.lane.b32.xlu0 %v712, 256
    %v715 = vpop.permute.xlu0 %714
    %s717 = sor.u32 256, 8
    %718 = vbcast.lane.b32.xlu0 %v712, %s717
    %v719 = vpop.permute.xlu0 %718
    %v720 = vlaneseq
    %v721 = vshrl.u32 %v720, 7
    %v722 = vsub.s32 2, %v721
    %v723 = vrot.slane %v670, %v722
    %725 = vbcast.lane.b32.xlu0 %v723, 256
    %v726 = vpop.permute.xlu0 %725
    %s728 = sor.u32 256, 8
    %729 = vbcast.lane.b32.xlu0 %v723, %s728
    %v730 = vpop.permute.xlu0 %729
    %v731 = vlaneseq
    %v732 = vshrl.u32 %v731, 7
    %v733 = vsub.s32 3, %v732
    %v734 = vrot.slane %v670, %v733
    %736 = vbcast.lane.b32.xlu0 %v734, 256
    %v737 = vpop.permute.xlu0 %736
    %s739 = sor.u32 256, 8
    %740 = vbcast.lane.b32.xlu0 %v734, %s739
    %v741 = vpop.permute.xlu0 %740
    %v742 = vlaneseq
    %v743 = vshrl.u32 %v742, 7
    %v744 = vsub.s32 4, %v743
    %v745 = vrot.slane %v670, %v744
    %747 = vbcast.lane.b32.xlu0 %v745, 256
    %v748 = vpop.permute.xlu0 %747
    %s750 = sor.u32 256, 8
    %751 = vbcast.lane.b32.xlu0 %v745, %s750
    %v752 = vpop.permute.xlu0 %751
    %v753 = vlaneseq
    %v754 = vshrl.u32 %v753, 7
    %v755 = vsub.s32 5, %v754
    %v756 = vrot.slane %v670, %v755
    %758 = vbcast.lane.b32.xlu0 %v756, 256
    %v759 = vpop.permute.xlu0 %758
    %s761 = sor.u32 256, 8
    %762 = vbcast.lane.b32.xlu0 %v756, %s761
    %v763 = vpop.permute.xlu0 %762
    %v764 = vlaneseq
    %v765 = vshrl.u32 %v764, 7
    %v766 = vsub.s32 6, %v765
    %v767 = vrot.slane %v670, %v766
    %769 = vbcast.lane.b32.xlu0 %v767, 256
    %v770 = vpop.permute.xlu0 %769
    %s772 = sor.u32 256, 8
    %773 = vbcast.lane.b32.xlu0 %v767, %s772
    %v774 = vpop.permute.xlu0 %773
    %v775 = vlaneseq
    %v776 = vshrl.u32 %v775, 7
    %v777 = vsub.s32 7, %v776
    %v778 = vrot.slane %v670, %v777
    %780 = vbcast.lane.b32.xlu0 %v778, 256
    %v781 = vpop.permute.xlu0 %780
    %s783 = sor.u32 256, 8
    %784 = vbcast.lane.b32.xlu0 %v778, %s783
    %v785 = vpop.permute.xlu0 %784
    %v786 = vlaneseq
    %v787 = vshrl.u32 %v786, 7
    %v788 = vsub.s32 0, %v787
    %v789 = vrot.slane %v671, %v788
    %791 = vbcast.lane.b32.xlu0 %v789, 256
    %v792 = vpop.permute.xlu0 %791
    %s794 = sor.u32 256, 8
    %795 = vbcast.lane.b32.xlu0 %v789, %s794
    %v796 = vpop.permute.xlu0 %795
    %v797 = vlaneseq
    %v798 = vshrl.u32 %v797, 7
    %v799 = vsub.s32 1, %v798
    %v800 = vrot.slane %v671, %v799
    %802 = vbcast.lane.b32.xlu0 %v800, 256
    %v803 = vpop.permute.xlu0 %802
    %s805 = sor.u32 256, 8
    %806 = vbcast.lane.b32.xlu0 %v800, %s805
    %v807 = vpop.permute.xlu0 %806
    %v808 = vlaneseq
    %v809 = vshrl.u32 %v808, 7
    %v810 = vsub.s32 2, %v809
    %v811 = vrot.slane %v671, %v810
    %813 = vbcast.lane.b32.xlu0 %v811, 256
    %v814 = vpop.permute.xlu0 %813
    %s816 = sor.u32 256, 8
    %817 = vbcast.lane.b32.xlu0 %v811, %s816
    %v818 = vpop.permute.xlu0 %817
    %v819 = vlaneseq
    %v820 = vshrl.u32 %v819, 7
    %v821 = vsub.s32 3, %v820
    %v822 = vrot.slane %v671, %v821
    %824 = vbcast.lane.b32.xlu0 %v822, 256
    %v825 = vpop.permute.xlu0 %824
    %s827 = sor.u32 256, 8
    %828 = vbcast.lane.b32.xlu0 %v822, %s827
    %v829 = vpop.permute.xlu0 %828
    %v830 = vlaneseq
    %v831 = vshrl.u32 %v830, 7
    %v832 = vsub.s32 4, %v831
    %v833 = vrot.slane %v671, %v832
    %835 = vbcast.lane.b32.xlu0 %v833, 256
    %v836 = vpop.permute.xlu0 %835
    %s838 = sor.u32 256, 8
    %839 = vbcast.lane.b32.xlu0 %v833, %s838
    %v840 = vpop.permute.xlu0 %839
    %v841 = vlaneseq
    %v842 = vshrl.u32 %v841, 7
    %v843 = vsub.s32 5, %v842
    %v844 = vrot.slane %v671, %v843
    %846 = vbcast.lane.b32.xlu0 %v844, 256
    %v847 = vpop.permute.xlu0 %846
    %s849 = sor.u32 256, 8
    %850 = vbcast.lane.b32.xlu0 %v844, %s849
    %v851 = vpop.permute.xlu0 %850
    %v852 = vlaneseq
    %v853 = vshrl.u32 %v852, 7
    %v854 = vsub.s32 6, %v853
    %v855 = vrot.slane %v671, %v854
    %857 = vbcast.lane.b32.xlu0 %v855, 256
    %v858 = vpop.permute.xlu0 %857
    %s860 = sor.u32 256, 8
    %861 = vbcast.lane.b32.xlu0 %v855, %s860
    %v862 = vpop.permute.xlu0 %861
    %v863 = vlaneseq
    %v864 = vshrl.u32 %v863, 7
    %v865 = vsub.s32 7, %v864
    %v866 = vrot.slane %v671, %v865
    %868 = vbcast.lane.b32.xlu0 %v866, 256
    %v869 = vpop.permute.xlu0 %868
    %s871 = sor.u32 256, 8
    %872 = vbcast.lane.b32.xlu0 %v866, %s871
    %v873 = vpop.permute.xlu0 %872
    %v874 = vlaneseq
    %v875 = vshrl.u32 %v874, 7
    %v876 = vsub.s32 0, %v875
    %v877 = vrot.slane %v696, %v876
    %v878 = vsub.f32 %v877, %v704
    %v879 = vsub.f32 %v877, %v708
    %v880 = vsub.f32 %v877, %v715
    %v881 = vsub.f32 %v877, %v719
    %v882 = vsub.f32 %v877, %v726
    %v883 = vsub.f32 %v877, %v730
    %v884 = vsub.f32 %v877, %v737
    %v885 = vsub.f32 %v877, %v741
    %v886 = vsub.f32 %v877, %v748
    %v887 = vsub.f32 %v877, %v752
    %v888 = vsub.f32 %v877, %v759
    %v889 = vsub.f32 %v877, %v763
    %v890 = vsub.f32 %v877, %v770
    %v891 = vsub.f32 %v877, %v774
    %v892 = vsub.f32 %v877, %v781
    %v893 = vsub.f32 %v877, %v785
    %v894 = vsub.f32 %v877, %v792
    %v895 = vsub.f32 %v877, %v796
    %v896 = vsub.f32 %v877, %v803
    %v897 = vsub.f32 %v877, %v807
    %v898 = vsub.f32 %v877, %v814
    %v899 = vsub.f32 %v877, %v818
    %v900 = vsub.f32 %v877, %v825
    %v901 = vsub.f32 %v877, %v829
    %v902 = vsub.f32 %v877, %v836
    %v903 = vsub.f32 %v877, %v840
    %v904 = vsub.f32 %v877, %v847
    %v905 = vsub.f32 %v877, %v851
    %v906 = vsub.f32 %v877, %v858
    %v907 = vsub.f32 %v877, %v862
    %v908 = vsub.f32 %v877, %v869
    %v909 = vsub.f32 %v877, %v873
    %v910 = vand.u32 2147483647, %v878
    %v911 = vand.u32 2147483647, %v879
    %v912 = vand.u32 2147483647, %v880
    %v913 = vand.u32 2147483647, %v881
    %v914 = vand.u32 2147483647, %v882
    %v915 = vand.u32 2147483647, %v883
    %v916 = vand.u32 2147483647, %v884
    %v917 = vand.u32 2147483647, %v885
    %v918 = vand.u32 2147483647, %v886
    %v919 = vand.u32 2147483647, %v887
    %v920 = vand.u32 2147483647, %v888
    %v921 = vand.u32 2147483647, %v889
    %v922 = vand.u32 2147483647, %v890
    %v923 = vand.u32 2147483647, %v891
    %v924 = vand.u32 2147483647, %v892
    %v925 = vand.u32 2147483647, %v893
    %v926 = vand.u32 2147483647, %v894
    %v927 = vand.u32 2147483647, %v895
    %v928 = vand.u32 2147483647, %v896
    %v929 = vand.u32 2147483647, %v897
    %v930 = vand.u32 2147483647, %v898
    %v931 = vand.u32 2147483647, %v899
    %v932 = vand.u32 2147483647, %v900
    %v933 = vand.u32 2147483647, %v901
    %v934 = vand.u32 2147483647, %v902
    %v935 = vand.u32 2147483647, %v903
    %v936 = vand.u32 2147483647, %v904
    %v937 = vand.u32 2147483647, %v905
    %v938 = vand.u32 2147483647, %v906
    %v939 = vand.u32 2147483647, %v907
    %v940 = vand.u32 2147483647, %v908
    %v941 = vand.u32 2147483647, %v909
    %v942 = vsub.f32 1.0, %v910
    %v943 = vsub.f32 1.0, %v911
    %v944 = vsub.f32 1.0, %v912
    %v945 = vsub.f32 1.0, %v913
    %v946 = vsub.f32 1.0, %v914
    %v947 = vsub.f32 1.0, %v915
    %v948 = vsub.f32 1.0, %v916
    %v949 = vsub.f32 1.0, %v917
    %v950 = vsub.f32 1.0, %v918
    %v951 = vsub.f32 1.0, %v919
    %v952 = vsub.f32 1.0, %v920
    %v953 = vsub.f32 1.0, %v921
    %v954 = vsub.f32 1.0, %v922
    %v955 = vsub.f32 1.0, %v923
    %v956 = vsub.f32 1.0, %v924
    %v957 = vsub.f32 1.0, %v925
    %v958 = vsub.f32 1.0, %v926
    %v959 = vsub.f32 1.0, %v927
    %v960 = vsub.f32 1.0, %v928
    %v961 = vsub.f32 1.0, %v929
    %v962 = vsub.f32 1.0, %v930
    %v963 = vsub.f32 1.0, %v931
    %v964 = vsub.f32 1.0, %v932
    %v965 = vsub.f32 1.0, %v933
    %v966 = vsub.f32 1.0, %v934
    %v967 = vsub.f32 1.0, %v935
    %v968 = vsub.f32 1.0, %v936
    %v969 = vsub.f32 1.0, %v937
    %v970 = vsub.f32 1.0, %v938
    %v971 = vsub.f32 1.0, %v939
    %v972 = vsub.f32 1.0, %v940
    %v973 = vsub.f32 1.0, %v941
    %v974 = vmax.f32 %v942, 0.0
    %v975 = vmax.f32 %v943, 0.0
    %v976 = vmax.f32 %v944, 0.0
    %v977 = vmax.f32 %v945, 0.0
    %v978 = vmax.f32 %v946, 0.0
    %v979 = vmax.f32 %v947, 0.0
    %v980 = vmax.f32 %v948, 0.0
    %v981 = vmax.f32 %v949, 0.0
    %v982 = vmax.f32 %v950, 0.0
    %v983 = vmax.f32 %v951, 0.0
    %v984 = vmax.f32 %v952, 0.0
    %v985 = vmax.f32 %v953, 0.0
    %v986 = vmax.f32 %v954, 0.0
    %v987 = vmax.f32 %v955, 0.0
    %v988 = vmax.f32 %v956, 0.0
    %v989 = vmax.f32 %v957, 0.0
    %v990 = vmax.f32 %v958, 0.0
    %v991 = vmax.f32 %v959, 0.0
    %v992 = vmax.f32 %v960, 0.0
    %v993 = vmax.f32 %v961, 0.0
    %v994 = vmax.f32 %v962, 0.0
    %v995 = vmax.f32 %v963, 0.0
    %v996 = vmax.f32 %v964, 0.0
    %v997 = vmax.f32 %v965, 0.0
    %v998 = vmax.f32 %v966, 0.0
    %v999 = vmax.f32 %v967, 0.0
    %v1000 = vmax.f32 %v968, 0.0
    %v1001 = vmax.f32 %v969, 0.0
    %v1002 = vmax.f32 %v970, 0.0
    %v1003 = vmax.f32 %v971, 0.0
    %v1004 = vmax.f32 %v972, 0.0
    %v1005 = vmax.f32 %v973, 0.0
    %v1006 = vlaneseq
    %v1007 = vshrl.u32 %v1006, 7
    %v1008 = vsub.s32 0, %v1007
    %v1009 = vrot.slane %v694, %v1008
    %1011 = vbcast.lane.b32.xlu0 %v1009, 256
    %v1012 = vpop.permute.xlu0 %1011
    %s1014 = sor.u32 256, 8
    %1015 = vbcast.lane.b32.xlu0 %v1009, %s1014
    %v1016 = vpop.permute.xlu0 %1015
    %v1017 = vlaneseq
    %v1018 = vshrl.u32 %v1017, 7
    %v1019 = vsub.s32 1, %v1018
    %v1020 = vrot.slane %v694, %v1019
    %1022 = vbcast.lane.b32.xlu0 %v1020, 256
    %v1023 = vpop.permute.xlu0 %1022
    %s1025 = sor.u32 256, 8
    %1026 = vbcast.lane.b32.xlu0 %v1020, %s1025
    %v1027 = vpop.permute.xlu0 %1026
    %v1028 = vlaneseq
    %v1029 = vshrl.u32 %v1028, 7
    %v1030 = vsub.s32 2, %v1029
    %v1031 = vrot.slane %v694, %v1030
    %1033 = vbcast.lane.b32.xlu0 %v1031, 256
    %v1034 = vpop.permute.xlu0 %1033
    %s1036 = sor.u32 256, 8
    %1037 = vbcast.lane.b32.xlu0 %v1031, %s1036
    %v1038 = vpop.permute.xlu0 %1037
    %v1039 = vlaneseq
    %v1040 = vshrl.u32 %v1039, 7
    %v1041 = vsub.s32 3, %v1040
    %v1042 = vrot.slane %v694, %v1041
    %1044 = vbcast.lane.b32.xlu0 %v1042, 256
    %v1045 = vpop.permute.xlu0 %1044
    %s1047 = sor.u32 256, 8
    %1048 = vbcast.lane.b32.xlu0 %v1042, %s1047
    %v1049 = vpop.permute.xlu0 %1048
    %v1050 = vlaneseq
    %v1051 = vshrl.u32 %v1050, 7
    %v1052 = vsub.s32 4, %v1051
    %v1053 = vrot.slane %v694, %v1052
    %1055 = vbcast.lane.b32.xlu0 %v1053, 256
    %v1056 = vpop.permute.xlu0 %1055
    %s1058 = sor.u32 256, 8
    %1059 = vbcast.lane.b32.xlu0 %v1053, %s1058
    %v1060 = vpop.permute.xlu0 %1059
    %v1061 = vlaneseq
    %v1062 = vshrl.u32 %v1061, 7
    %v1063 = vsub.s32 5, %v1062
    %v1064 = vrot.slane %v694, %v1063
    %1066 = vbcast.lane.b32.xlu0 %v1064, 256
    %v1067 = vpop.permute.xlu0 %1066
    %s1069 = sor.u32 256, 8
    %1070 = vbcast.lane.b32.xlu0 %v1064, %s1069
    %v1071 = vpop.permute.xlu0 %1070
    %v1072 = vlaneseq
    %v1073 = vshrl.u32 %v1072, 7
    %v1074 = vsub.s32 6, %v1073
    %v1075 = vrot.slane %v694, %v1074
    %1077 = vbcast.lane.b32.xlu0 %v1075, 256
    %v1078 = vpop.permute.xlu0 %1077
    %s1080 = sor.u32 256, 8
    %1081 = vbcast.lane.b32.xlu0 %v1075, %s1080
    %v1082 = vpop.permute.xlu0 %1081
    %v1083 = vlaneseq
    %v1084 = vshrl.u32 %v1083, 7
    %v1085 = vsub.s32 7, %v1084
    %v1086 = vrot.slane %v694, %v1085
    %1088 = vbcast.lane.b32.xlu0 %v1086, 256
    %v1089 = vpop.permute.xlu0 %1088
    %s1091 = sor.u32 256, 8
    %1092 = vbcast.lane.b32.xlu0 %v1086, %s1091
    %v1093 = vpop.permute.xlu0 %1092
    %v1094 = vlaneseq
    %v1095 = vshrl.u32 %v1094, 7
    %v1096 = vsub.s32 0, %v1095
    %v1097 = vrot.slane %v695, %v1096
    %1099 = vbcast.lane.b32.xlu0 %v1097, 256
    %v1100 = vpop.permute.xlu0 %1099
    %s1102 = sor.u32 256, 8
    %1103 = vbcast.lane.b32.xlu0 %v1097, %s1102
    %v1104 = vpop.permute.xlu0 %1103
    %v1105 = vlaneseq
    %v1106 = vshrl.u32 %v1105, 7
    %v1107 = vsub.s32 1, %v1106
    %v1108 = vrot.slane %v695, %v1107
    %1110 = vbcast.lane.b32.xlu0 %v1108, 256
    %v1111 = vpop.permute.xlu0 %1110
    %s1113 = sor.u32 256, 8
    %1114 = vbcast.lane.b32.xlu0 %v1108, %s1113
    %v1115 = vpop.permute.xlu0 %1114
    %v1116 = vlaneseq
    %v1117 = vshrl.u32 %v1116, 7
    %v1118 = vsub.s32 2, %v1117
    %v1119 = vrot.slane %v695, %v1118
    %1121 = vbcast.lane.b32.xlu0 %v1119, 256
    %v1122 = vpop.permute.xlu0 %1121
    %s1124 = sor.u32 256, 8
    %1125 = vbcast.lane.b32.xlu0 %v1119, %s1124
    %v1126 = vpop.permute.xlu0 %1125
    %v1127 = vlaneseq
    %v1128 = vshrl.u32 %v1127, 7
    %v1129 = vsub.s32 3, %v1128
    %v1130 = vrot.slane %v695, %v1129
    %1132 = vbcast.lane.b32.xlu0 %v1130, 256
    %v1133 = vpop.permute.xlu0 %1132
    %s1135 = sor.u32 256, 8
    %1136 = vbcast.lane.b32.xlu0 %v1130, %s1135
    %v1137 = vpop.permute.xlu0 %1136
    %v1138 = vlaneseq
    %v1139 = vshrl.u32 %v1138, 7
    %v1140 = vsub.s32 4, %v1139
    %v1141 = vrot.slane %v695, %v1140
    %1143 = vbcast.lane.b32.xlu0 %v1141, 256
    %v1144 = vpop.permute.xlu0 %1143
    %s1146 = sor.u32 256, 8
    %1147 = vbcast.lane.b32.xlu0 %v1141, %s1146
    %v1148 = vpop.permute.xlu0 %1147
    %v1149 = vlaneseq
    %v1150 = vshrl.u32 %v1149, 7
    %v1151 = vsub.s32 5, %v1150
    %v1152 = vrot.slane %v695, %v1151
    %1154 = vbcast.lane.b32.xlu0 %v1152, 256
    %v1155 = vpop.permute.xlu0 %1154
    %s1157 = sor.u32 256, 8
    %1158 = vbcast.lane.b32.xlu0 %v1152, %s1157
    %v1159 = vpop.permute.xlu0 %1158
    %v1160 = vlaneseq
    %v1161 = vshrl.u32 %v1160, 7
    %v1162 = vsub.s32 6, %v1161
    %v1163 = vrot.slane %v695, %v1162
    %1165 = vbcast.lane.b32.xlu0 %v1163, 256
    %v1166 = vpop.permute.xlu0 %1165
    %s1168 = sor.u32 256, 8
    %1169 = vbcast.lane.b32.xlu0 %v1163, %s1168
    %v1170 = vpop.permute.xlu0 %1169
    %v1171 = vlaneseq
    %v1172 = vshrl.u32 %v1171, 7
    %v1173 = vsub.s32 7, %v1172
    %v1174 = vrot.slane %v695, %v1173
    %1176 = vbcast.lane.b32.xlu0 %v1174, 256
    %v1177 = vpop.permute.xlu0 %1176
    %s1179 = sor.u32 256, 8
    %1180 = vbcast.lane.b32.xlu0 %v1174, %s1179
    %v1181 = vpop.permute.xlu0 %1180
    %v1182 = vlaneseq
    %v1183 = vshrl.u32 %v1182, 7
    %v1184 = vsub.s32 0, %v1183
    %v1185 = vrot.slane %v697, %v1184
    %v1186 = vsub.f32 %v1185, %v1012
    %v1187 = vsub.f32 %v1185, %v1016
    %v1188 = vsub.f32 %v1185, %v1023
    %v1189 = vsub.f32 %v1185, %v1027
    %v1190 = vsub.f32 %v1185, %v1034
    %v1191 = vsub.f32 %v1185, %v1038
    %v1192 = vsub.f32 %v1185, %v1045
    %v1193 = vsub.f32 %v1185, %v1049
    %v1194 = vsub.f32 %v1185, %v1056
    %v1195 = vsub.f32 %v1185, %v1060
    %v1196 = vsub.f32 %v1185, %v1067
    %v1197 = vsub.f32 %v1185, %v1071
    %v1198 = vsub.f32 %v1185, %v1078
    %v1199 = vsub.f32 %v1185, %v1082
    %v1200 = vsub.f32 %v1185, %v1089
    %v1201 = vsub.f32 %v1185, %v1093
    %v1202 = vsub.f32 %v1185, %v1100
    %v1203 = vsub.f32 %v1185, %v1104
    %v1204 = vsub.f32 %v1185, %v1111
    %v1205 = vsub.f32 %v1185, %v1115
    %v1206 = vsub.f32 %v1185, %v1122
    %v1207 = vsub.f32 %v1185, %v1126
    %v1208 = vsub.f32 %v1185, %v1133
    %v1209 = vsub.f32 %v1185, %v1137
    %v1210 = vsub.f32 %v1185, %v1144
    %v1211 = vsub.f32 %v1185, %v1148
    %v1212 = vsub.f32 %v1185, %v1155
    %v1213 = vsub.f32 %v1185, %v1159
    %v1214 = vsub.f32 %v1185, %v1166
    %v1215 = vsub.f32 %v1185, %v1170
    %v1216 = vsub.f32 %v1185, %v1177
    %v1217 = vsub.f32 %v1185, %v1181
    %v1218 = vand.u32 2147483647, %v1186
    %v1219 = vand.u32 2147483647, %v1187
    %v1220 = vand.u32 2147483647, %v1188
    %v1221 = vand.u32 2147483647, %v1189
    %v1222 = vand.u32 2147483647, %v1190
    %v1223 = vand.u32 2147483647, %v1191
    %v1224 = vand.u32 2147483647, %v1192
    %v1225 = vand.u32 2147483647, %v1193
    %v1226 = vand.u32 2147483647, %v1194
    %v1227 = vand.u32 2147483647, %v1195
    %v1228 = vand.u32 2147483647, %v1196
    %v1229 = vand.u32 2147483647, %v1197
    %v1230 = vand.u32 2147483647, %v1198
    %v1231 = vand.u32 2147483647, %v1199
    %v1232 = vand.u32 2147483647, %v1200
    %v1233 = vand.u32 2147483647, %v1201
    %v1234 = vand.u32 2147483647, %v1202
    %v1235 = vand.u32 2147483647, %v1203
    %v1236 = vand.u32 2147483647, %v1204
    %v1237 = vand.u32 2147483647, %v1205
    %v1238 = vand.u32 2147483647, %v1206
    %v1239 = vand.u32 2147483647, %v1207
    %v1240 = vand.u32 2147483647, %v1208
    %v1241 = vand.u32 2147483647, %v1209
    %v1242 = vand.u32 2147483647, %v1210
    %v1243 = vand.u32 2147483647, %v1211
    %v1244 = vand.u32 2147483647, %v1212
    %v1245 = vand.u32 2147483647, %v1213
    %v1246 = vand.u32 2147483647, %v1214
    %v1247 = vand.u32 2147483647, %v1215
    %v1248 = vand.u32 2147483647, %v1216
    %v1249 = vand.u32 2147483647, %v1217
    %v1250 = vsub.f32 1.0, %v1218
    %v1251 = vsub.f32 1.0, %v1219
    %v1252 = vsub.f32 1.0, %v1220
    %v1253 = vsub.f32 1.0, %v1221
    %v1254 = vsub.f32 1.0, %v1222
    %v1255 = vsub.f32 1.0, %v1223
    %v1256 = vsub.f32 1.0, %v1224
    %v1257 = vsub.f32 1.0, %v1225
    %v1258 = vsub.f32 1.0, %v1226
    %v1259 = vsub.f32 1.0, %v1227
    %v1260 = vsub.f32 1.0, %v1228
    %v1261 = vsub.f32 1.0, %v1229
    %v1262 = vsub.f32 1.0, %v1230
    %v1263 = vsub.f32 1.0, %v1231
    %v1264 = vsub.f32 1.0, %v1232
    %v1265 = vsub.f32 1.0, %v1233
    %v1266 = vsub.f32 1.0, %v1234
    %v1267 = vsub.f32 1.0, %v1235
    %v1268 = vsub.f32 1.0, %v1236
    %v1269 = vsub.f32 1.0, %v1237
    %v1270 = vsub.f32 1.0, %v1238
    %v1271 = vsub.f32 1.0, %v1239
    %v1272 = vsub.f32 1.0, %v1240
    %v1273 = vsub.f32 1.0, %v1241
    %v1274 = vsub.f32 1.0, %v1242
    %v1275 = vsub.f32 1.0, %v1243
    %v1276 = vsub.f32 1.0, %v1244
    %v1277 = vsub.f32 1.0, %v1245
    %v1278 = vsub.f32 1.0, %v1246
    %v1279 = vsub.f32 1.0, %v1247
    %v1280 = vsub.f32 1.0, %v1248
    %v1281 = vsub.f32 1.0, %v1249
    %v1282 = vmax.f32 %v1250, 0.0
    %v1283 = vmax.f32 %v1251, 0.0
    %v1284 = vmax.f32 %v1252, 0.0
    %v1285 = vmax.f32 %v1253, 0.0
    %v1286 = vmax.f32 %v1254, 0.0
    %v1287 = vmax.f32 %v1255, 0.0
    %v1288 = vmax.f32 %v1256, 0.0
    %v1289 = vmax.f32 %v1257, 0.0
    %v1290 = vmax.f32 %v1258, 0.0
    %v1291 = vmax.f32 %v1259, 0.0
    %v1292 = vmax.f32 %v1260, 0.0
    %v1293 = vmax.f32 %v1261, 0.0
    %v1294 = vmax.f32 %v1262, 0.0
    %v1295 = vmax.f32 %v1263, 0.0
    %v1296 = vmax.f32 %v1264, 0.0
    %v1297 = vmax.f32 %v1265, 0.0
    %v1298 = vmax.f32 %v1266, 0.0
    %v1299 = vmax.f32 %v1267, 0.0
    %v1300 = vmax.f32 %v1268, 0.0
    %v1301 = vmax.f32 %v1269, 0.0
    %v1302 = vmax.f32 %v1270, 0.0
    %v1303 = vmax.f32 %v1271, 0.0
    %v1304 = vmax.f32 %v1272, 0.0
    %v1305 = vmax.f32 %v1273, 0.0
    %v1306 = vmax.f32 %v1274, 0.0
    %v1307 = vmax.f32 %v1275, 0.0
    %v1308 = vmax.f32 %v1276, 0.0
    %v1309 = vmax.f32 %v1277, 0.0
    %v1310 = vmax.f32 %v1278, 0.0
    %v1311 = vmax.f32 %v1279, 0.0
    %v1312 = vmax.f32 %v1280, 0.0
    %v1313 = vmax.f32 %v1281, 0.0
    %v1314 = vmul.f32 %v974, %v1282
    %v1315 = vmul.f32 %v975, %v1283
    %v1316 = vmul.f32 %v976, %v1284
    %v1317 = vmul.f32 %v977, %v1285
    %v1318 = vmul.f32 %v978, %v1286
    %v1319 = vmul.f32 %v979, %v1287
    %v1320 = vmul.f32 %v980, %v1288
    %v1321 = vmul.f32 %v981, %v1289
    %v1322 = vmul.f32 %v982, %v1290
    %v1323 = vmul.f32 %v983, %v1291
    %v1324 = vmul.f32 %v984, %v1292
    %v1325 = vmul.f32 %v985, %v1293
    %v1326 = vmul.f32 %v986, %v1294
    %v1327 = vmul.f32 %v987, %v1295
    %v1328 = vmul.f32 %v988, %v1296
    %v1329 = vmul.f32 %v989, %v1297
    %v1330 = vmul.f32 %v990, %v1298
    %v1331 = vmul.f32 %v991, %v1299
    %v1332 = vmul.f32 %v992, %v1300
    %v1333 = vmul.f32 %v993, %v1301
    %v1334 = vmul.f32 %v994, %v1302
    %v1335 = vmul.f32 %v995, %v1303
    %v1336 = vmul.f32 %v996, %v1304
    %v1337 = vmul.f32 %v997, %v1305
    %v1338 = vmul.f32 %v998, %v1306
    %v1339 = vmul.f32 %v999, %v1307
    %v1340 = vmul.f32 %v1000, %v1308
    %v1341 = vmul.f32 %v1001, %v1309
    %v1342 = vmul.f32 %v1002, %v1310
    %v1343 = vmul.f32 %v1003, %v1311
    %v1344 = vmul.f32 %v1004, %v1312
    %v1345 = vmul.f32 %v1005, %v1313
    %v1346 = vlaneseq
    %v1347 = vshrl.u32 %v1346, 7
    %v1348 = vsub.s32 0, %v1347
    %v1349 = vrot.slane %v652, %v1348
    %1351 = vbcast.lane.b32.xlu0 %v1349, 256
    %v1352 = vpop.permute.xlu0 %1351
    %s1354 = sor.u32 256, 8
    %1355 = vbcast.lane.b32.xlu0 %v1349, %s1354
    %v1356 = vpop.permute.xlu0 %1355
    %v1357 = vlaneseq
    %v1358 = vshrl.u32 %v1357, 7
    %v1359 = vsub.s32 1, %v1358
    %v1360 = vrot.slane %v652, %v1359
    %1362 = vbcast.lane.b32.xlu0 %v1360, 256
    %v1363 = vpop.permute.xlu0 %1362
    %s1365 = sor.u32 256, 8
    %1366 = vbcast.lane.b32.xlu0 %v1360, %s1365
    %v1367 = vpop.permute.xlu0 %1366
    %v1368 = vlaneseq
    %v1369 = vshrl.u32 %v1368, 7
    %v1370 = vsub.s32 2, %v1369
    %v1371 = vrot.slane %v652, %v1370
    %1373 = vbcast.lane.b32.xlu0 %v1371, 256
    %v1374 = vpop.permute.xlu0 %1373
    %s1376 = sor.u32 256, 8
    %1377 = vbcast.lane.b32.xlu0 %v1371, %s1376
    %v1378 = vpop.permute.xlu0 %1377
    %v1379 = vlaneseq
    %v1380 = vshrl.u32 %v1379, 7
    %v1381 = vsub.s32 3, %v1380
    %v1382 = vrot.slane %v652, %v1381
    %1384 = vbcast.lane.b32.xlu0 %v1382, 256
    %v1385 = vpop.permute.xlu0 %1384
    %s1387 = sor.u32 256, 8
    %1388 = vbcast.lane.b32.xlu0 %v1382, %s1387
    %v1389 = vpop.permute.xlu0 %1388
    %v1390 = vlaneseq
    %v1391 = vshrl.u32 %v1390, 7
    %v1392 = vsub.s32 4, %v1391
    %v1393 = vrot.slane %v652, %v1392
    %1395 = vbcast.lane.b32.xlu0 %v1393, 256
    %v1396 = vpop.permute.xlu0 %1395
    %s1398 = sor.u32 256, 8
    %1399 = vbcast.lane.b32.xlu0 %v1393, %s1398
    %v1400 = vpop.permute.xlu0 %1399
    %v1401 = vlaneseq
    %v1402 = vshrl.u32 %v1401, 7
    %v1403 = vsub.s32 5, %v1402
    %v1404 = vrot.slane %v652, %v1403
    %1406 = vbcast.lane.b32.xlu0 %v1404, 256
    %v1407 = vpop.permute.xlu0 %1406
    %s1409 = sor.u32 256, 8
    %1410 = vbcast.lane.b32.xlu0 %v1404, %s1409
    %v1411 = vpop.permute.xlu0 %1410
    %v1412 = vlaneseq
    %v1413 = vshrl.u32 %v1412, 7
    %v1414 = vsub.s32 6, %v1413
    %v1415 = vrot.slane %v652, %v1414
    %1417 = vbcast.lane.b32.xlu0 %v1415, 256
    %v1418 = vpop.permute.xlu0 %1417
    %s1420 = sor.u32 256, 8
    %1421 = vbcast.lane.b32.xlu0 %v1415, %s1420
    %v1422 = vpop.permute.xlu0 %1421
    %v1423 = vlaneseq
    %v1424 = vshrl.u32 %v1423, 7
    %v1425 = vsub.s32 7, %v1424
    %v1426 = vrot.slane %v652, %v1425
    %1428 = vbcast.lane.b32.xlu0 %v1426, 256
    %v1429 = vpop.permute.xlu0 %1428
    %s1431 = sor.u32 256, 8
    %1432 = vbcast.lane.b32.xlu0 %v1426, %s1431
    %v1433 = vpop.permute.xlu0 %1432
    %v1434 = vlaneseq
    %v1435 = vshrl.u32 %v1434, 7
    %v1436 = vsub.s32 0, %v1435
    %v1437 = vrot.slane %v653, %v1436
    %1439 = vbcast.lane.b32.xlu0 %v1437, 256
    %v1440 = vpop.permute.xlu0 %1439
    %s1442 = sor.u32 256, 8
    %1443 = vbcast.lane.b32.xlu0 %v1437, %s1442
    %v1444 = vpop.permute.xlu0 %1443
    %v1445 = vlaneseq
    %v1446 = vshrl.u32 %v1445, 7
    %v1447 = vsub.s32 1, %v1446
    %v1448 = vrot.slane %v653, %v1447
    %1450 = vbcast.lane.b32.xlu0 %v1448, 256
    %v1451 = vpop.permute.xlu0 %1450
    %s1453 = sor.u32 256, 8
    %1454 = vbcast.lane.b32.xlu0 %v1448, %s1453
    %v1455 = vpop.permute.xlu0 %1454
    %v1456 = vlaneseq
    %v1457 = vshrl.u32 %v1456, 7
    %v1458 = vsub.s32 2, %v1457
    %v1459 = vrot.slane %v653, %v1458
    %1461 = vbcast.lane.b32.xlu0 %v1459, 256
    %v1462 = vpop.permute.xlu0 %1461
    %s1464 = sor.u32 256, 8
    %1465 = vbcast.lane.b32.xlu0 %v1459, %s1464
    %v1466 = vpop.permute.xlu0 %1465
    %v1467 = vlaneseq
    %v1468 = vshrl.u32 %v1467, 7
    %v1469 = vsub.s32 3, %v1468
    %v1470 = vrot.slane %v653, %v1469
    %1472 = vbcast.lane.b32.xlu0 %v1470, 256
    %v1473 = vpop.permute.xlu0 %1472
    %s1475 = sor.u32 256, 8
    %1476 = vbcast.lane.b32.xlu0 %v1470, %s1475
    %v1477 = vpop.permute.xlu0 %1476
    %v1478 = vlaneseq
    %v1479 = vshrl.u32 %v1478, 7
    %v1480 = vsub.s32 4, %v1479
    %v1481 = vrot.slane %v653, %v1480
    %1483 = vbcast.lane.b32.xlu0 %v1481, 256
    %v1484 = vpop.permute.xlu0 %1483
    %s1486 = sor.u32 256, 8
    %1487 = vbcast.lane.b32.xlu0 %v1481, %s1486
    %v1488 = vpop.permute.xlu0 %1487
    %v1489 = vlaneseq
    %v1490 = vshrl.u32 %v1489, 7
    %v1491 = vsub.s32 5, %v1490
    %v1492 = vrot.slane %v653, %v1491
    %1494 = vbcast.lane.b32.xlu0 %v1492, 256
    %v1495 = vpop.permute.xlu0 %1494
    %s1497 = sor.u32 256, 8
    %1498 = vbcast.lane.b32.xlu0 %v1492, %s1497
    %v1499 = vpop.permute.xlu0 %1498
    %v1500 = vlaneseq
    %v1501 = vshrl.u32 %v1500, 7
    %v1502 = vsub.s32 6, %v1501
    %v1503 = vrot.slane %v653, %v1502
    %1505 = vbcast.lane.b32.xlu0 %v1503, 256
    %v1506 = vpop.permute.xlu0 %1505
    %s1508 = sor.u32 256, 8
    %1509 = vbcast.lane.b32.xlu0 %v1503, %s1508
    %v1510 = vpop.permute.xlu0 %1509
    %v1511 = vlaneseq
    %v1512 = vshrl.u32 %v1511, 7
    %v1513 = vsub.s32 7, %v1512
    %v1514 = vrot.slane %v653, %v1513
    %1516 = vbcast.lane.b32.xlu0 %v1514, 256
    %v1517 = vpop.permute.xlu0 %1516
    %s1519 = sor.u32 256, 8
    %1520 = vbcast.lane.b32.xlu0 %v1514, %s1519
    %v1521 = vpop.permute.xlu0 %1520
    %v1522 = vmul.f32 %v1314, %v1352
    %v1523 = vmul.f32 %v1315, %v1356
    %v1524 = vmul.f32 %v1316, %v1363
    %v1525 = vmul.f32 %v1317, %v1367
    %v1526 = vmul.f32 %v1318, %v1374
    %v1527 = vmul.f32 %v1319, %v1378
    %v1528 = vmul.f32 %v1320, %v1385
    %v1529 = vmul.f32 %v1321, %v1389
    %v1530 = vmul.f32 %v1322, %v1396
    %v1531 = vmul.f32 %v1323, %v1400
    %v1532 = vmul.f32 %v1324, %v1407
    %v1533 = vmul.f32 %v1325, %v1411
    %v1534 = vmul.f32 %v1326, %v1418
    %v1535 = vmul.f32 %v1327, %v1422
    %v1536 = vmul.f32 %v1328, %v1429
    %v1537 = vmul.f32 %v1329, %v1433
    %v1538 = vmul.f32 %v1330, %v1440
    %v1539 = vmul.f32 %v1331, %v1444
    %v1540 = vmul.f32 %v1332, %v1451
    %v1541 = vmul.f32 %v1333, %v1455
    %v1542 = vmul.f32 %v1334, %v1462
    %v1543 = vmul.f32 %v1335, %v1466
    %v1544 = vmul.f32 %v1336, %v1473
    %v1545 = vmul.f32 %v1337, %v1477
    %v1546 = vmul.f32 %v1338, %v1484
    %v1547 = vmul.f32 %v1339, %v1488
    %v1548 = vmul.f32 %v1340, %v1495
    %v1549 = vmul.f32 %v1341, %v1499
    %v1550 = vmul.f32 %v1342, %v1506
    %v1551 = vmul.f32 %v1343, %v1510
    %v1552 = vmul.f32 %v1344, %v1517
    %v1553 = vmul.f32 %v1345, %v1521
    %vm1554 = vcmask 752640
    %v1555 = vsel %vm1554, %v1522, 0.0
    %v1556 = vsel %vm1554, %v1523, 0.0
    %v1557 = vadd.f32 %v1555, %v1556
    %v1558 = vrot.slane %v1557, 4
    %v1559 = vadd.f32 %v1557, %v1558
    %v1560 = vrot.slane %v1559, 2
    %v1561 = vadd.f32 %v1559, %v1560
    %v1562 = vrot.slane %v1561, 1
    %v1563 = vadd.f32 %v1561, %v1562
    %v1564 = vsel %vm1554, %v1524, 0.0
    %v1565 = vsel %vm1554, %v1525, 0.0
    %v1566 = vadd.f32 %v1564, %v1565
    %v1567 = vrot.slane %v1566, 4
    %v1568 = vadd.f32 %v1566, %v1567
    %v1569 = vrot.slane %v1568, 2
    %v1570 = vadd.f32 %v1568, %v1569
    %v1571 = vrot.slane %v1570, 1
    %v1572 = vadd.f32 %v1570, %v1571
    %v1573 = vsel %vm1554, %v1526, 0.0
    %v1574 = vsel %vm1554, %v1527, 0.0
    %v1575 = vadd.f32 %v1573, %v1574
    %v1576 = vrot.slane %v1575, 4
    %v1577 = vadd.f32 %v1575, %v1576
    %v1578 = vrot.slane %v1577, 2
    %v1579 = vadd.f32 %v1577, %v1578
    %v1580 = vrot.slane %v1579, 1
    %v1581 = vadd.f32 %v1579, %v1580
    %v1582 = vsel %vm1554, %v1528, 0.0
    %v1583 = vsel %vm1554, %v1529, 0.0
    %v1584 = vadd.f32 %v1582, %v1583
    %v1585 = vrot.slane %v1584, 4
    %v1586 = vadd.f32 %v1584, %v1585
    %v1587 = vrot.slane %v1586, 2
    %v1588 = vadd.f32 %v1586, %v1587
    %v1589 = vrot.slane %v1588, 1
    %v1590 = vadd.f32 %v1588, %v1589
    %v1591 = vsel %vm1554, %v1530, 0.0
    %v1592 = vsel %vm1554, %v1531, 0.0
    %v1593 = vadd.f32 %v1591, %v1592
    %v1594 = vrot.slane %v1593, 4
    %v1595 = vadd.f32 %v1593, %v1594
    %v1596 = vrot.slane %v1595, 2
    %v1597 = vadd.f32 %v1595, %v1596
    %v1598 = vrot.slane %v1597, 1
    %v1599 = vadd.f32 %v1597, %v1598
    %v1600 = vsel %vm1554, %v1532, 0.0
    %v1601 = vsel %vm1554, %v1533, 0.0
    %v1602 = vadd.f32 %v1600, %v1601
    %v1603 = vrot.slane %v1602, 4
    %v1604 = vadd.f32 %v1602, %v1603
    %v1605 = vrot.slane %v1604, 2
    %v1606 = vadd.f32 %v1604, %v1605
    %v1607 = vrot.slane %v1606, 1
    %v1608 = vadd.f32 %v1606, %v1607
    %v1609 = vsel %vm1554, %v1534, 0.0
    %v1610 = vsel %vm1554, %v1535, 0.0
    %v1611 = vadd.f32 %v1609, %v1610
    %v1612 = vrot.slane %v1611, 4
    %v1613 = vadd.f32 %v1611, %v1612
    %v1614 = vrot.slane %v1613, 2
    %v1615 = vadd.f32 %v1613, %v1614
    %v1616 = vrot.slane %v1615, 1
    %v1617 = vadd.f32 %v1615, %v1616
    %v1618 = vsel %vm1554, %v1536, 0.0
    %v1619 = vsel %vm1554, %v1537, 0.0
    %v1620 = vadd.f32 %v1618, %v1619
    %v1621 = vrot.slane %v1620, 4
    %v1622 = vadd.f32 %v1620, %v1621
    %v1623 = vrot.slane %v1622, 2
    %v1624 = vadd.f32 %v1622, %v1623
    %v1625 = vrot.slane %v1624, 1
    %v1626 = vadd.f32 %v1624, %v1625
    %v1627 = vsel %vm1554, %v1538, 0.0
    %v1628 = vsel %vm1554, %v1539, 0.0
    %v1629 = vadd.f32 %v1627, %v1628
    %v1630 = vrot.slane %v1629, 4
    %v1631 = vadd.f32 %v1629, %v1630
    %v1632 = vrot.slane %v1631, 2
    %v1633 = vadd.f32 %v1631, %v1632
    %v1634 = vrot.slane %v1633, 1
    %v1635 = vadd.f32 %v1633, %v1634
    %v1636 = vsel %vm1554, %v1540, 0.0
    %v1637 = vsel %vm1554, %v1541, 0.0
    %v1638 = vadd.f32 %v1636, %v1637
    %v1639 = vrot.slane %v1638, 4
    %v1640 = vadd.f32 %v1638, %v1639
    %v1641 = vrot.slane %v1640, 2
    %v1642 = vadd.f32 %v1640, %v1641
    %v1643 = vrot.slane %v1642, 1
    %v1644 = vadd.f32 %v1642, %v1643
    %v1645 = vsel %vm1554, %v1542, 0.0
    %v1646 = vsel %vm1554, %v1543, 0.0
    %v1647 = vadd.f32 %v1645, %v1646
    %v1648 = vrot.slane %v1647, 4
    %v1649 = vadd.f32 %v1647, %v1648
    %v1650 = vrot.slane %v1649, 2
    %v1651 = vadd.f32 %v1649, %v1650
    %v1652 = vrot.slane %v1651, 1
    %v1653 = vadd.f32 %v1651, %v1652
    %v1654 = vsel %vm1554, %v1544, 0.0
    %v1655 = vsel %vm1554, %v1545, 0.0
    %v1656 = vadd.f32 %v1654, %v1655
    %v1657 = vrot.slane %v1656, 4
    %v1658 = vadd.f32 %v1656, %v1657
    %v1659 = vrot.slane %v1658, 2
    %v1660 = vadd.f32 %v1658, %v1659
    %v1661 = vrot.slane %v1660, 1
    %v1662 = vadd.f32 %v1660, %v1661
    %v1663 = vsel %vm1554, %v1546, 0.0
    %v1664 = vsel %vm1554, %v1547, 0.0
    %v1665 = vadd.f32 %v1663, %v1664
    %v1666 = vrot.slane %v1665, 4
    %v1667 = vadd.f32 %v1665, %v1666
    %v1668 = vrot.slane %v1667, 2
    %v1669 = vadd.f32 %v1667, %v1668
    %v1670 = vrot.slane %v1669, 1
    %v1671 = vadd.f32 %v1669, %v1670
    %v1672 = vsel %vm1554, %v1548, 0.0
    %v1673 = vsel %vm1554, %v1549, 0.0
    %v1674 = vadd.f32 %v1672, %v1673
    %v1675 = vrot.slane %v1674, 4
    %v1676 = vadd.f32 %v1674, %v1675
    %v1677 = vrot.slane %v1676, 2
    %v1678 = vadd.f32 %v1676, %v1677
    %v1679 = vrot.slane %v1678, 1
    %v1680 = vadd.f32 %v1678, %v1679
    %v1681 = vsel %vm1554, %v1550, 0.0
    %v1682 = vsel %vm1554, %v1551, 0.0
    %v1683 = vadd.f32 %v1681, %v1682
    %v1684 = vrot.slane %v1683, 4
    %v1685 = vadd.f32 %v1683, %v1684
    %v1686 = vrot.slane %v1685, 2
    %v1687 = vadd.f32 %v1685, %v1686
    %v1688 = vrot.slane %v1687, 1
    %v1689 = vadd.f32 %v1687, %v1688
    %v1690 = vsel %vm1554, %v1552, 0.0
    %v1691 = vsel %vm1554, %v1553, 0.0
    %v1692 = vadd.f32 %v1690, %v1691
    %v1693 = vrot.slane %v1692, 4
    %v1694 = vadd.f32 %v1692, %v1693
    %v1695 = vrot.slane %v1694, 2
    %v1696 = vadd.f32 %v1694, %v1695
    %v1697 = vrot.slane %v1696, 1
    %v1698 = vadd.f32 %v1696, %v1697
    %s1700 = sor.u32 256, 16
    %1701 = vbcast.lane.b32.xlu0 %v701, %s1700
    %v1702 = vpop.permute.xlu0 %1701
    %s1704 = sor.u32 256, 24
    %1705 = vbcast.lane.b32.xlu0 %v701, %s1704
    %v1706 = vpop.permute.xlu0 %1705
    %s1708 = sor.u32 256, 16
    %1709 = vbcast.lane.b32.xlu0 %v712, %s1708
    %v1710 = vpop.permute.xlu0 %1709
    %s1712 = sor.u32 256, 24
    %1713 = vbcast.lane.b32.xlu0 %v712, %s1712
    %v1714 = vpop.permute.xlu0 %1713
    %s1716 = sor.u32 256, 16
    %1717 = vbcast.lane.b32.xlu0 %v723, %s1716
    %v1718 = vpop.permute.xlu0 %1717
    %s1720 = sor.u32 256, 24
    %1721 = vbcast.lane.b32.xlu0 %v723, %s1720
    %v1722 = vpop.permute.xlu0 %1721
    %s1724 = sor.u32 256, 16
    %1725 = vbcast.lane.b32.xlu0 %v734, %s1724
    %v1726 = vpop.permute.xlu0 %1725
    %s1728 = sor.u32 256, 24
    %1729 = vbcast.lane.b32.xlu0 %v734, %s1728
    %v1730 = vpop.permute.xlu0 %1729
    %s1732 = sor.u32 256, 16
    %1733 = vbcast.lane.b32.xlu0 %v745, %s1732
    %v1734 = vpop.permute.xlu0 %1733
    %s1736 = sor.u32 256, 24
    %1737 = vbcast.lane.b32.xlu0 %v745, %s1736
    %v1738 = vpop.permute.xlu0 %1737
    %s1740 = sor.u32 256, 16
    %1741 = vbcast.lane.b32.xlu0 %v756, %s1740
    %v1742 = vpop.permute.xlu0 %1741
    %s1744 = sor.u32 256, 24
    %1745 = vbcast.lane.b32.xlu0 %v756, %s1744
    %v1746 = vpop.permute.xlu0 %1745
    %s1748 = sor.u32 256, 16
    %1749 = vbcast.lane.b32.xlu0 %v767, %s1748
    %v1750 = vpop.permute.xlu0 %1749
    %s1752 = sor.u32 256, 24
    %1753 = vbcast.lane.b32.xlu0 %v767, %s1752
    %v1754 = vpop.permute.xlu0 %1753
    %s1756 = sor.u32 256, 16
    %1757 = vbcast.lane.b32.xlu0 %v778, %s1756
    %v1758 = vpop.permute.xlu0 %1757
    %s1760 = sor.u32 256, 24
    %1761 = vbcast.lane.b32.xlu0 %v778, %s1760
    %v1762 = vpop.permute.xlu0 %1761
    %s1764 = sor.u32 256, 16
    %1765 = vbcast.lane.b32.xlu0 %v789, %s1764
    %v1766 = vpop.permute.xlu0 %1765
    %s1768 = sor.u32 256, 24
    %1769 = vbcast.lane.b32.xlu0 %v789, %s1768
    %v1770 = vpop.permute.xlu0 %1769
    %s1772 = sor.u32 256, 16
    %1773 = vbcast.lane.b32.xlu0 %v800, %s1772
    %v1774 = vpop.permute.xlu0 %1773
    %s1776 = sor.u32 256, 24
    %1777 = vbcast.lane.b32.xlu0 %v800, %s1776
    %v1778 = vpop.permute.xlu0 %1777
    %s1780 = sor.u32 256, 16
    %1781 = vbcast.lane.b32.xlu0 %v811, %s1780
    %v1782 = vpop.permute.xlu0 %1781
    %s1784 = sor.u32 256, 24
    %1785 = vbcast.lane.b32.xlu0 %v811, %s1784
    %v1786 = vpop.permute.xlu0 %1785
    %s1788 = sor.u32 256, 16
    %1789 = vbcast.lane.b32.xlu0 %v822, %s1788
    %v1790 = vpop.permute.xlu0 %1789
    %s1792 = sor.u32 256, 24
    %1793 = vbcast.lane.b32.xlu0 %v822, %s1792
    %v1794 = vpop.permute.xlu0 %1793
    %s1796 = sor.u32 256, 16
    %1797 = vbcast.lane.b32.xlu0 %v833, %s1796
    %v1798 = vpop.permute.xlu0 %1797
    %s1800 = sor.u32 256, 24
    %1801 = vbcast.lane.b32.xlu0 %v833, %s1800
    %v1802 = vpop.permute.xlu0 %1801
    %s1804 = sor.u32 256, 16
    %1805 = vbcast.lane.b32.xlu0 %v844, %s1804
    %v1806 = vpop.permute.xlu0 %1805
    %s1808 = sor.u32 256, 24
    %1809 = vbcast.lane.b32.xlu0 %v844, %s1808
    %v1810 = vpop.permute.xlu0 %1809
    %s1812 = sor.u32 256, 16
    %1813 = vbcast.lane.b32.xlu0 %v855, %s1812
    %v1814 = vpop.permute.xlu0 %1813
    %s1816 = sor.u32 256, 24
    %1817 = vbcast.lane.b32.xlu0 %v855, %s1816
    %v1818 = vpop.permute.xlu0 %1817
    %s1820 = sor.u32 256, 16
    %1821 = vbcast.lane.b32.xlu0 %v866, %s1820
    %v1822 = vpop.permute.xlu0 %1821
    %s1824 = sor.u32 256, 24
    %1825 = vbcast.lane.b32.xlu0 %v866, %s1824
    %v1826 = vpop.permute.xlu0 %1825
    %v1827 = vsub.f32 %v877, %v1702
    %v1828 = vsub.f32 %v877, %v1706
    %v1829 = vsub.f32 %v877, %v1710
    %v1830 = vsub.f32 %v877, %v1714
    %v1831 = vsub.f32 %v877, %v1718
    %v1832 = vsub.f32 %v877, %v1722
    %v1833 = vsub.f32 %v877, %v1726
    %v1834 = vsub.f32 %v877, %v1730
    %v1835 = vsub.f32 %v877, %v1734
    %v1836 = vsub.f32 %v877, %v1738
    %v1837 = vsub.f32 %v877, %v1742
    %v1838 = vsub.f32 %v877, %v1746
    %v1839 = vsub.f32 %v877, %v1750
    %v1840 = vsub.f32 %v877, %v1754
    %v1841 = vsub.f32 %v877, %v1758
    %v1842 = vsub.f32 %v877, %v1762
    %v1843 = vsub.f32 %v877, %v1766
    %v1844 = vsub.f32 %v877, %v1770
    %v1845 = vsub.f32 %v877, %v1774
    %v1846 = vsub.f32 %v877, %v1778
    %v1847 = vsub.f32 %v877, %v1782
    %v1848 = vsub.f32 %v877, %v1786
    %v1849 = vsub.f32 %v877, %v1790
    %v1850 = vsub.f32 %v877, %v1794
    %v1851 = vsub.f32 %v877, %v1798
    %v1852 = vsub.f32 %v877, %v1802
    %v1853 = vsub.f32 %v877, %v1806
    %v1854 = vsub.f32 %v877, %v1810
    %v1855 = vsub.f32 %v877, %v1814
    %v1856 = vsub.f32 %v877, %v1818
    %v1857 = vsub.f32 %v877, %v1822
    %v1858 = vsub.f32 %v877, %v1826
    %v1859 = vand.u32 2147483647, %v1827
    %v1860 = vand.u32 2147483647, %v1828
    %v1861 = vand.u32 2147483647, %v1829
    %v1862 = vand.u32 2147483647, %v1830
    %v1863 = vand.u32 2147483647, %v1831
    %v1864 = vand.u32 2147483647, %v1832
    %v1865 = vand.u32 2147483647, %v1833
    %v1866 = vand.u32 2147483647, %v1834
    %v1867 = vand.u32 2147483647, %v1835
    %v1868 = vand.u32 2147483647, %v1836
    %v1869 = vand.u32 2147483647, %v1837
    %v1870 = vand.u32 2147483647, %v1838
    %v1871 = vand.u32 2147483647, %v1839
    %v1872 = vand.u32 2147483647, %v1840
    %v1873 = vand.u32 2147483647, %v1841
    %v1874 = vand.u32 2147483647, %v1842
    %v1875 = vand.u32 2147483647, %v1843
    %v1876 = vand.u32 2147483647, %v1844
    %v1877 = vand.u32 2147483647, %v1845
    %v1878 = vand.u32 2147483647, %v1846
    %v1879 = vand.u32 2147483647, %v1847
    %v1880 = vand.u32 2147483647, %v1848
    %v1881 = vand.u32 2147483647, %v1849
    %v1882 = vand.u32 2147483647, %v1850
    %v1883 = vand.u32 2147483647, %v1851
    %v1884 = vand.u32 2147483647, %v1852
    %v1885 = vand.u32 2147483647, %v1853
    %v1886 = vand.u32 2147483647, %v1854
    %v1887 = vand.u32 2147483647, %v1855
    %v1888 = vand.u32 2147483647, %v1856
    %v1889 = vand.u32 2147483647, %v1857
    %v1890 = vand.u32 2147483647, %v1858
    %v1891 = vsub.f32 1.0, %v1859
    %v1892 = vsub.f32 1.0, %v1860
    %v1893 = vsub.f32 1.0, %v1861
    %v1894 = vsub.f32 1.0, %v1862
    %v1895 = vsub.f32 1.0, %v1863
    %v1896 = vsub.f32 1.0, %v1864
    %v1897 = vsub.f32 1.0, %v1865
    %v1898 = vsub.f32 1.0, %v1866
    %v1899 = vsub.f32 1.0, %v1867
    %v1900 = vsub.f32 1.0, %v1868
    %v1901 = vsub.f32 1.0, %v1869
    %v1902 = vsub.f32 1.0, %v1870
    %v1903 = vsub.f32 1.0, %v1871
    %v1904 = vsub.f32 1.0, %v1872
    %v1905 = vsub.f32 1.0, %v1873
    %v1906 = vsub.f32 1.0, %v1874
    %v1907 = vsub.f32 1.0, %v1875
    %v1908 = vsub.f32 1.0, %v1876
    %v1909 = vsub.f32 1.0, %v1877
    %v1910 = vsub.f32 1.0, %v1878
    %v1911 = vsub.f32 1.0, %v1879
    %v1912 = vsub.f32 1.0, %v1880
    %v1913 = vsub.f32 1.0, %v1881
    %v1914 = vsub.f32 1.0, %v1882
    %v1915 = vsub.f32 1.0, %v1883
    %v1916 = vsub.f32 1.0, %v1884
    %v1917 = vsub.f32 1.0, %v1885
    %v1918 = vsub.f32 1.0, %v1886
    %v1919 = vsub.f32 1.0, %v1887
    %v1920 = vsub.f32 1.0, %v1888
    %v1921 = vsub.f32 1.0, %v1889
    %v1922 = vsub.f32 1.0, %v1890
    %v1923 = vmax.f32 %v1891, 0.0
    %v1924 = vmax.f32 %v1892, 0.0
    %v1925 = vmax.f32 %v1893, 0.0
    %v1926 = vmax.f32 %v1894, 0.0
    %v1927 = vmax.f32 %v1895, 0.0
    %v1928 = vmax.f32 %v1896, 0.0
    %v1929 = vmax.f32 %v1897, 0.0
    %v1930 = vmax.f32 %v1898, 0.0
    %v1931 = vmax.f32 %v1899, 0.0
    %v1932 = vmax.f32 %v1900, 0.0
    %v1933 = vmax.f32 %v1901, 0.0
    %v1934 = vmax.f32 %v1902, 0.0
    %v1935 = vmax.f32 %v1903, 0.0
    %v1936 = vmax.f32 %v1904, 0.0
    %v1937 = vmax.f32 %v1905, 0.0
    %v1938 = vmax.f32 %v1906, 0.0
    %v1939 = vmax.f32 %v1907, 0.0
    %v1940 = vmax.f32 %v1908, 0.0
    %v1941 = vmax.f32 %v1909, 0.0
    %v1942 = vmax.f32 %v1910, 0.0
    %v1943 = vmax.f32 %v1911, 0.0
    %v1944 = vmax.f32 %v1912, 0.0
    %v1945 = vmax.f32 %v1913, 0.0
    %v1946 = vmax.f32 %v1914, 0.0
    %v1947 = vmax.f32 %v1915, 0.0
    %v1948 = vmax.f32 %v1916, 0.0
    %v1949 = vmax.f32 %v1917, 0.0
    %v1950 = vmax.f32 %v1918, 0.0
    %v1951 = vmax.f32 %v1919, 0.0
    %v1952 = vmax.f32 %v1920, 0.0
    %v1953 = vmax.f32 %v1921, 0.0
    %v1954 = vmax.f32 %v1922, 0.0
    %s1956 = sor.u32 256, 16
    %1957 = vbcast.lane.b32.xlu0 %v1009, %s1956
    %v1958 = vpop.permute.xlu0 %1957
    %s1960 = sor.u32 256, 24
    %1961 = vbcast.lane.b32.xlu0 %v1009, %s1960
    %v1962 = vpop.permute.xlu0 %1961
    %s1964 = sor.u32 256, 16
    %1965 = vbcast.lane.b32.xlu0 %v1020, %s1964
    %v1966 = vpop.permute.xlu0 %1965
    %s1968 = sor.u32 256, 24
    %1969 = vbcast.lane.b32.xlu0 %v1020, %s1968
    %v1970 = vpop.permute.xlu0 %1969
    %s1972 = sor.u32 256, 16
    %1973 = vbcast.lane.b32.xlu0 %v1031, %s1972
    %v1974 = vpop.permute.xlu0 %1973
    %s1976 = sor.u32 256, 24
    %1977 = vbcast.lane.b32.xlu0 %v1031, %s1976
    %v1978 = vpop.permute.xlu0 %1977
    %s1980 = sor.u32 256, 16
    %1981 = vbcast.lane.b32.xlu0 %v1042, %s1980
    %v1982 = vpop.permute.xlu0 %1981
    %s1984 = sor.u32 256, 24
    %1985 = vbcast.lane.b32.xlu0 %v1042, %s1984
    %v1986 = vpop.permute.xlu0 %1985
    %s1988 = sor.u32 256, 16
    %1989 = vbcast.lane.b32.xlu0 %v1053, %s1988
    %v1990 = vpop.permute.xlu0 %1989
    %s1992 = sor.u32 256, 24
    %1993 = vbcast.lane.b32.xlu0 %v1053, %s1992
    %v1994 = vpop.permute.xlu0 %1993
    %s1996 = sor.u32 256, 16
    %1997 = vbcast.lane.b32.xlu0 %v1064, %s1996
    %v1998 = vpop.permute.xlu0 %1997
    %s2000 = sor.u32 256, 24
    %2001 = vbcast.lane.b32.xlu0 %v1064, %s2000
    %v2002 = vpop.permute.xlu0 %2001
    %s2004 = sor.u32 256, 16
    %2005 = vbcast.lane.b32.xlu0 %v1075, %s2004
    %v2006 = vpop.permute.xlu0 %2005
    %s2008 = sor.u32 256, 24
    %2009 = vbcast.lane.b32.xlu0 %v1075, %s2008
    %v2010 = vpop.permute.xlu0 %2009
    %s2012 = sor.u32 256, 16
    %2013 = vbcast.lane.b32.xlu0 %v1086, %s2012
    %v2014 = vpop.permute.xlu0 %2013
    %s2016 = sor.u32 256, 24
    %2017 = vbcast.lane.b32.xlu0 %v1086, %s2016
    %v2018 = vpop.permute.xlu0 %2017
    %s2020 = sor.u32 256, 16
    %2021 = vbcast.lane.b32.xlu0 %v1097, %s2020
    %v2022 = vpop.permute.xlu0 %2021
    %s2024 = sor.u32 256, 24
    %2025 = vbcast.lane.b32.xlu0 %v1097, %s2024
    %v2026 = vpop.permute.xlu0 %2025
    %s2028 = sor.u32 256, 16
    %2029 = vbcast.lane.b32.xlu0 %v1108, %s2028
    %v2030 = vpop.permute.xlu0 %2029
    %s2032 = sor.u32 256, 24
    %2033 = vbcast.lane.b32.xlu0 %v1108, %s2032
    %v2034 = vpop.permute.xlu0 %2033
    %s2036 = sor.u32 256, 16
    %2037 = vbcast.lane.b32.xlu0 %v1119, %s2036
    %v2038 = vpop.permute.xlu0 %2037
    %s2040 = sor.u32 256, 24
    %2041 = vbcast.lane.b32.xlu0 %v1119, %s2040
    %v2042 = vpop.permute.xlu0 %2041
    %s2044 = sor.u32 256, 16
    %2045 = vbcast.lane.b32.xlu0 %v1130, %s2044
    %v2046 = vpop.permute.xlu0 %2045
    %s2048 = sor.u32 256, 24
    %2049 = vbcast.lane.b32.xlu0 %v1130, %s2048
    %v2050 = vpop.permute.xlu0 %2049
    %s2052 = sor.u32 256, 16
    %2053 = vbcast.lane.b32.xlu0 %v1141, %s2052
    %v2054 = vpop.permute.xlu0 %2053
    %s2056 = sor.u32 256, 24
    %2057 = vbcast.lane.b32.xlu0 %v1141, %s2056
    %v2058 = vpop.permute.xlu0 %2057
    %s2060 = sor.u32 256, 16
    %2061 = vbcast.lane.b32.xlu0 %v1152, %s2060
    %v2062 = vpop.permute.xlu0 %2061
    %s2064 = sor.u32 256, 24
    %2065 = vbcast.lane.b32.xlu0 %v1152, %s2064
    %v2066 = vpop.permute.xlu0 %2065
    %s2068 = sor.u32 256, 16
    %2069 = vbcast.lane.b32.xlu0 %v1163, %s2068
    %v2070 = vpop.permute.xlu0 %2069
    %s2072 = sor.u32 256, 24
    %2073 = vbcast.lane.b32.xlu0 %v1163, %s2072
    %v2074 = vpop.permute.xlu0 %2073
    %s2076 = sor.u32 256, 16
    %2077 = vbcast.lane.b32.xlu0 %v1174, %s2076
    %v2078 = vpop.permute.xlu0 %2077
    %s2080 = sor.u32 256, 24
    %2081 = vbcast.lane.b32.xlu0 %v1174, %s2080
    %v2082 = vpop.permute.xlu0 %2081
    %v2083 = vsub.f32 %v1185, %v1958
    %v2084 = vsub.f32 %v1185, %v1962
    %v2085 = vsub.f32 %v1185, %v1966
    %v2086 = vsub.f32 %v1185, %v1970
    %v2087 = vsub.f32 %v1185, %v1974
    %v2088 = vsub.f32 %v1185, %v1978
    %v2089 = vsub.f32 %v1185, %v1982
    %v2090 = vsub.f32 %v1185, %v1986
    %v2091 = vsub.f32 %v1185, %v1990
    %v2092 = vsub.f32 %v1185, %v1994
    %v2093 = vsub.f32 %v1185, %v1998
    %v2094 = vsub.f32 %v1185, %v2002
    %v2095 = vsub.f32 %v1185, %v2006
    %v2096 = vsub.f32 %v1185, %v2010
    %v2097 = vsub.f32 %v1185, %v2014
    %v2098 = vsub.f32 %v1185, %v2018
    %v2099 = vsub.f32 %v1185, %v2022
    %v2100 = vsub.f32 %v1185, %v2026
    %v2101 = vsub.f32 %v1185, %v2030
    %v2102 = vsub.f32 %v1185, %v2034
    %v2103 = vsub.f32 %v1185, %v2038
    %v2104 = vsub.f32 %v1185, %v2042
    %v2105 = vsub.f32 %v1185, %v2046
    %v2106 = vsub.f32 %v1185, %v2050
    %v2107 = vsub.f32 %v1185, %v2054
    %v2108 = vsub.f32 %v1185, %v2058
    %v2109 = vsub.f32 %v1185, %v2062
    %v2110 = vsub.f32 %v1185, %v2066
    %v2111 = vsub.f32 %v1185, %v2070
    %v2112 = vsub.f32 %v1185, %v2074
    %v2113 = vsub.f32 %v1185, %v2078
    %v2114 = vsub.f32 %v1185, %v2082
    %v2115 = vand.u32 2147483647, %v2083
    %v2116 = vand.u32 2147483647, %v2084
    %v2117 = vand.u32 2147483647, %v2085
    %v2118 = vand.u32 2147483647, %v2086
    %v2119 = vand.u32 2147483647, %v2087
    %v2120 = vand.u32 2147483647, %v2088
    %v2121 = vand.u32 2147483647, %v2089
    %v2122 = vand.u32 2147483647, %v2090
    %v2123 = vand.u32 2147483647, %v2091
    %v2124 = vand.u32 2147483647, %v2092
    %v2125 = vand.u32 2147483647, %v2093
    %v2126 = vand.u32 2147483647, %v2094
    %v2127 = vand.u32 2147483647, %v2095
    %v2128 = vand.u32 2147483647, %v2096
    %v2129 = vand.u32 2147483647, %v2097
    %v2130 = vand.u32 2147483647, %v2098
    %v2131 = vand.u32 2147483647, %v2099
    %v2132 = vand.u32 2147483647, %v2100
    %v2133 = vand.u32 2147483647, %v2101
    %v2134 = vand.u32 2147483647, %v2102
    %v2135 = vand.u32 2147483647, %v2103
    %v2136 = vand.u32 2147483647, %v2104
    %v2137 = vand.u32 2147483647, %v2105
    %v2138 = vand.u32 2147483647, %v2106
    %v2139 = vand.u32 2147483647, %v2107
    %v2140 = vand.u32 2147483647, %v2108
    %v2141 = vand.u32 2147483647, %v2109
    %v2142 = vand.u32 2147483647, %v2110
    %v2143 = vand.u32 2147483647, %v2111
    %v2144 = vand.u32 2147483647, %v2112
    %v2145 = vand.u32 2147483647, %v2113
    %v2146 = vand.u32 2147483647, %v2114
    %v2147 = vsub.f32 1.0, %v2115
    %v2148 = vsub.f32 1.0, %v2116
    %v2149 = vsub.f32 1.0, %v2117
    %v2150 = vsub.f32 1.0, %v2118
    %v2151 = vsub.f32 1.0, %v2119
    %v2152 = vsub.f32 1.0, %v2120
    %v2153 = vsub.f32 1.0, %v2121
    %v2154 = vsub.f32 1.0, %v2122
    %v2155 = vsub.f32 1.0, %v2123
    %v2156 = vsub.f32 1.0, %v2124
    %v2157 = vsub.f32 1.0, %v2125
    %v2158 = vsub.f32 1.0, %v2126
    %v2159 = vsub.f32 1.0, %v2127
    %v2160 = vsub.f32 1.0, %v2128
    %v2161 = vsub.f32 1.0, %v2129
    %v2162 = vsub.f32 1.0, %v2130
    %v2163 = vsub.f32 1.0, %v2131
    %v2164 = vsub.f32 1.0, %v2132
    %v2165 = vsub.f32 1.0, %v2133
    %v2166 = vsub.f32 1.0, %v2134
    %v2167 = vsub.f32 1.0, %v2135
    %v2168 = vsub.f32 1.0, %v2136
    %v2169 = vsub.f32 1.0, %v2137
    %v2170 = vsub.f32 1.0, %v2138
    %v2171 = vsub.f32 1.0, %v2139
    %v2172 = vsub.f32 1.0, %v2140
    %v2173 = vsub.f32 1.0, %v2141
    %v2174 = vsub.f32 1.0, %v2142
    %v2175 = vsub.f32 1.0, %v2143
    %v2176 = vsub.f32 1.0, %v2144
    %v2177 = vsub.f32 1.0, %v2145
    %v2178 = vsub.f32 1.0, %v2146
    %v2179 = vmax.f32 %v2147, 0.0
    %v2180 = vmax.f32 %v2148, 0.0
    %v2181 = vmax.f32 %v2149, 0.0
    %v2182 = vmax.f32 %v2150, 0.0
    %v2183 = vmax.f32 %v2151, 0.0
    %v2184 = vmax.f32 %v2152, 0.0
    %v2185 = vmax.f32 %v2153, 0.0
    %v2186 = vmax.f32 %v2154, 0.0
    %v2187 = vmax.f32 %v2155, 0.0
    %v2188 = vmax.f32 %v2156, 0.0
    %v2189 = vmax.f32 %v2157, 0.0
    %v2190 = vmax.f32 %v2158, 0.0
    %v2191 = vmax.f32 %v2159, 0.0
    %v2192 = vmax.f32 %v2160, 0.0
    %v2193 = vmax.f32 %v2161, 0.0
    %v2194 = vmax.f32 %v2162, 0.0
    %v2195 = vmax.f32 %v2163, 0.0
    %v2196 = vmax.f32 %v2164, 0.0
    %v2197 = vmax.f32 %v2165, 0.0
    %v2198 = vmax.f32 %v2166, 0.0
    %v2199 = vmax.f32 %v2167, 0.0
    %v2200 = vmax.f32 %v2168, 0.0
    %v2201 = vmax.f32 %v2169, 0.0
    %v2202 = vmax.f32 %v2170, 0.0
    %v2203 = vmax.f32 %v2171, 0.0
    %v2204 = vmax.f32 %v2172, 0.0
    %v2205 = vmax.f32 %v2173, 0.0
    %v2206 = vmax.f32 %v2174, 0.0
    %v2207 = vmax.f32 %v2175, 0.0
    %v2208 = vmax.f32 %v2176, 0.0
    %v2209 = vmax.f32 %v2177, 0.0
    %v2210 = vmax.f32 %v2178, 0.0
    %v2211 = vmul.f32 %v1923, %v2179
    %v2212 = vmul.f32 %v1924, %v2180
    %v2213 = vmul.f32 %v1925, %v2181
    %v2214 = vmul.f32 %v1926, %v2182
    %v2215 = vmul.f32 %v1927, %v2183
    %v2216 = vmul.f32 %v1928, %v2184
    %v2217 = vmul.f32 %v1929, %v2185
    %v2218 = vmul.f32 %v1930, %v2186
    %v2219 = vmul.f32 %v1931, %v2187
    %v2220 = vmul.f32 %v1932, %v2188
    %v2221 = vmul.f32 %v1933, %v2189
    %v2222 = vmul.f32 %v1934, %v2190
    %v2223 = vmul.f32 %v1935, %v2191
    %v2224 = vmul.f32 %v1936, %v2192
    %v2225 = vmul.f32 %v1937, %v2193
    %v2226 = vmul.f32 %v1938, %v2194
    %v2227 = vmul.f32 %v1939, %v2195
    %v2228 = vmul.f32 %v1940, %v2196
    %v2229 = vmul.f32 %v1941, %v2197
    %v2230 = vmul.f32 %v1942, %v2198
    %v2231 = vmul.f32 %v1943, %v2199
    %v2232 = vmul.f32 %v1944, %v2200
    %v2233 = vmul.f32 %v1945, %v2201
    %v2234 = vmul.f32 %v1946, %v2202
    %v2235 = vmul.f32 %v1947, %v2203
    %v2236 = vmul.f32 %v1948, %v2204
    %v2237 = vmul.f32 %v1949, %v2205
    %v2238 = vmul.f32 %v1950, %v2206
    %v2239 = vmul.f32 %v1951, %v2207
    %v2240 = vmul.f32 %v1952, %v2208
    %v2241 = vmul.f32 %v1953, %v2209
    %v2242 = vmul.f32 %v1954, %v2210
    %s2244 = sor.u32 256, 16
    %2245 = vbcast.lane.b32.xlu0 %v1349, %s2244
    %v2246 = vpop.permute.xlu0 %2245
    %s2248 = sor.u32 256, 24
    %2249 = vbcast.lane.b32.xlu0 %v1349, %s2248
    %v2250 = vpop.permute.xlu0 %2249
    %s2252 = sor.u32 256, 16
    %2253 = vbcast.lane.b32.xlu0 %v1360, %s2252
    %v2254 = vpop.permute.xlu0 %2253
    %s2256 = sor.u32 256, 24
    %2257 = vbcast.lane.b32.xlu0 %v1360, %s2256
    %v2258 = vpop.permute.xlu0 %2257
    %s2260 = sor.u32 256, 16
    %2261 = vbcast.lane.b32.xlu0 %v1371, %s2260
    %v2262 = vpop.permute.xlu0 %2261
    %s2264 = sor.u32 256, 24
    %2265 = vbcast.lane.b32.xlu0 %v1371, %s2264
    %v2266 = vpop.permute.xlu0 %2265
    %s2268 = sor.u32 256, 16
    %2269 = vbcast.lane.b32.xlu0 %v1382, %s2268
    %v2270 = vpop.permute.xlu0 %2269
    %s2272 = sor.u32 256, 24
    %2273 = vbcast.lane.b32.xlu0 %v1382, %s2272
    %v2274 = vpop.permute.xlu0 %2273
    %s2276 = sor.u32 256, 16
    %2277 = vbcast.lane.b32.xlu0 %v1393, %s2276
    %v2278 = vpop.permute.xlu0 %2277
    %s2280 = sor.u32 256, 24
    %2281 = vbcast.lane.b32.xlu0 %v1393, %s2280
    %v2282 = vpop.permute.xlu0 %2281
    %s2284 = sor.u32 256, 16
    %2285 = vbcast.lane.b32.xlu0 %v1404, %s2284
    %v2286 = vpop.permute.xlu0 %2285
    %s2288 = sor.u32 256, 24
    %2289 = vbcast.lane.b32.xlu0 %v1404, %s2288
    %v2290 = vpop.permute.xlu0 %2289
    %s2292 = sor.u32 256, 16
    %2293 = vbcast.lane.b32.xlu0 %v1415, %s2292
    %v2294 = vpop.permute.xlu0 %2293
    %s2296 = sor.u32 256, 24
    %2297 = vbcast.lane.b32.xlu0 %v1415, %s2296
    %v2298 = vpop.permute.xlu0 %2297
    %s2300 = sor.u32 256, 16
    %2301 = vbcast.lane.b32.xlu0 %v1426, %s2300
    %v2302 = vpop.permute.xlu0 %2301
    %s2304 = sor.u32 256, 24
    %2305 = vbcast.lane.b32.xlu0 %v1426, %s2304
    %v2306 = vpop.permute.xlu0 %2305
    %s2308 = sor.u32 256, 16
    %2309 = vbcast.lane.b32.xlu0 %v1437, %s2308
    %v2310 = vpop.permute.xlu0 %2309
    %s2312 = sor.u32 256, 24
    %2313 = vbcast.lane.b32.xlu0 %v1437, %s2312
    %v2314 = vpop.permute.xlu0 %2313
    %s2316 = sor.u32 256, 16
    %2317 = vbcast.lane.b32.xlu0 %v1448, %s2316
    %v2318 = vpop.permute.xlu0 %2317
    %s2320 = sor.u32 256, 24
    %2321 = vbcast.lane.b32.xlu0 %v1448, %s2320
    %v2322 = vpop.permute.xlu0 %2321
    %s2324 = sor.u32 256, 16
    %2325 = vbcast.lane.b32.xlu0 %v1459, %s2324
    %v2326 = vpop.permute.xlu0 %2325
    %s2328 = sor.u32 256, 24
    %2329 = vbcast.lane.b32.xlu0 %v1459, %s2328
    %v2330 = vpop.permute.xlu0 %2329
    %s2332 = sor.u32 256, 16
    %2333 = vbcast.lane.b32.xlu0 %v1470, %s2332
    %v2334 = vpop.permute.xlu0 %2333
    %s2336 = sor.u32 256, 24
    %2337 = vbcast.lane.b32.xlu0 %v1470, %s2336
    %v2338 = vpop.permute.xlu0 %2337
    %s2340 = sor.u32 256, 16
    %2341 = vbcast.lane.b32.xlu0 %v1481, %s2340
    %v2342 = vpop.permute.xlu0 %2341
    %s2344 = sor.u32 256, 24
    %2345 = vbcast.lane.b32.xlu0 %v1481, %s2344
    %v2346 = vpop.permute.xlu0 %2345
    %s2348 = sor.u32 256, 16
    %2349 = vbcast.lane.b32.xlu0 %v1492, %s2348
    %v2350 = vpop.permute.xlu0 %2349
    %s2352 = sor.u32 256, 24
    %2353 = vbcast.lane.b32.xlu0 %v1492, %s2352
    %v2354 = vpop.permute.xlu0 %2353
    %s2356 = sor.u32 256, 16
    %2357 = vbcast.lane.b32.xlu0 %v1503, %s2356
    %v2358 = vpop.permute.xlu0 %2357
    %s2360 = sor.u32 256, 24
    %2361 = vbcast.lane.b32.xlu0 %v1503, %s2360
    %v2362 = vpop.permute.xlu0 %2361
    %s2364 = sor.u32 256, 16
    %2365 = vbcast.lane.b32.xlu0 %v1514, %s2364
    %v2366 = vpop.permute.xlu0 %2365
    %s2368 = sor.u32 256, 24
    %2369 = vbcast.lane.b32.xlu0 %v1514, %s2368
    %v2370 = vpop.permute.xlu0 %2369
    %v2371 = vmul.f32 %v2211, %v2246
    %v2372 = vmul.f32 %v2212, %v2250
    %v2373 = vmul.f32 %v2213, %v2254
    %v2374 = vmul.f32 %v2214, %v2258
    %v2375 = vmul.f32 %v2215, %v2262
    %v2376 = vmul.f32 %v2216, %v2266
    %v2377 = vmul.f32 %v2217, %v2270
    %v2378 = vmul.f32 %v2218, %v2274
    %v2379 = vmul.f32 %v2219, %v2278
    %v2380 = vmul.f32 %v2220, %v2282
    %v2381 = vmul.f32 %v2221, %v2286
    %v2382 = vmul.f32 %v2222, %v2290
    %v2383 = vmul.f32 %v2223, %v2294
    %v2384 = vmul.f32 %v2224, %v2298
    %v2385 = vmul.f32 %v2225, %v2302
    %v2386 = vmul.f32 %v2226, %v2306
    %v2387 = vmul.f32 %v2227, %v2310
    %v2388 = vmul.f32 %v2228, %v2314
    %v2389 = vmul.f32 %v2229, %v2318
    %v2390 = vmul.f32 %v2230, %v2322
    %v2391 = vmul.f32 %v2231, %v2326
    %v2392 = vmul.f32 %v2232, %v2330
    %v2393 = vmul.f32 %v2233, %v2334
    %v2394 = vmul.f32 %v2234, %v2338
    %v2395 = vmul.f32 %v2235, %v2342
    %v2396 = vmul.f32 %v2236, %v2346
    %v2397 = vmul.f32 %v2237, %v2350
    %v2398 = vmul.f32 %v2238, %v2354
    %v2399 = vmul.f32 %v2239, %v2358
    %v2400 = vmul.f32 %v2240, %v2362
    %v2401 = vmul.f32 %v2241, %v2366
    %v2402 = vmul.f32 %v2242, %v2370
    %v2403 = vsel %vm1554, %v2371, 0.0
    %v2404 = vsel %vm1554, %v2372, 0.0
    %v2405 = vadd.f32 %v2403, %v2404
    %v2406 = vrot.slane %v2405, 4
    %v2407 = vadd.f32 %v2405, %v2406
    %v2408 = vrot.slane %v2407, 2
    %v2409 = vadd.f32 %v2407, %v2408
    %v2410 = vrot.slane %v2409, 1
    %v2411 = vadd.f32 %v2409, %v2410
    %v2412 = vsel %vm1554, %v2373, 0.0
    %v2413 = vsel %vm1554, %v2374, 0.0
    %v2414 = vadd.f32 %v2412, %v2413
    %v2415 = vrot.slane %v2414, 4
    %v2416 = vadd.f32 %v2414, %v2415
    %v2417 = vrot.slane %v2416, 2
    %v2418 = vadd.f32 %v2416, %v2417
    %v2419 = vrot.slane %v2418, 1
    %v2420 = vadd.f32 %v2418, %v2419
    %v2421 = vsel %vm1554, %v2375, 0.0
    %v2422 = vsel %vm1554, %v2376, 0.0
    %v2423 = vadd.f32 %v2421, %v2422
    %v2424 = vrot.slane %v2423, 4
    %v2425 = vadd.f32 %v2423, %v2424
    %v2426 = vrot.slane %v2425, 2
    %v2427 = vadd.f32 %v2425, %v2426
    %v2428 = vrot.slane %v2427, 1
    %v2429 = vadd.f32 %v2427, %v2428
    %v2430 = vsel %vm1554, %v2377, 0.0
    %v2431 = vsel %vm1554, %v2378, 0.0
    %v2432 = vadd.f32 %v2430, %v2431
    %v2433 = vrot.slane %v2432, 4
    %v2434 = vadd.f32 %v2432, %v2433
    %v2435 = vrot.slane %v2434, 2
    %v2436 = vadd.f32 %v2434, %v2435
    %v2437 = vrot.slane %v2436, 1
    %v2438 = vadd.f32 %v2436, %v2437
    %v2439 = vsel %vm1554, %v2379, 0.0
    %v2440 = vsel %vm1554, %v2380, 0.0
    %v2441 = vadd.f32 %v2439, %v2440
    %v2442 = vrot.slane %v2441, 4
    %v2443 = vadd.f32 %v2441, %v2442
    %v2444 = vrot.slane %v2443, 2
    %v2445 = vadd.f32 %v2443, %v2444
    %v2446 = vrot.slane %v2445, 1
    %v2447 = vadd.f32 %v2445, %v2446
    %v2448 = vsel %vm1554, %v2381, 0.0
    %v2449 = vsel %vm1554, %v2382, 0.0
    %v2450 = vadd.f32 %v2448, %v2449
    %v2451 = vrot.slane %v2450, 4
    %v2452 = vadd.f32 %v2450, %v2451
    %v2453 = vrot.slane %v2452, 2
    %v2454 = vadd.f32 %v2452, %v2453
    %v2455 = vrot.slane %v2454, 1
    %v2456 = vadd.f32 %v2454, %v2455
    %v2457 = vsel %vm1554, %v2383, 0.0
    %v2458 = vsel %vm1554, %v2384, 0.0
    %v2459 = vadd.f32 %v2457, %v2458
    %v2460 = vrot.slane %v2459, 4
    %v2461 = vadd.f32 %v2459, %v2460
    %v2462 = vrot.slane %v2461, 2
    %v2463 = vadd.f32 %v2461, %v2462
    %v2464 = vrot.slane %v2463, 1
    %v2465 = vadd.f32 %v2463, %v2464
    %v2466 = vsel %vm1554, %v2385, 0.0
    %v2467 = vsel %vm1554, %v2386, 0.0
    %v2468 = vadd.f32 %v2466, %v2467
    %v2469 = vrot.slane %v2468, 4
    %v2470 = vadd.f32 %v2468, %v2469
    %v2471 = vrot.slane %v2470, 2
    %v2472 = vadd.f32 %v2470, %v2471
    %v2473 = vrot.slane %v2472, 1
    %v2474 = vadd.f32 %v2472, %v2473
    %v2475 = vsel %vm1554, %v2387, 0.0
    %v2476 = vsel %vm1554, %v2388, 0.0
    %v2477 = vadd.f32 %v2475, %v2476
    %v2478 = vrot.slane %v2477, 4
    %v2479 = vadd.f32 %v2477, %v2478
    %v2480 = vrot.slane %v2479, 2
    %v2481 = vadd.f32 %v2479, %v2480
    %v2482 = vrot.slane %v2481, 1
    %v2483 = vadd.f32 %v2481, %v2482
    %v2484 = vsel %vm1554, %v2389, 0.0
    %v2485 = vsel %vm1554, %v2390, 0.0
    %v2486 = vadd.f32 %v2484, %v2485
    %v2487 = vrot.slane %v2486, 4
    %v2488 = vadd.f32 %v2486, %v2487
    %v2489 = vrot.slane %v2488, 2
    %v2490 = vadd.f32 %v2488, %v2489
    %v2491 = vrot.slane %v2490, 1
    %v2492 = vadd.f32 %v2490, %v2491
    %v2493 = vsel %vm1554, %v2391, 0.0
    %v2494 = vsel %vm1554, %v2392, 0.0
    %v2495 = vadd.f32 %v2493, %v2494
    %v2496 = vrot.slane %v2495, 4
    %v2497 = vadd.f32 %v2495, %v2496
    %v2498 = vrot.slane %v2497, 2
    %v2499 = vadd.f32 %v2497, %v2498
    %v2500 = vrot.slane %v2499, 1
    %v2501 = vadd.f32 %v2499, %v2500
    %v2502 = vsel %vm1554, %v2393, 0.0
    %v2503 = vsel %vm1554, %v2394, 0.0
    %v2504 = vadd.f32 %v2502, %v2503
    %v2505 = vrot.slane %v2504, 4
    %v2506 = vadd.f32 %v2504, %v2505
    %v2507 = vrot.slane %v2506, 2
    %v2508 = vadd.f32 %v2506, %v2507
    %v2509 = vrot.slane %v2508, 1
    %v2510 = vadd.f32 %v2508, %v2509
    %v2511 = vsel %vm1554, %v2395, 0.0
    %v2512 = vsel %vm1554, %v2396, 0.0
    %v2513 = vadd.f32 %v2511, %v2512
    %v2514 = vrot.slane %v2513, 4
    %v2515 = vadd.f32 %v2513, %v2514
    %v2516 = vrot.slane %v2515, 2
    %v2517 = vadd.f32 %v2515, %v2516
    %v2518 = vrot.slane %v2517, 1
    %v2519 = vadd.f32 %v2517, %v2518
    %v2520 = vsel %vm1554, %v2397, 0.0
    %v2521 = vsel %vm1554, %v2398, 0.0
    %v2522 = vadd.f32 %v2520, %v2521
    %v2523 = vrot.slane %v2522, 4
    %v2524 = vadd.f32 %v2522, %v2523
    %v2525 = vrot.slane %v2524, 2
    %v2526 = vadd.f32 %v2524, %v2525
    %v2527 = vrot.slane %v2526, 1
    %v2528 = vadd.f32 %v2526, %v2527
    %v2529 = vsel %vm1554, %v2399, 0.0
    %v2530 = vsel %vm1554, %v2400, 0.0
    %v2531 = vadd.f32 %v2529, %v2530
    %v2532 = vrot.slane %v2531, 4
    %v2533 = vadd.f32 %v2531, %v2532
    %v2534 = vrot.slane %v2533, 2
    %v2535 = vadd.f32 %v2533, %v2534
    %v2536 = vrot.slane %v2535, 1
    %v2537 = vadd.f32 %v2535, %v2536
    %v2538 = vsel %vm1554, %v2401, 0.0
    %v2539 = vsel %vm1554, %v2402, 0.0
    %v2540 = vadd.f32 %v2538, %v2539
    %v2541 = vrot.slane %v2540, 4
    %v2542 = vadd.f32 %v2540, %v2541
    %v2543 = vrot.slane %v2542, 2
    %v2544 = vadd.f32 %v2542, %v2543
    %v2545 = vrot.slane %v2544, 1
    %v2546 = vadd.f32 %v2544, %v2545
    %s2548 = sor.u32 256, 32
    %2549 = vbcast.lane.b32.xlu0 %v701, %s2548
    %v2550 = vpop.permute.xlu0 %2549
    %s2552 = sor.u32 256, 40
    %2553 = vbcast.lane.b32.xlu0 %v701, %s2552
    %v2554 = vpop.permute.xlu0 %2553
    %s2556 = sor.u32 256, 32
    %2557 = vbcast.lane.b32.xlu0 %v712, %s2556
    %v2558 = vpop.permute.xlu0 %2557
    %s2560 = sor.u32 256, 40
    %2561 = vbcast.lane.b32.xlu0 %v712, %s2560
    %v2562 = vpop.permute.xlu0 %2561
    %s2564 = sor.u32 256, 32
    %2565 = vbcast.lane.b32.xlu0 %v723, %s2564
    %v2566 = vpop.permute.xlu0 %2565
    %s2568 = sor.u32 256, 40
    %2569 = vbcast.lane.b32.xlu0 %v723, %s2568
    %v2570 = vpop.permute.xlu0 %2569
    %s2572 = sor.u32 256, 32
    %2573 = vbcast.lane.b32.xlu0 %v734, %s2572
    %v2574 = vpop.permute.xlu0 %2573
    %s2576 = sor.u32 256, 40
    %2577 = vbcast.lane.b32.xlu0 %v734, %s2576
    %v2578 = vpop.permute.xlu0 %2577
    %s2580 = sor.u32 256, 32
    %2581 = vbcast.lane.b32.xlu0 %v745, %s2580
    %v2582 = vpop.permute.xlu0 %2581
    %s2584 = sor.u32 256, 40
    %2585 = vbcast.lane.b32.xlu0 %v745, %s2584
    %v2586 = vpop.permute.xlu0 %2585
    %s2588 = sor.u32 256, 32
    %2589 = vbcast.lane.b32.xlu0 %v756, %s2588
    %v2590 = vpop.permute.xlu0 %2589
    %s2592 = sor.u32 256, 40
    %2593 = vbcast.lane.b32.xlu0 %v756, %s2592
    %v2594 = vpop.permute.xlu0 %2593
    %s2596 = sor.u32 256, 32
    %2597 = vbcast.lane.b32.xlu0 %v767, %s2596
    %v2598 = vpop.permute.xlu0 %2597
    %s2600 = sor.u32 256, 40
    %2601 = vbcast.lane.b32.xlu0 %v767, %s2600
    %v2602 = vpop.permute.xlu0 %2601
    %s2604 = sor.u32 256, 32
    %2605 = vbcast.lane.b32.xlu0 %v778, %s2604
    %v2606 = vpop.permute.xlu0 %2605
    %s2608 = sor.u32 256, 40
    %2609 = vbcast.lane.b32.xlu0 %v778, %s2608
    %v2610 = vpop.permute.xlu0 %2609
    %s2612 = sor.u32 256, 32
    %2613 = vbcast.lane.b32.xlu0 %v789, %s2612
    %v2614 = vpop.permute.xlu0 %2613
    %s2616 = sor.u32 256, 40
    %2617 = vbcast.lane.b32.xlu0 %v789, %s2616
    %v2618 = vpop.permute.xlu0 %2617
    %s2620 = sor.u32 256, 32
    %2621 = vbcast.lane.b32.xlu0 %v800, %s2620
    %v2622 = vpop.permute.xlu0 %2621
    %s2624 = sor.u32 256, 40
    %2625 = vbcast.lane.b32.xlu0 %v800, %s2624
    %v2626 = vpop.permute.xlu0 %2625
    %s2628 = sor.u32 256, 32
    %2629 = vbcast.lane.b32.xlu0 %v811, %s2628
    %v2630 = vpop.permute.xlu0 %2629
    %s2632 = sor.u32 256, 40
    %2633 = vbcast.lane.b32.xlu0 %v811, %s2632
    %v2634 = vpop.permute.xlu0 %2633
    %s2636 = sor.u32 256, 32
    %2637 = vbcast.lane.b32.xlu0 %v822, %s2636
    %v2638 = vpop.permute.xlu0 %2637
    %s2640 = sor.u32 256, 40
    %2641 = vbcast.lane.b32.xlu0 %v822, %s2640
    %v2642 = vpop.permute.xlu0 %2641
    %s2644 = sor.u32 256, 32
    %2645 = vbcast.lane.b32.xlu0 %v833, %s2644
    %v2646 = vpop.permute.xlu0 %2645
    %s2648 = sor.u32 256, 40
    %2649 = vbcast.lane.b32.xlu0 %v833, %s2648
    %v2650 = vpop.permute.xlu0 %2649
    %s2652 = sor.u32 256, 32
    %2653 = vbcast.lane.b32.xlu0 %v844, %s2652
    %v2654 = vpop.permute.xlu0 %2653
    %s2656 = sor.u32 256, 40
    %2657 = vbcast.lane.b32.xlu0 %v844, %s2656
    %v2658 = vpop.permute.xlu0 %2657
    %s2660 = sor.u32 256, 32
    %2661 = vbcast.lane.b32.xlu0 %v855, %s2660
    %v2662 = vpop.permute.xlu0 %2661
    %s2664 = sor.u32 256, 40
    %2665 = vbcast.lane.b32.xlu0 %v855, %s2664
    %v2666 = vpop.permute.xlu0 %2665
    %s2668 = sor.u32 256, 32
    %2669 = vbcast.lane.b32.xlu0 %v866, %s2668
    %v2670 = vpop.permute.xlu0 %2669
    %s2672 = sor.u32 256, 40
    %2673 = vbcast.lane.b32.xlu0 %v866, %s2672
    %v2674 = vpop.permute.xlu0 %2673
    %v2675 = vsub.f32 %v877, %v2550
    %v2676 = vsub.f32 %v877, %v2554
    %v2677 = vsub.f32 %v877, %v2558
    %v2678 = vsub.f32 %v877, %v2562
    %v2679 = vsub.f32 %v877, %v2566
    %v2680 = vsub.f32 %v877, %v2570
    %v2681 = vsub.f32 %v877, %v2574
    %v2682 = vsub.f32 %v877, %v2578
    %v2683 = vsub.f32 %v877, %v2582
    %v2684 = vsub.f32 %v877, %v2586
    %v2685 = vsub.f32 %v877, %v2590
    %v2686 = vsub.f32 %v877, %v2594
    %v2687 = vsub.f32 %v877, %v2598
    %v2688 = vsub.f32 %v877, %v2602
    %v2689 = vsub.f32 %v877, %v2606
    %v2690 = vsub.f32 %v877, %v2610
    %v2691 = vsub.f32 %v877, %v2614
    %v2692 = vsub.f32 %v877, %v2618
    %v2693 = vsub.f32 %v877, %v2622
    %v2694 = vsub.f32 %v877, %v2626
    %v2695 = vsub.f32 %v877, %v2630
    %v2696 = vsub.f32 %v877, %v2634
    %v2697 = vsub.f32 %v877, %v2638
    %v2698 = vsub.f32 %v877, %v2642
    %v2699 = vsub.f32 %v877, %v2646
    %v2700 = vsub.f32 %v877, %v2650
    %v2701 = vsub.f32 %v877, %v2654
    %v2702 = vsub.f32 %v877, %v2658
    %v2703 = vsub.f32 %v877, %v2662
    %v2704 = vsub.f32 %v877, %v2666
    %v2705 = vsub.f32 %v877, %v2670
    %v2706 = vsub.f32 %v877, %v2674
    %v2707 = vand.u32 2147483647, %v2675
    %v2708 = vand.u32 2147483647, %v2676
    %v2709 = vand.u32 2147483647, %v2677
    %v2710 = vand.u32 2147483647, %v2678
    %v2711 = vand.u32 2147483647, %v2679
    %v2712 = vand.u32 2147483647, %v2680
    %v2713 = vand.u32 2147483647, %v2681
    %v2714 = vand.u32 2147483647, %v2682
    %v2715 = vand.u32 2147483647, %v2683
    %v2716 = vand.u32 2147483647, %v2684
    %v2717 = vand.u32 2147483647, %v2685
    %v2718 = vand.u32 2147483647, %v2686
    %v2719 = vand.u32 2147483647, %v2687
    %v2720 = vand.u32 2147483647, %v2688
    %v2721 = vand.u32 2147483647, %v2689
    %v2722 = vand.u32 2147483647, %v2690
    %v2723 = vand.u32 2147483647, %v2691
    %v2724 = vand.u32 2147483647, %v2692
    %v2725 = vand.u32 2147483647, %v2693
    %v2726 = vand.u32 2147483647, %v2694
    %v2727 = vand.u32 2147483647, %v2695
    %v2728 = vand.u32 2147483647, %v2696
    %v2729 = vand.u32 2147483647, %v2697
    %v2730 = vand.u32 2147483647, %v2698
    %v2731 = vand.u32 2147483647, %v2699
    %v2732 = vand.u32 2147483647, %v2700
    %v2733 = vand.u32 2147483647, %v2701
    %v2734 = vand.u32 2147483647, %v2702
    %v2735 = vand.u32 2147483647, %v2703
    %v2736 = vand.u32 2147483647, %v2704
    %v2737 = vand.u32 2147483647, %v2705
    %v2738 = vand.u32 2147483647, %v2706
    %v2739 = vsub.f32 1.0, %v2707
    %v2740 = vsub.f32 1.0, %v2708
    %v2741 = vsub.f32 1.0, %v2709
    %v2742 = vsub.f32 1.0, %v2710
    %v2743 = vsub.f32 1.0, %v2711
    %v2744 = vsub.f32 1.0, %v2712
    %v2745 = vsub.f32 1.0, %v2713
    %v2746 = vsub.f32 1.0, %v2714
    %v2747 = vsub.f32 1.0, %v2715
    %v2748 = vsub.f32 1.0, %v2716
    %v2749 = vsub.f32 1.0, %v2717
    %v2750 = vsub.f32 1.0, %v2718
    %v2751 = vsub.f32 1.0, %v2719
    %v2752 = vsub.f32 1.0, %v2720
    %v2753 = vsub.f32 1.0, %v2721
    %v2754 = vsub.f32 1.0, %v2722
    %v2755 = vsub.f32 1.0, %v2723
    %v2756 = vsub.f32 1.0, %v2724
    %v2757 = vsub.f32 1.0, %v2725
    %v2758 = vsub.f32 1.0, %v2726
    %v2759 = vsub.f32 1.0, %v2727
    %v2760 = vsub.f32 1.0, %v2728
    %v2761 = vsub.f32 1.0, %v2729
    %v2762 = vsub.f32 1.0, %v2730
    %v2763 = vsub.f32 1.0, %v2731
    %v2764 = vsub.f32 1.0, %v2732
    %v2765 = vsub.f32 1.0, %v2733
    %v2766 = vsub.f32 1.0, %v2734
    %v2767 = vsub.f32 1.0, %v2735
    %v2768 = vsub.f32 1.0, %v2736
    %v2769 = vsub.f32 1.0, %v2737
    %v2770 = vsub.f32 1.0, %v2738
    %v2771 = vmax.f32 %v2739, 0.0
    %v2772 = vmax.f32 %v2740, 0.0
    %v2773 = vmax.f32 %v2741, 0.0
    %v2774 = vmax.f32 %v2742, 0.0
    %v2775 = vmax.f32 %v2743, 0.0
    %v2776 = vmax.f32 %v2744, 0.0
    %v2777 = vmax.f32 %v2745, 0.0
    %v2778 = vmax.f32 %v2746, 0.0
    %v2779 = vmax.f32 %v2747, 0.0
    %v2780 = vmax.f32 %v2748, 0.0
    %v2781 = vmax.f32 %v2749, 0.0
    %v2782 = vmax.f32 %v2750, 0.0
    %v2783 = vmax.f32 %v2751, 0.0
    %v2784 = vmax.f32 %v2752, 0.0
    %v2785 = vmax.f32 %v2753, 0.0
    %v2786 = vmax.f32 %v2754, 0.0
    %v2787 = vmax.f32 %v2755, 0.0
    %v2788 = vmax.f32 %v2756, 0.0
    %v2789 = vmax.f32 %v2757, 0.0
    %v2790 = vmax.f32 %v2758, 0.0
    %v2791 = vmax.f32 %v2759, 0.0
    %v2792 = vmax.f32 %v2760, 0.0
    %v2793 = vmax.f32 %v2761, 0.0
    %v2794 = vmax.f32 %v2762, 0.0
    %v2795 = vmax.f32 %v2763, 0.0
    %v2796 = vmax.f32 %v2764, 0.0
    %v2797 = vmax.f32 %v2765, 0.0
    %v2798 = vmax.f32 %v2766, 0.0
    %v2799 = vmax.f32 %v2767, 0.0
    %v2800 = vmax.f32 %v2768, 0.0
    %v2801 = vmax.f32 %v2769, 0.0
    %v2802 = vmax.f32 %v2770, 0.0
    %s2804 = sor.u32 256, 32
    %2805 = vbcast.lane.b32.xlu0 %v1009, %s2804
    %v2806 = vpop.permute.xlu0 %2805
    %s2808 = sor.u32 256, 40
    %2809 = vbcast.lane.b32.xlu0 %v1009, %s2808
    %v2810 = vpop.permute.xlu0 %2809
    %s2812 = sor.u32 256, 32
    %2813 = vbcast.lane.b32.xlu0 %v1020, %s2812
    %v2814 = vpop.permute.xlu0 %2813
    %s2816 = sor.u32 256, 40
    %2817 = vbcast.lane.b32.xlu0 %v1020, %s2816
    %v2818 = vpop.permute.xlu0 %2817
    %s2820 = sor.u32 256, 32
    %2821 = vbcast.lane.b32.xlu0 %v1031, %s2820
    %v2822 = vpop.permute.xlu0 %2821
    %s2824 = sor.u32 256, 40
    %2825 = vbcast.lane.b32.xlu0 %v1031, %s2824
    %v2826 = vpop.permute.xlu0 %2825
    %s2828 = sor.u32 256, 32
    %2829 = vbcast.lane.b32.xlu0 %v1042, %s2828
    %v2830 = vpop.permute.xlu0 %2829
    %s2832 = sor.u32 256, 40
    %2833 = vbcast.lane.b32.xlu0 %v1042, %s2832
    %v2834 = vpop.permute.xlu0 %2833
    %s2836 = sor.u32 256, 32
    %2837 = vbcast.lane.b32.xlu0 %v1053, %s2836
    %v2838 = vpop.permute.xlu0 %2837
    %s2840 = sor.u32 256, 40
    %2841 = vbcast.lane.b32.xlu0 %v1053, %s2840
    %v2842 = vpop.permute.xlu0 %2841
    %s2844 = sor.u32 256, 32
    %2845 = vbcast.lane.b32.xlu0 %v1064, %s2844
    %v2846 = vpop.permute.xlu0 %2845
    %s2848 = sor.u32 256, 40
    %2849 = vbcast.lane.b32.xlu0 %v1064, %s2848
    %v2850 = vpop.permute.xlu0 %2849
    %s2852 = sor.u32 256, 32
    %2853 = vbcast.lane.b32.xlu0 %v1075, %s2852
    %v2854 = vpop.permute.xlu0 %2853
    %s2856 = sor.u32 256, 40
    %2857 = vbcast.lane.b32.xlu0 %v1075, %s2856
    %v2858 = vpop.permute.xlu0 %2857
    %s2860 = sor.u32 256, 32
    %2861 = vbcast.lane.b32.xlu0 %v1086, %s2860
    %v2862 = vpop.permute.xlu0 %2861
    %s2864 = sor.u32 256, 40
    %2865 = vbcast.lane.b32.xlu0 %v1086, %s2864
    %v2866 = vpop.permute.xlu0 %2865
    %s2868 = sor.u32 256, 32
    %2869 = vbcast.lane.b32.xlu0 %v1097, %s2868
    %v2870 = vpop.permute.xlu0 %2869
    %s2872 = sor.u32 256, 40
    %2873 = vbcast.lane.b32.xlu0 %v1097, %s2872
    %v2874 = vpop.permute.xlu0 %2873
    %s2876 = sor.u32 256, 32
    %2877 = vbcast.lane.b32.xlu0 %v1108, %s2876
    %v2878 = vpop.permute.xlu0 %2877
    %s2880 = sor.u32 256, 40
    %2881 = vbcast.lane.b32.xlu0 %v1108, %s2880
    %v2882 = vpop.permute.xlu0 %2881
    %s2884 = sor.u32 256, 32
    %2885 = vbcast.lane.b32.xlu0 %v1119, %s2884
    %v2886 = vpop.permute.xlu0 %2885
    %s2888 = sor.u32 256, 40
    %2889 = vbcast.lane.b32.xlu0 %v1119, %s2888
    %v2890 = vpop.permute.xlu0 %2889
    %s2892 = sor.u32 256, 32
    %2893 = vbcast.lane.b32.xlu0 %v1130, %s2892
    %v2894 = vpop.permute.xlu0 %2893
    %s2896 = sor.u32 256, 40
    %2897 = vbcast.lane.b32.xlu0 %v1130, %s2896
    %v2898 = vpop.permute.xlu0 %2897
    %s2900 = sor.u32 256, 32
    %2901 = vbcast.lane.b32.xlu0 %v1141, %s2900
    %v2902 = vpop.permute.xlu0 %2901
    %s2904 = sor.u32 256, 40
    %2905 = vbcast.lane.b32.xlu0 %v1141, %s2904
    %v2906 = vpop.permute.xlu0 %2905
    %s2908 = sor.u32 256, 32
    %2909 = vbcast.lane.b32.xlu0 %v1152, %s2908
    %v2910 = vpop.permute.xlu0 %2909
    %s2912 = sor.u32 256, 40
    %2913 = vbcast.lane.b32.xlu0 %v1152, %s2912
    %v2914 = vpop.permute.xlu0 %2913
    %s2916 = sor.u32 256, 32
    %2917 = vbcast.lane.b32.xlu0 %v1163, %s2916
    %v2918 = vpop.permute.xlu0 %2917
    %s2920 = sor.u32 256, 40
    %2921 = vbcast.lane.b32.xlu0 %v1163, %s2920
    %v2922 = vpop.permute.xlu0 %2921
    %s2924 = sor.u32 256, 32
    %2925 = vbcast.lane.b32.xlu0 %v1174, %s2924
    %v2926 = vpop.permute.xlu0 %2925
    %s2928 = sor.u32 256, 40
    %2929 = vbcast.lane.b32.xlu0 %v1174, %s2928
    %v2930 = vpop.permute.xlu0 %2929
    %v2931 = vsub.f32 %v1185, %v2806
    %v2932 = vsub.f32 %v1185, %v2810
    %v2933 = vsub.f32 %v1185, %v2814
    %v2934 = vsub.f32 %v1185, %v2818
    %v2935 = vsub.f32 %v1185, %v2822
    %v2936 = vsub.f32 %v1185, %v2826
    %v2937 = vsub.f32 %v1185, %v2830
    %v2938 = vsub.f32 %v1185, %v2834
    %v2939 = vsub.f32 %v1185, %v2838
    %v2940 = vsub.f32 %v1185, %v2842
    %v2941 = vsub.f32 %v1185, %v2846
    %v2942 = vsub.f32 %v1185, %v2850
    %v2943 = vsub.f32 %v1185, %v2854
    %v2944 = vsub.f32 %v1185, %v2858
    %v2945 = vsub.f32 %v1185, %v2862
    %v2946 = vsub.f32 %v1185, %v2866
    %v2947 = vsub.f32 %v1185, %v2870
    %v2948 = vsub.f32 %v1185, %v2874
    %v2949 = vsub.f32 %v1185, %v2878
    %v2950 = vsub.f32 %v1185, %v2882
    %v2951 = vsub.f32 %v1185, %v2886
    %v2952 = vsub.f32 %v1185, %v2890
    %v2953 = vsub.f32 %v1185, %v2894
    %v2954 = vsub.f32 %v1185, %v2898
    %v2955 = vsub.f32 %v1185, %v2902
    %v2956 = vsub.f32 %v1185, %v2906
    %v2957 = vsub.f32 %v1185, %v2910
    %v2958 = vsub.f32 %v1185, %v2914
    %v2959 = vsub.f32 %v1185, %v2918
    %v2960 = vsub.f32 %v1185, %v2922
    %v2961 = vsub.f32 %v1185, %v2926
    %v2962 = vsub.f32 %v1185, %v2930
    %v2963 = vand.u32 2147483647, %v2931
    %v2964 = vand.u32 2147483647, %v2932
    %v2965 = vand.u32 2147483647, %v2933
    %v2966 = vand.u32 2147483647, %v2934
    %v2967 = vand.u32 2147483647, %v2935
    %v2968 = vand.u32 2147483647, %v2936
    %v2969 = vand.u32 2147483647, %v2937
    %v2970 = vand.u32 2147483647, %v2938
    %v2971 = vand.u32 2147483647, %v2939
    %v2972 = vand.u32 2147483647, %v2940
    %v2973 = vand.u32 2147483647, %v2941
    %v2974 = vand.u32 2147483647, %v2942
    %v2975 = vand.u32 2147483647, %v2943
    %v2976 = vand.u32 2147483647, %v2944
    %v2977 = vand.u32 2147483647, %v2945
    %v2978 = vand.u32 2147483647, %v2946
    %v2979 = vand.u32 2147483647, %v2947
    %v2980 = vand.u32 2147483647, %v2948
    %v2981 = vand.u32 2147483647, %v2949
    %v2982 = vand.u32 2147483647, %v2950
    %v2983 = vand.u32 2147483647, %v2951
    %v2984 = vand.u32 2147483647, %v2952
    %v2985 = vand.u32 2147483647, %v2953
    %v2986 = vand.u32 2147483647, %v2954
    %v2987 = vand.u32 2147483647, %v2955
    %v2988 = vand.u32 2147483647, %v2956
    %v2989 = vand.u32 2147483647, %v2957
    %v2990 = vand.u32 2147483647, %v2958
    %v2991 = vand.u32 2147483647, %v2959
    %v2992 = vand.u32 2147483647, %v2960
    %v2993 = vand.u32 2147483647, %v2961
    %v2994 = vand.u32 2147483647, %v2962
    %v2995 = vsub.f32 1.0, %v2963
    %v2996 = vsub.f32 1.0, %v2964
    %v2997 = vsub.f32 1.0, %v2965
    %v2998 = vsub.f32 1.0, %v2966
    %v2999 = vsub.f32 1.0, %v2967
    %v3000 = vsub.f32 1.0, %v2968
    %v3001 = vsub.f32 1.0, %v2969
    %v3002 = vsub.f32 1.0, %v2970
    %v3003 = vsub.f32 1.0, %v2971
    %v3004 = vsub.f32 1.0, %v2972
    %v3005 = vsub.f32 1.0, %v2973
    %v3006 = vsub.f32 1.0, %v2974
    %v3007 = vsub.f32 1.0, %v2975
    %v3008 = vsub.f32 1.0, %v2976
    %v3009 = vsub.f32 1.0, %v2977
    %v3010 = vsub.f32 1.0, %v2978
    %v3011 = vsub.f32 1.0, %v2979
    %v3012 = vsub.f32 1.0, %v2980
    %v3013 = vsub.f32 1.0, %v2981
    %v3014 = vsub.f32 1.0, %v2982
    %v3015 = vsub.f32 1.0, %v2983
    %v3016 = vsub.f32 1.0, %v2984
    %v3017 = vsub.f32 1.0, %v2985
    %v3018 = vsub.f32 1.0, %v2986
    %v3019 = vsub.f32 1.0, %v2987
    %v3020 = vsub.f32 1.0, %v2988
    %v3021 = vsub.f32 1.0, %v2989
    %v3022 = vsub.f32 1.0, %v2990
    %v3023 = vsub.f32 1.0, %v2991
    %v3024 = vsub.f32 1.0, %v2992
    %v3025 = vsub.f32 1.0, %v2993
    %v3026 = vsub.f32 1.0, %v2994
    %v3027 = vmax.f32 %v2995, 0.0
    %v3028 = vmax.f32 %v2996, 0.0
    %v3029 = vmax.f32 %v2997, 0.0
    %v3030 = vmax.f32 %v2998, 0.0
    %v3031 = vmax.f32 %v2999, 0.0
    %v3032 = vmax.f32 %v3000, 0.0
    %v3033 = vmax.f32 %v3001, 0.0
    %v3034 = vmax.f32 %v3002, 0.0
    %v3035 = vmax.f32 %v3003, 0.0
    %v3036 = vmax.f32 %v3004, 0.0
    %v3037 = vmax.f32 %v3005, 0.0
    %v3038 = vmax.f32 %v3006, 0.0
    %v3039 = vmax.f32 %v3007, 0.0
    %v3040 = vmax.f32 %v3008, 0.0
    %v3041 = vmax.f32 %v3009, 0.0
    %v3042 = vmax.f32 %v3010, 0.0
    %v3043 = vmax.f32 %v3011, 0.0
    %v3044 = vmax.f32 %v3012, 0.0
    %v3045 = vmax.f32 %v3013, 0.0
    %v3046 = vmax.f32 %v3014, 0.0
    %v3047 = vmax.f32 %v3015, 0.0
    %v3048 = vmax.f32 %v3016, 0.0
    %v3049 = vmax.f32 %v3017, 0.0
    %v3050 = vmax.f32 %v3018, 0.0
    %v3051 = vmax.f32 %v3019, 0.0
    %v3052 = vmax.f32 %v3020, 0.0
    %v3053 = vmax.f32 %v3021, 0.0
    %v3054 = vmax.f32 %v3022, 0.0
    %v3055 = vmax.f32 %v3023, 0.0
    %v3056 = vmax.f32 %v3024, 0.0
    %v3057 = vmax.f32 %v3025, 0.0
    %v3058 = vmax.f32 %v3026, 0.0
    %v3059 = vmul.f32 %v2771, %v3027
    %v3060 = vmul.f32 %v2772, %v3028
    %v3061 = vmul.f32 %v2773, %v3029
    %v3062 = vmul.f32 %v2774, %v3030
    %v3063 = vmul.f32 %v2775, %v3031
    %v3064 = vmul.f32 %v2776, %v3032
    %v3065 = vmul.f32 %v2777, %v3033
    %v3066 = vmul.f32 %v2778, %v3034
    %v3067 = vmul.f32 %v2779, %v3035
    %v3068 = vmul.f32 %v2780, %v3036
    %v3069 = vmul.f32 %v2781, %v3037
    %v3070 = vmul.f32 %v2782, %v3038
    %v3071 = vmul.f32 %v2783, %v3039
    %v3072 = vmul.f32 %v2784, %v3040
    %v3073 = vmul.f32 %v2785, %v3041
    %v3074 = vmul.f32 %v2786, %v3042
    %v3075 = vmul.f32 %v2787, %v3043
    %v3076 = vmul.f32 %v2788, %v3044
    %v3077 = vmul.f32 %v2789, %v3045
    %v3078 = vmul.f32 %v2790, %v3046
    %v3079 = vmul.f32 %v2791, %v3047
    %v3080 = vmul.f32 %v2792, %v3048
    %v3081 = vmul.f32 %v2793, %v3049
    %v3082 = vmul.f32 %v2794, %v3050
    %v3083 = vmul.f32 %v2795, %v3051
    %v3084 = vmul.f32 %v2796, %v3052
    %v3085 = vmul.f32 %v2797, %v3053
    %v3086 = vmul.f32 %v2798, %v3054
    %v3087 = vmul.f32 %v2799, %v3055
    %v3088 = vmul.f32 %v2800, %v3056
    %v3089 = vmul.f32 %v2801, %v3057
    %v3090 = vmul.f32 %v2802, %v3058
    %s3092 = sor.u32 256, 32
    %3093 = vbcast.lane.b32.xlu0 %v1349, %s3092
    %v3094 = vpop.permute.xlu0 %3093
    %s3096 = sor.u32 256, 40
    %3097 = vbcast.lane.b32.xlu0 %v1349, %s3096
    %v3098 = vpop.permute.xlu0 %3097
    %s3100 = sor.u32 256, 32
    %3101 = vbcast.lane.b32.xlu0 %v1360, %s3100
    %v3102 = vpop.permute.xlu0 %3101
    %s3104 = sor.u32 256, 40
    %3105 = vbcast.lane.b32.xlu0 %v1360, %s3104
    %v3106 = vpop.permute.xlu0 %3105
    %s3108 = sor.u32 256, 32
    %3109 = vbcast.lane.b32.xlu0 %v1371, %s3108
    %v3110 = vpop.permute.xlu0 %3109
    %s3112 = sor.u32 256, 40
    %3113 = vbcast.lane.b32.xlu0 %v1371, %s3112
    %v3114 = vpop.permute.xlu0 %3113
    %s3116 = sor.u32 256, 32
    %3117 = vbcast.lane.b32.xlu0 %v1382, %s3116
    %v3118 = vpop.permute.xlu0 %3117
    %s3120 = sor.u32 256, 40
    %3121 = vbcast.lane.b32.xlu0 %v1382, %s3120
    %v3122 = vpop.permute.xlu0 %3121
    %s3124 = sor.u32 256, 32
    %3125 = vbcast.lane.b32.xlu0 %v1393, %s3124
    %v3126 = vpop.permute.xlu0 %3125
    %s3128 = sor.u32 256, 40
    %3129 = vbcast.lane.b32.xlu0 %v1393, %s3128
    %v3130 = vpop.permute.xlu0 %3129
    %s3132 = sor.u32 256, 32
    %3133 = vbcast.lane.b32.xlu0 %v1404, %s3132
    %v3134 = vpop.permute.xlu0 %3133
    %s3136 = sor.u32 256, 40
    %3137 = vbcast.lane.b32.xlu0 %v1404, %s3136
    %v3138 = vpop.permute.xlu0 %3137
    %s3140 = sor.u32 256, 32
    %3141 = vbcast.lane.b32.xlu0 %v1415, %s3140
    %v3142 = vpop.permute.xlu0 %3141
    %s3144 = sor.u32 256, 40
    %3145 = vbcast.lane.b32.xlu0 %v1415, %s3144
    %v3146 = vpop.permute.xlu0 %3145
    %s3148 = sor.u32 256, 32
    %3149 = vbcast.lane.b32.xlu0 %v1426, %s3148
    %v3150 = vpop.permute.xlu0 %3149
    %s3152 = sor.u32 256, 40
    %3153 = vbcast.lane.b32.xlu0 %v1426, %s3152
    %v3154 = vpop.permute.xlu0 %3153
    %s3156 = sor.u32 256, 32
    %3157 = vbcast.lane.b32.xlu0 %v1437, %s3156
    %v3158 = vpop.permute.xlu0 %3157
    %s3160 = sor.u32 256, 40
    %3161 = vbcast.lane.b32.xlu0 %v1437, %s3160
    %v3162 = vpop.permute.xlu0 %3161
    %s3164 = sor.u32 256, 32
    %3165 = vbcast.lane.b32.xlu0 %v1448, %s3164
    %v3166 = vpop.permute.xlu0 %3165
    %s3168 = sor.u32 256, 40
    %3169 = vbcast.lane.b32.xlu0 %v1448, %s3168
    %v3170 = vpop.permute.xlu0 %3169
    %s3172 = sor.u32 256, 32
    %3173 = vbcast.lane.b32.xlu0 %v1459, %s3172
    %v3174 = vpop.permute.xlu0 %3173
    %s3176 = sor.u32 256, 40
    %3177 = vbcast.lane.b32.xlu0 %v1459, %s3176
    %v3178 = vpop.permute.xlu0 %3177
    %s3180 = sor.u32 256, 32
    %3181 = vbcast.lane.b32.xlu0 %v1470, %s3180
    %v3182 = vpop.permute.xlu0 %3181
    %s3184 = sor.u32 256, 40
    %3185 = vbcast.lane.b32.xlu0 %v1470, %s3184
    %v3186 = vpop.permute.xlu0 %3185
    %s3188 = sor.u32 256, 32
    %3189 = vbcast.lane.b32.xlu0 %v1481, %s3188
    %v3190 = vpop.permute.xlu0 %3189
    %s3192 = sor.u32 256, 40
    %3193 = vbcast.lane.b32.xlu0 %v1481, %s3192
    %v3194 = vpop.permute.xlu0 %3193
    %s3196 = sor.u32 256, 32
    %3197 = vbcast.lane.b32.xlu0 %v1492, %s3196
    %v3198 = vpop.permute.xlu0 %3197
    %s3200 = sor.u32 256, 40
    %3201 = vbcast.lane.b32.xlu0 %v1492, %s3200
    %v3202 = vpop.permute.xlu0 %3201
    %s3204 = sor.u32 256, 32
    %3205 = vbcast.lane.b32.xlu0 %v1503, %s3204
    %v3206 = vpop.permute.xlu0 %3205
    %s3208 = sor.u32 256, 40
    %3209 = vbcast.lane.b32.xlu0 %v1503, %s3208
    %v3210 = vpop.permute.xlu0 %3209
    %s3212 = sor.u32 256, 32
    %3213 = vbcast.lane.b32.xlu0 %v1514, %s3212
    %v3214 = vpop.permute.xlu0 %3213
    %s3216 = sor.u32 256, 40
    %3217 = vbcast.lane.b32.xlu0 %v1514, %s3216
    %v3218 = vpop.permute.xlu0 %3217
    %v3219 = vmul.f32 %v3059, %v3094
    %v3220 = vmul.f32 %v3060, %v3098
    %v3221 = vmul.f32 %v3061, %v3102
    %v3222 = vmul.f32 %v3062, %v3106
    %v3223 = vmul.f32 %v3063, %v3110
    %v3224 = vmul.f32 %v3064, %v3114
    %v3225 = vmul.f32 %v3065, %v3118
    %v3226 = vmul.f32 %v3066, %v3122
    %v3227 = vmul.f32 %v3067, %v3126
    %v3228 = vmul.f32 %v3068, %v3130
    %v3229 = vmul.f32 %v3069, %v3134
    %v3230 = vmul.f32 %v3070, %v3138
    %v3231 = vmul.f32 %v3071, %v3142
    %v3232 = vmul.f32 %v3072, %v3146
    %v3233 = vmul.f32 %v3073, %v3150
    %v3234 = vmul.f32 %v3074, %v3154
    %v3235 = vmul.f32 %v3075, %v3158
    %v3236 = vmul.f32 %v3076, %v3162
    %v3237 = vmul.f32 %v3077, %v3166
    %v3238 = vmul.f32 %v3078, %v3170
    %v3239 = vmul.f32 %v3079, %v3174
    %v3240 = vmul.f32 %v3080, %v3178
    %v3241 = vmul.f32 %v3081, %v3182
    %v3242 = vmul.f32 %v3082, %v3186
    %v3243 = vmul.f32 %v3083, %v3190
    %v3244 = vmul.f32 %v3084, %v3194
    %v3245 = vmul.f32 %v3085, %v3198
    %v3246 = vmul.f32 %v3086, %v3202
    %v3247 = vmul.f32 %v3087, %v3206
    %v3248 = vmul.f32 %v3088, %v3210
    %v3249 = vmul.f32 %v3089, %v3214
    %v3250 = vmul.f32 %v3090, %v3218
    %v3251 = vsel %vm1554, %v3219, 0.0
    %v3252 = vsel %vm1554, %v3220, 0.0
    %v3253 = vadd.f32 %v3251, %v3252
    %v3254 = vrot.slane %v3253, 4
    %v3255 = vadd.f32 %v3253, %v3254
    %v3256 = vrot.slane %v3255, 2
    %v3257 = vadd.f32 %v3255, %v3256
    %v3258 = vrot.slane %v3257, 1
    %v3259 = vadd.f32 %v3257, %v3258
    %v3260 = vsel %vm1554, %v3221, 0.0
    %v3261 = vsel %vm1554, %v3222, 0.0
    %v3262 = vadd.f32 %v3260, %v3261
    %v3263 = vrot.slane %v3262, 4
    %v3264 = vadd.f32 %v3262, %v3263
    %v3265 = vrot.slane %v3264, 2
    %v3266 = vadd.f32 %v3264, %v3265
    %v3267 = vrot.slane %v3266, 1
    %v3268 = vadd.f32 %v3266, %v3267
    %v3269 = vsel %vm1554, %v3223, 0.0
    %v3270 = vsel %vm1554, %v3224, 0.0
    %v3271 = vadd.f32 %v3269, %v3270
    %v3272 = vrot.slane %v3271, 4
    %v3273 = vadd.f32 %v3271, %v3272
    %v3274 = vrot.slane %v3273, 2
    %v3275 = vadd.f32 %v3273, %v3274
    %v3276 = vrot.slane %v3275, 1
    %v3277 = vadd.f32 %v3275, %v3276
    %v3278 = vsel %vm1554, %v3225, 0.0
    %v3279 = vsel %vm1554, %v3226, 0.0
    %v3280 = vadd.f32 %v3278, %v3279
    %v3281 = vrot.slane %v3280, 4
    %v3282 = vadd.f32 %v3280, %v3281
    %v3283 = vrot.slane %v3282, 2
    %v3284 = vadd.f32 %v3282, %v3283
    %v3285 = vrot.slane %v3284, 1
    %v3286 = vadd.f32 %v3284, %v3285
    %v3287 = vsel %vm1554, %v3227, 0.0
    %v3288 = vsel %vm1554, %v3228, 0.0
    %v3289 = vadd.f32 %v3287, %v3288
    %v3290 = vrot.slane %v3289, 4
    %v3291 = vadd.f32 %v3289, %v3290
    %v3292 = vrot.slane %v3291, 2
    %v3293 = vadd.f32 %v3291, %v3292
    %v3294 = vrot.slane %v3293, 1
    %v3295 = vadd.f32 %v3293, %v3294
    %v3296 = vsel %vm1554, %v3229, 0.0
    %v3297 = vsel %vm1554, %v3230, 0.0
    %v3298 = vadd.f32 %v3296, %v3297
    %v3299 = vrot.slane %v3298, 4
    %v3300 = vadd.f32 %v3298, %v3299
    %v3301 = vrot.slane %v3300, 2
    %v3302 = vadd.f32 %v3300, %v3301
    %v3303 = vrot.slane %v3302, 1
    %v3304 = vadd.f32 %v3302, %v3303
    %v3305 = vsel %vm1554, %v3231, 0.0
    %v3306 = vsel %vm1554, %v3232, 0.0
    %v3307 = vadd.f32 %v3305, %v3306
    %v3308 = vrot.slane %v3307, 4
    %v3309 = vadd.f32 %v3307, %v3308
    %v3310 = vrot.slane %v3309, 2
    %v3311 = vadd.f32 %v3309, %v3310
    %v3312 = vrot.slane %v3311, 1
    %v3313 = vadd.f32 %v3311, %v3312
    %v3314 = vsel %vm1554, %v3233, 0.0
    %v3315 = vsel %vm1554, %v3234, 0.0
    %v3316 = vadd.f32 %v3314, %v3315
    %v3317 = vrot.slane %v3316, 4
    %v3318 = vadd.f32 %v3316, %v3317
    %v3319 = vrot.slane %v3318, 2
    %v3320 = vadd.f32 %v3318, %v3319
    %v3321 = vrot.slane %v3320, 1
    %v3322 = vadd.f32 %v3320, %v3321
    %v3323 = vsel %vm1554, %v3235, 0.0
    %v3324 = vsel %vm1554, %v3236, 0.0
    %v3325 = vadd.f32 %v3323, %v3324
    %v3326 = vrot.slane %v3325, 4
    %v3327 = vadd.f32 %v3325, %v3326
    %v3328 = vrot.slane %v3327, 2
    %v3329 = vadd.f32 %v3327, %v3328
    %v3330 = vrot.slane %v3329, 1
    %v3331 = vadd.f32 %v3329, %v3330
    %v3332 = vsel %vm1554, %v3237, 0.0
    %v3333 = vsel %vm1554, %v3238, 0.0
    %v3334 = vadd.f32 %v3332, %v3333
    %v3335 = vrot.slane %v3334, 4
    %v3336 = vadd.f32 %v3334, %v3335
    %v3337 = vrot.slane %v3336, 2
    %v3338 = vadd.f32 %v3336, %v3337
    %v3339 = vrot.slane %v3338, 1
    %v3340 = vadd.f32 %v3338, %v3339
    %v3341 = vsel %vm1554, %v3239, 0.0
    %v3342 = vsel %vm1554, %v3240, 0.0
    %v3343 = vadd.f32 %v3341, %v3342
    %v3344 = vrot.slane %v3343, 4
    %v3345 = vadd.f32 %v3343, %v3344
    %v3346 = vrot.slane %v3345, 2
    %v3347 = vadd.f32 %v3345, %v3346
    %v3348 = vrot.slane %v3347, 1
    %v3349 = vadd.f32 %v3347, %v3348
    %v3350 = vsel %vm1554, %v3241, 0.0
    %v3351 = vsel %vm1554, %v3242, 0.0
    %v3352 = vadd.f32 %v3350, %v3351
    %v3353 = vrot.slane %v3352, 4
    %v3354 = vadd.f32 %v3352, %v3353
    %v3355 = vrot.slane %v3354, 2
    %v3356 = vadd.f32 %v3354, %v3355
    %v3357 = vrot.slane %v3356, 1
    %v3358 = vadd.f32 %v3356, %v3357
    %v3359 = vsel %vm1554, %v3243, 0.0
    %v3360 = vsel %vm1554, %v3244, 0.0
    %v3361 = vadd.f32 %v3359, %v3360
    %v3362 = vrot.slane %v3361, 4
    %v3363 = vadd.f32 %v3361, %v3362
    %v3364 = vrot.slane %v3363, 2
    %v3365 = vadd.f32 %v3363, %v3364
    %v3366 = vrot.slane %v3365, 1
    %v3367 = vadd.f32 %v3365, %v3366
    %v3368 = vsel %vm1554, %v3245, 0.0
    %v3369 = vsel %vm1554, %v3246, 0.0
    %v3370 = vadd.f32 %v3368, %v3369
    %v3371 = vrot.slane %v3370, 4
    %v3372 = vadd.f32 %v3370, %v3371
    %v3373 = vrot.slane %v3372, 2
    %v3374 = vadd.f32 %v3372, %v3373
    %v3375 = vrot.slane %v3374, 1
    %v3376 = vadd.f32 %v3374, %v3375
    %v3377 = vsel %vm1554, %v3247, 0.0
    %v3378 = vsel %vm1554, %v3248, 0.0
    %v3379 = vadd.f32 %v3377, %v3378
    %v3380 = vrot.slane %v3379, 4
    %v3381 = vadd.f32 %v3379, %v3380
    %v3382 = vrot.slane %v3381, 2
    %v3383 = vadd.f32 %v3381, %v3382
    %v3384 = vrot.slane %v3383, 1
    %v3385 = vadd.f32 %v3383, %v3384
    %v3386 = vsel %vm1554, %v3249, 0.0
    %v3387 = vsel %vm1554, %v3250, 0.0
    %v3388 = vadd.f32 %v3386, %v3387
    %v3389 = vrot.slane %v3388, 4
    %v3390 = vadd.f32 %v3388, %v3389
    %v3391 = vrot.slane %v3390, 2
    %v3392 = vadd.f32 %v3390, %v3391
    %v3393 = vrot.slane %v3392, 1
    %v3394 = vadd.f32 %v3392, %v3393
    %s3396 = sor.u32 256, 48
    %3397 = vbcast.lane.b32.xlu0 %v701, %s3396
    %v3398 = vpop.permute.xlu0 %3397
    %s3400 = sor.u32 256, 56
    %3401 = vbcast.lane.b32.xlu0 %v701, %s3400
    %v3402 = vpop.permute.xlu0 %3401
    %s3404 = sor.u32 256, 48
    %3405 = vbcast.lane.b32.xlu0 %v712, %s3404
    %v3406 = vpop.permute.xlu0 %3405
    %s3408 = sor.u32 256, 56
    %3409 = vbcast.lane.b32.xlu0 %v712, %s3408
    %v3410 = vpop.permute.xlu0 %3409
    %s3412 = sor.u32 256, 48
    %3413 = vbcast.lane.b32.xlu0 %v723, %s3412
    %v3414 = vpop.permute.xlu0 %3413
    %s3416 = sor.u32 256, 56
    %3417 = vbcast.lane.b32.xlu0 %v723, %s3416
    %v3418 = vpop.permute.xlu0 %3417
    %s3420 = sor.u32 256, 48
    %3421 = vbcast.lane.b32.xlu0 %v734, %s3420
    %v3422 = vpop.permute.xlu0 %3421
    %s3424 = sor.u32 256, 56
    %3425 = vbcast.lane.b32.xlu0 %v734, %s3424
    %v3426 = vpop.permute.xlu0 %3425
    %s3428 = sor.u32 256, 48
    %3429 = vbcast.lane.b32.xlu0 %v745, %s3428
    %v3430 = vpop.permute.xlu0 %3429
    %s3432 = sor.u32 256, 56
    %3433 = vbcast.lane.b32.xlu0 %v745, %s3432
    %v3434 = vpop.permute.xlu0 %3433
    %s3436 = sor.u32 256, 48
    %3437 = vbcast.lane.b32.xlu0 %v756, %s3436
    %v3438 = vpop.permute.xlu0 %3437
    %s3440 = sor.u32 256, 56
    %3441 = vbcast.lane.b32.xlu0 %v756, %s3440
    %v3442 = vpop.permute.xlu0 %3441
    %s3444 = sor.u32 256, 48
    %3445 = vbcast.lane.b32.xlu0 %v767, %s3444
    %v3446 = vpop.permute.xlu0 %3445
    %s3448 = sor.u32 256, 56
    %3449 = vbcast.lane.b32.xlu0 %v767, %s3448
    %v3450 = vpop.permute.xlu0 %3449
    %s3452 = sor.u32 256, 48
    %3453 = vbcast.lane.b32.xlu0 %v778, %s3452
    %v3454 = vpop.permute.xlu0 %3453
    %s3456 = sor.u32 256, 56
    %3457 = vbcast.lane.b32.xlu0 %v778, %s3456
    %v3458 = vpop.permute.xlu0 %3457
    %s3460 = sor.u32 256, 48
    %3461 = vbcast.lane.b32.xlu0 %v789, %s3460
    %v3462 = vpop.permute.xlu0 %3461
    %s3464 = sor.u32 256, 56
    %3465 = vbcast.lane.b32.xlu0 %v789, %s3464
    %v3466 = vpop.permute.xlu0 %3465
    %s3468 = sor.u32 256, 48
    %3469 = vbcast.lane.b32.xlu0 %v800, %s3468
    %v3470 = vpop.permute.xlu0 %3469
    %s3472 = sor.u32 256, 56
    %3473 = vbcast.lane.b32.xlu0 %v800, %s3472
    %v3474 = vpop.permute.xlu0 %3473
    %s3476 = sor.u32 256, 48
    %3477 = vbcast.lane.b32.xlu0 %v811, %s3476
    %v3478 = vpop.permute.xlu0 %3477
    %s3480 = sor.u32 256, 56
    %3481 = vbcast.lane.b32.xlu0 %v811, %s3480
    %v3482 = vpop.permute.xlu0 %3481
    %s3484 = sor.u32 256, 48
    %3485 = vbcast.lane.b32.xlu0 %v822, %s3484
    %v3486 = vpop.permute.xlu0 %3485
    %s3488 = sor.u32 256, 56
    %3489 = vbcast.lane.b32.xlu0 %v822, %s3488
    %v3490 = vpop.permute.xlu0 %3489
    %s3492 = sor.u32 256, 48
    %3493 = vbcast.lane.b32.xlu0 %v833, %s3492
    %v3494 = vpop.permute.xlu0 %3493
    %s3496 = sor.u32 256, 56
    %3497 = vbcast.lane.b32.xlu0 %v833, %s3496
    %v3498 = vpop.permute.xlu0 %3497
    %s3500 = sor.u32 256, 48
    %3501 = vbcast.lane.b32.xlu0 %v844, %s3500
    %v3502 = vpop.permute.xlu0 %3501
    %s3504 = sor.u32 256, 56
    %3505 = vbcast.lane.b32.xlu0 %v844, %s3504
    %v3506 = vpop.permute.xlu0 %3505
    %s3508 = sor.u32 256, 48
    %3509 = vbcast.lane.b32.xlu0 %v855, %s3508
    %v3510 = vpop.permute.xlu0 %3509
    %s3512 = sor.u32 256, 56
    %3513 = vbcast.lane.b32.xlu0 %v855, %s3512
    %v3514 = vpop.permute.xlu0 %3513
    %s3516 = sor.u32 256, 48
    %3517 = vbcast.lane.b32.xlu0 %v866, %s3516
    %v3518 = vpop.permute.xlu0 %3517
    %s3520 = sor.u32 256, 56
    %3521 = vbcast.lane.b32.xlu0 %v866, %s3520
    %v3522 = vpop.permute.xlu0 %3521
    %v3523 = vsub.f32 %v877, %v3398
    %v3524 = vsub.f32 %v877, %v3402
    %v3525 = vsub.f32 %v877, %v3406
    %v3526 = vsub.f32 %v877, %v3410
    %v3527 = vsub.f32 %v877, %v3414
    %v3528 = vsub.f32 %v877, %v3418
    %v3529 = vsub.f32 %v877, %v3422
    %v3530 = vsub.f32 %v877, %v3426
    %v3531 = vsub.f32 %v877, %v3430
    %v3532 = vsub.f32 %v877, %v3434
    %v3533 = vsub.f32 %v877, %v3438
    %v3534 = vsub.f32 %v877, %v3442
    %v3535 = vsub.f32 %v877, %v3446
    %v3536 = vsub.f32 %v877, %v3450
    %v3537 = vsub.f32 %v877, %v3454
    %v3538 = vsub.f32 %v877, %v3458
    %v3539 = vsub.f32 %v877, %v3462
    %v3540 = vsub.f32 %v877, %v3466
    %v3541 = vsub.f32 %v877, %v3470
    %v3542 = vsub.f32 %v877, %v3474
    %v3543 = vsub.f32 %v877, %v3478
    %v3544 = vsub.f32 %v877, %v3482
    %v3545 = vsub.f32 %v877, %v3486
    %v3546 = vsub.f32 %v877, %v3490
    %v3547 = vsub.f32 %v877, %v3494
    %v3548 = vsub.f32 %v877, %v3498
    %v3549 = vsub.f32 %v877, %v3502
    %v3550 = vsub.f32 %v877, %v3506
    %v3551 = vsub.f32 %v877, %v3510
    %v3552 = vsub.f32 %v877, %v3514
    %v3553 = vsub.f32 %v877, %v3518
    %v3554 = vsub.f32 %v877, %v3522
    %v3555 = vand.u32 2147483647, %v3523
    %v3556 = vand.u32 2147483647, %v3524
    %v3557 = vand.u32 2147483647, %v3525
    %v3558 = vand.u32 2147483647, %v3526
    %v3559 = vand.u32 2147483647, %v3527
    %v3560 = vand.u32 2147483647, %v3528
    %v3561 = vand.u32 2147483647, %v3529
    %v3562 = vand.u32 2147483647, %v3530
    %v3563 = vand.u32 2147483647, %v3531
    %v3564 = vand.u32 2147483647, %v3532
    %v3565 = vand.u32 2147483647, %v3533
    %v3566 = vand.u32 2147483647, %v3534
    %v3567 = vand.u32 2147483647, %v3535
    %v3568 = vand.u32 2147483647, %v3536
    %v3569 = vand.u32 2147483647, %v3537
    %v3570 = vand.u32 2147483647, %v3538
    %v3571 = vand.u32 2147483647, %v3539
    %v3572 = vand.u32 2147483647, %v3540
    %v3573 = vand.u32 2147483647, %v3541
    %v3574 = vand.u32 2147483647, %v3542
    %v3575 = vand.u32 2147483647, %v3543
    %v3576 = vand.u32 2147483647, %v3544
    %v3577 = vand.u32 2147483647, %v3545
    %v3578 = vand.u32 2147483647, %v3546
    %v3579 = vand.u32 2147483647, %v3547
    %v3580 = vand.u32 2147483647, %v3548
    %v3581 = vand.u32 2147483647, %v3549
    %v3582 = vand.u32 2147483647, %v3550
    %v3583 = vand.u32 2147483647, %v3551
    %v3584 = vand.u32 2147483647, %v3552
    %v3585 = vand.u32 2147483647, %v3553
    %v3586 = vand.u32 2147483647, %v3554
    %v3587 = vsub.f32 1.0, %v3555
    %v3588 = vsub.f32 1.0, %v3556
    %v3589 = vsub.f32 1.0, %v3557
    %v3590 = vsub.f32 1.0, %v3558
    %v3591 = vsub.f32 1.0, %v3559
    %v3592 = vsub.f32 1.0, %v3560
    %v3593 = vsub.f32 1.0, %v3561
    %v3594 = vsub.f32 1.0, %v3562
    %v3595 = vsub.f32 1.0, %v3563
    %v3596 = vsub.f32 1.0, %v3564
    %v3597 = vsub.f32 1.0, %v3565
    %v3598 = vsub.f32 1.0, %v3566
    %v3599 = vsub.f32 1.0, %v3567
    %v3600 = vsub.f32 1.0, %v3568
    %v3601 = vsub.f32 1.0, %v3569
    %v3602 = vsub.f32 1.0, %v3570
    %v3603 = vsub.f32 1.0, %v3571
    %v3604 = vsub.f32 1.0, %v3572
    %v3605 = vsub.f32 1.0, %v3573
    %v3606 = vsub.f32 1.0, %v3574
    %v3607 = vsub.f32 1.0, %v3575
    %v3608 = vsub.f32 1.0, %v3576
    %v3609 = vsub.f32 1.0, %v3577
    %v3610 = vsub.f32 1.0, %v3578
    %v3611 = vsub.f32 1.0, %v3579
    %v3612 = vsub.f32 1.0, %v3580
    %v3613 = vsub.f32 1.0, %v3581
    %v3614 = vsub.f32 1.0, %v3582
    %v3615 = vsub.f32 1.0, %v3583
    %v3616 = vsub.f32 1.0, %v3584
    %v3617 = vsub.f32 1.0, %v3585
    %v3618 = vsub.f32 1.0, %v3586
    %v3619 = vmax.f32 %v3587, 0.0
    %v3620 = vmax.f32 %v3588, 0.0
    %v3621 = vmax.f32 %v3589, 0.0
    %v3622 = vmax.f32 %v3590, 0.0
    %v3623 = vmax.f32 %v3591, 0.0
    %v3624 = vmax.f32 %v3592, 0.0
    %v3625 = vmax.f32 %v3593, 0.0
    %v3626 = vmax.f32 %v3594, 0.0
    %v3627 = vmax.f32 %v3595, 0.0
    %v3628 = vmax.f32 %v3596, 0.0
    %v3629 = vmax.f32 %v3597, 0.0
    %v3630 = vmax.f32 %v3598, 0.0
    %v3631 = vmax.f32 %v3599, 0.0
    %v3632 = vmax.f32 %v3600, 0.0
    %v3633 = vmax.f32 %v3601, 0.0
    %v3634 = vmax.f32 %v3602, 0.0
    %v3635 = vmax.f32 %v3603, 0.0
    %v3636 = vmax.f32 %v3604, 0.0
    %v3637 = vmax.f32 %v3605, 0.0
    %v3638 = vmax.f32 %v3606, 0.0
    %v3639 = vmax.f32 %v3607, 0.0
    %v3640 = vmax.f32 %v3608, 0.0
    %v3641 = vmax.f32 %v3609, 0.0
    %v3642 = vmax.f32 %v3610, 0.0
    %v3643 = vmax.f32 %v3611, 0.0
    %v3644 = vmax.f32 %v3612, 0.0
    %v3645 = vmax.f32 %v3613, 0.0
    %v3646 = vmax.f32 %v3614, 0.0
    %v3647 = vmax.f32 %v3615, 0.0
    %v3648 = vmax.f32 %v3616, 0.0
    %v3649 = vmax.f32 %v3617, 0.0
    %v3650 = vmax.f32 %v3618, 0.0
    %s3652 = sor.u32 256, 48
    %3653 = vbcast.lane.b32.xlu0 %v1009, %s3652
    %v3654 = vpop.permute.xlu0 %3653
    %s3656 = sor.u32 256, 56
    %3657 = vbcast.lane.b32.xlu0 %v1009, %s3656
    %v3658 = vpop.permute.xlu0 %3657
    %s3660 = sor.u32 256, 48
    %3661 = vbcast.lane.b32.xlu0 %v1020, %s3660
    %v3662 = vpop.permute.xlu0 %3661
    %s3664 = sor.u32 256, 56
    %3665 = vbcast.lane.b32.xlu0 %v1020, %s3664
    %v3666 = vpop.permute.xlu0 %3665
    %s3668 = sor.u32 256, 48
    %3669 = vbcast.lane.b32.xlu0 %v1031, %s3668
    %v3670 = vpop.permute.xlu0 %3669
    %s3672 = sor.u32 256, 56
    %3673 = vbcast.lane.b32.xlu0 %v1031, %s3672
    %v3674 = vpop.permute.xlu0 %3673
    %s3676 = sor.u32 256, 48
    %3677 = vbcast.lane.b32.xlu0 %v1042, %s3676
    %v3678 = vpop.permute.xlu0 %3677
    %s3680 = sor.u32 256, 56
    %3681 = vbcast.lane.b32.xlu0 %v1042, %s3680
    %v3682 = vpop.permute.xlu0 %3681
    %s3684 = sor.u32 256, 48
    %3685 = vbcast.lane.b32.xlu0 %v1053, %s3684
    %v3686 = vpop.permute.xlu0 %3685
    %s3688 = sor.u32 256, 56
    %3689 = vbcast.lane.b32.xlu0 %v1053, %s3688
    %v3690 = vpop.permute.xlu0 %3689
    %s3692 = sor.u32 256, 48
    %3693 = vbcast.lane.b32.xlu0 %v1064, %s3692
    %v3694 = vpop.permute.xlu0 %3693
    %s3696 = sor.u32 256, 56
    %3697 = vbcast.lane.b32.xlu0 %v1064, %s3696
    %v3698 = vpop.permute.xlu0 %3697
    %s3700 = sor.u32 256, 48
    %3701 = vbcast.lane.b32.xlu0 %v1075, %s3700
    %v3702 = vpop.permute.xlu0 %3701
    %s3704 = sor.u32 256, 56
    %3705 = vbcast.lane.b32.xlu0 %v1075, %s3704
    %v3706 = vpop.permute.xlu0 %3705
    %s3708 = sor.u32 256, 48
    %3709 = vbcast.lane.b32.xlu0 %v1086, %s3708
    %v3710 = vpop.permute.xlu0 %3709
    %s3712 = sor.u32 256, 56
    %3713 = vbcast.lane.b32.xlu0 %v1086, %s3712
    %v3714 = vpop.permute.xlu0 %3713
    %s3716 = sor.u32 256, 48
    %3717 = vbcast.lane.b32.xlu0 %v1097, %s3716
    %v3718 = vpop.permute.xlu0 %3717
    %s3720 = sor.u32 256, 56
    %3721 = vbcast.lane.b32.xlu0 %v1097, %s3720
    %v3722 = vpop.permute.xlu0 %3721
    %s3724 = sor.u32 256, 48
    %3725 = vbcast.lane.b32.xlu0 %v1108, %s3724
    %v3726 = vpop.permute.xlu0 %3725
    %s3728 = sor.u32 256, 56
    %3729 = vbcast.lane.b32.xlu0 %v1108, %s3728
    %v3730 = vpop.permute.xlu0 %3729
    %s3732 = sor.u32 256, 48
    %3733 = vbcast.lane.b32.xlu0 %v1119, %s3732
    %v3734 = vpop.permute.xlu0 %3733
    %s3736 = sor.u32 256, 56
    %3737 = vbcast.lane.b32.xlu0 %v1119, %s3736
    %v3738 = vpop.permute.xlu0 %3737
    %s3740 = sor.u32 256, 48
    %3741 = vbcast.lane.b32.xlu0 %v1130, %s3740
    %v3742 = vpop.permute.xlu0 %3741
    %s3744 = sor.u32 256, 56
    %3745 = vbcast.lane.b32.xlu0 %v1130, %s3744
    %v3746 = vpop.permute.xlu0 %3745
    %s3748 = sor.u32 256, 48
    %3749 = vbcast.lane.b32.xlu0 %v1141, %s3748
    %v3750 = vpop.permute.xlu0 %3749
    %s3752 = sor.u32 256, 56
    %3753 = vbcast.lane.b32.xlu0 %v1141, %s3752
    %v3754 = vpop.permute.xlu0 %3753
    %s3756 = sor.u32 256, 48
    %3757 = vbcast.lane.b32.xlu0 %v1152, %s3756
    %v3758 = vpop.permute.xlu0 %3757
    %s3760 = sor.u32 256, 56
    %3761 = vbcast.lane.b32.xlu0 %v1152, %s3760
    %v3762 = vpop.permute.xlu0 %3761
    %s3764 = sor.u32 256, 48
    %3765 = vbcast.lane.b32.xlu0 %v1163, %s3764
    %v3766 = vpop.permute.xlu0 %3765
    %s3768 = sor.u32 256, 56
    %3769 = vbcast.lane.b32.xlu0 %v1163, %s3768
    %v3770 = vpop.permute.xlu0 %3769
    %s3772 = sor.u32 256, 48
    %3773 = vbcast.lane.b32.xlu0 %v1174, %s3772
    %v3774 = vpop.permute.xlu0 %3773
    %s3776 = sor.u32 256, 56
    %3777 = vbcast.lane.b32.xlu0 %v1174, %s3776
    %v3778 = vpop.permute.xlu0 %3777
    %v3779 = vsub.f32 %v1185, %v3654
    %v3780 = vsub.f32 %v1185, %v3658
    %v3781 = vsub.f32 %v1185, %v3662
    %v3782 = vsub.f32 %v1185, %v3666
    %v3783 = vsub.f32 %v1185, %v3670
    %v3784 = vsub.f32 %v1185, %v3674
    %v3785 = vsub.f32 %v1185, %v3678
    %v3786 = vsub.f32 %v1185, %v3682
    %v3787 = vsub.f32 %v1185, %v3686
    %v3788 = vsub.f32 %v1185, %v3690
    %v3789 = vsub.f32 %v1185, %v3694
    %v3790 = vsub.f32 %v1185, %v3698
    %v3791 = vsub.f32 %v1185, %v3702
    %v3792 = vsub.f32 %v1185, %v3706
    %v3793 = vsub.f32 %v1185, %v3710
    %v3794 = vsub.f32 %v1185, %v3714
    %v3795 = vsub.f32 %v1185, %v3718
    %v3796 = vsub.f32 %v1185, %v3722
    %v3797 = vsub.f32 %v1185, %v3726
    %v3798 = vsub.f32 %v1185, %v3730
    %v3799 = vsub.f32 %v1185, %v3734
    %v3800 = vsub.f32 %v1185, %v3738
    %v3801 = vsub.f32 %v1185, %v3742
    %v3802 = vsub.f32 %v1185, %v3746
    %v3803 = vsub.f32 %v1185, %v3750
    %v3804 = vsub.f32 %v1185, %v3754
    %v3805 = vsub.f32 %v1185, %v3758
    %v3806 = vsub.f32 %v1185, %v3762
    %v3807 = vsub.f32 %v1185, %v3766
    %v3808 = vsub.f32 %v1185, %v3770
    %v3809 = vsub.f32 %v1185, %v3774
    %v3810 = vsub.f32 %v1185, %v3778
    %v3811 = vand.u32 2147483647, %v3779
    %v3812 = vand.u32 2147483647, %v3780
    %v3813 = vand.u32 2147483647, %v3781
    %v3814 = vand.u32 2147483647, %v3782
    %v3815 = vand.u32 2147483647, %v3783
    %v3816 = vand.u32 2147483647, %v3784
    %v3817 = vand.u32 2147483647, %v3785
    %v3818 = vand.u32 2147483647, %v3786
    %v3819 = vand.u32 2147483647, %v3787
    %v3820 = vand.u32 2147483647, %v3788
    %v3821 = vand.u32 2147483647, %v3789
    %v3822 = vand.u32 2147483647, %v3790
    %v3823 = vand.u32 2147483647, %v3791
    %v3824 = vand.u32 2147483647, %v3792
    %v3825 = vand.u32 2147483647, %v3793
    %v3826 = vand.u32 2147483647, %v3794
    %v3827 = vand.u32 2147483647, %v3795
    %v3828 = vand.u32 2147483647, %v3796
    %v3829 = vand.u32 2147483647, %v3797
    %v3830 = vand.u32 2147483647, %v3798
    %v3831 = vand.u32 2147483647, %v3799
    %v3832 = vand.u32 2147483647, %v3800
    %v3833 = vand.u32 2147483647, %v3801
    %v3834 = vand.u32 2147483647, %v3802
    %v3835 = vand.u32 2147483647, %v3803
    %v3836 = vand.u32 2147483647, %v3804
    %v3837 = vand.u32 2147483647, %v3805
    %v3838 = vand.u32 2147483647, %v3806
    %v3839 = vand.u32 2147483647, %v3807
    %v3840 = vand.u32 2147483647, %v3808
    %v3841 = vand.u32 2147483647, %v3809
    %v3842 = vand.u32 2147483647, %v3810
    %v3843 = vsub.f32 1.0, %v3811
    %v3844 = vsub.f32 1.0, %v3812
    %v3845 = vsub.f32 1.0, %v3813
    %v3846 = vsub.f32 1.0, %v3814
    %v3847 = vsub.f32 1.0, %v3815
    %v3848 = vsub.f32 1.0, %v3816
    %v3849 = vsub.f32 1.0, %v3817
    %v3850 = vsub.f32 1.0, %v3818
    %v3851 = vsub.f32 1.0, %v3819
    %v3852 = vsub.f32 1.0, %v3820
    %v3853 = vsub.f32 1.0, %v3821
    %v3854 = vsub.f32 1.0, %v3822
    %v3855 = vsub.f32 1.0, %v3823
    %v3856 = vsub.f32 1.0, %v3824
    %v3857 = vsub.f32 1.0, %v3825
    %v3858 = vsub.f32 1.0, %v3826
    %v3859 = vsub.f32 1.0, %v3827
    %v3860 = vsub.f32 1.0, %v3828
    %v3861 = vsub.f32 1.0, %v3829
    %v3862 = vsub.f32 1.0, %v3830
    %v3863 = vsub.f32 1.0, %v3831
    %v3864 = vsub.f32 1.0, %v3832
    %v3865 = vsub.f32 1.0, %v3833
    %v3866 = vsub.f32 1.0, %v3834
    %v3867 = vsub.f32 1.0, %v3835
    %v3868 = vsub.f32 1.0, %v3836
    %v3869 = vsub.f32 1.0, %v3837
    %v3870 = vsub.f32 1.0, %v3838
    %v3871 = vsub.f32 1.0, %v3839
    %v3872 = vsub.f32 1.0, %v3840
    %v3873 = vsub.f32 1.0, %v3841
    %v3874 = vsub.f32 1.0, %v3842
    %v3875 = vmax.f32 %v3843, 0.0
    %v3876 = vmax.f32 %v3844, 0.0
    %v3877 = vmax.f32 %v3845, 0.0
    %v3878 = vmax.f32 %v3846, 0.0
    %v3879 = vmax.f32 %v3847, 0.0
    %v3880 = vmax.f32 %v3848, 0.0
    %v3881 = vmax.f32 %v3849, 0.0
    %v3882 = vmax.f32 %v3850, 0.0
    %v3883 = vmax.f32 %v3851, 0.0
    %v3884 = vmax.f32 %v3852, 0.0
    %v3885 = vmax.f32 %v3853, 0.0
    %v3886 = vmax.f32 %v3854, 0.0
    %v3887 = vmax.f32 %v3855, 0.0
    %v3888 = vmax.f32 %v3856, 0.0
    %v3889 = vmax.f32 %v3857, 0.0
    %v3890 = vmax.f32 %v3858, 0.0
    %v3891 = vmax.f32 %v3859, 0.0
    %v3892 = vmax.f32 %v3860, 0.0
    %v3893 = vmax.f32 %v3861, 0.0
    %v3894 = vmax.f32 %v3862, 0.0
    %v3895 = vmax.f32 %v3863, 0.0
    %v3896 = vmax.f32 %v3864, 0.0
    %v3897 = vmax.f32 %v3865, 0.0
    %v3898 = vmax.f32 %v3866, 0.0
    %v3899 = vmax.f32 %v3867, 0.0
    %v3900 = vmax.f32 %v3868, 0.0
    %v3901 = vmax.f32 %v3869, 0.0
    %v3902 = vmax.f32 %v3870, 0.0
    %v3903 = vmax.f32 %v3871, 0.0
    %v3904 = vmax.f32 %v3872, 0.0
    %v3905 = vmax.f32 %v3873, 0.0
    %v3906 = vmax.f32 %v3874, 0.0
    %v3907 = vmul.f32 %v3619, %v3875
    %v3908 = vmul.f32 %v3620, %v3876
    %v3909 = vmul.f32 %v3621, %v3877
    %v3910 = vmul.f32 %v3622, %v3878
    %v3911 = vmul.f32 %v3623, %v3879
    %v3912 = vmul.f32 %v3624, %v3880
    %v3913 = vmul.f32 %v3625, %v3881
    %v3914 = vmul.f32 %v3626, %v3882
    %v3915 = vmul.f32 %v3627, %v3883
    %v3916 = vmul.f32 %v3628, %v3884
    %v3917 = vmul.f32 %v3629, %v3885
    %v3918 = vmul.f32 %v3630, %v3886
    %v3919 = vmul.f32 %v3631, %v3887
    %v3920 = vmul.f32 %v3632, %v3888
    %v3921 = vmul.f32 %v3633, %v3889
    %v3922 = vmul.f32 %v3634, %v3890
    %v3923 = vmul.f32 %v3635, %v3891
    %v3924 = vmul.f32 %v3636, %v3892
    %v3925 = vmul.f32 %v3637, %v3893
    %v3926 = vmul.f32 %v3638, %v3894
    %v3927 = vmul.f32 %v3639, %v3895
    %v3928 = vmul.f32 %v3640, %v3896
    %v3929 = vmul.f32 %v3641, %v3897
    %v3930 = vmul.f32 %v3642, %v3898
    %v3931 = vmul.f32 %v3643, %v3899
    %v3932 = vmul.f32 %v3644, %v3900
    %v3933 = vmul.f32 %v3645, %v3901
    %v3934 = vmul.f32 %v3646, %v3902
    %v3935 = vmul.f32 %v3647, %v3903
    %v3936 = vmul.f32 %v3648, %v3904
    %v3937 = vmul.f32 %v3649, %v3905
    %v3938 = vmul.f32 %v3650, %v3906
    %s3940 = sor.u32 256, 48
    %3941 = vbcast.lane.b32.xlu0 %v1349, %s3940
    %v3942 = vpop.permute.xlu0 %3941
    %s3944 = sor.u32 256, 56
    %3945 = vbcast.lane.b32.xlu0 %v1349, %s3944
    %v3946 = vpop.permute.xlu0 %3945
    %s3948 = sor.u32 256, 48
    %3949 = vbcast.lane.b32.xlu0 %v1360, %s3948
    %v3950 = vpop.permute.xlu0 %3949
    %s3952 = sor.u32 256, 56
    %3953 = vbcast.lane.b32.xlu0 %v1360, %s3952
    %v3954 = vpop.permute.xlu0 %3953
    %s3956 = sor.u32 256, 48
    %3957 = vbcast.lane.b32.xlu0 %v1371, %s3956
    %v3958 = vpop.permute.xlu0 %3957
    %s3960 = sor.u32 256, 56
    %3961 = vbcast.lane.b32.xlu0 %v1371, %s3960
    %v3962 = vpop.permute.xlu0 %3961
    %s3964 = sor.u32 256, 48
    %3965 = vbcast.lane.b32.xlu0 %v1382, %s3964
    %v3966 = vpop.permute.xlu0 %3965
    %s3968 = sor.u32 256, 56
    %3969 = vbcast.lane.b32.xlu0 %v1382, %s3968
    %v3970 = vpop.permute.xlu0 %3969
    %s3972 = sor.u32 256, 48
    %3973 = vbcast.lane.b32.xlu0 %v1393, %s3972
    %v3974 = vpop.permute.xlu0 %3973
    %s3976 = sor.u32 256, 56
    %3977 = vbcast.lane.b32.xlu0 %v1393, %s3976
    %v3978 = vpop.permute.xlu0 %3977
    %s3980 = sor.u32 256, 48
    %3981 = vbcast.lane.b32.xlu0 %v1404, %s3980
    %v3982 = vpop.permute.xlu0 %3981
    %s3984 = sor.u32 256, 56
    %3985 = vbcast.lane.b32.xlu0 %v1404, %s3984
    %v3986 = vpop.permute.xlu0 %3985
    %s3988 = sor.u32 256, 48
    %3989 = vbcast.lane.b32.xlu0 %v1415, %s3988
    %v3990 = vpop.permute.xlu0 %3989
    %s3992 = sor.u32 256, 56
    %3993 = vbcast.lane.b32.xlu0 %v1415, %s3992
    %v3994 = vpop.permute.xlu0 %3993
    %s3996 = sor.u32 256, 48
    %3997 = vbcast.lane.b32.xlu0 %v1426, %s3996
    %v3998 = vpop.permute.xlu0 %3997
    %s4000 = sor.u32 256, 56
    %4001 = vbcast.lane.b32.xlu0 %v1426, %s4000
    %v4002 = vpop.permute.xlu0 %4001
    %s4004 = sor.u32 256, 48
    %4005 = vbcast.lane.b32.xlu0 %v1437, %s4004
    %v4006 = vpop.permute.xlu0 %4005
    %s4008 = sor.u32 256, 56
    %4009 = vbcast.lane.b32.xlu0 %v1437, %s4008
    %v4010 = vpop.permute.xlu0 %4009
    %s4012 = sor.u32 256, 48
    %4013 = vbcast.lane.b32.xlu0 %v1448, %s4012
    %v4014 = vpop.permute.xlu0 %4013
    %s4016 = sor.u32 256, 56
    %4017 = vbcast.lane.b32.xlu0 %v1448, %s4016
    %v4018 = vpop.permute.xlu0 %4017
    %s4020 = sor.u32 256, 48
    %4021 = vbcast.lane.b32.xlu0 %v1459, %s4020
    %v4022 = vpop.permute.xlu0 %4021
    %s4024 = sor.u32 256, 56
    %4025 = vbcast.lane.b32.xlu0 %v1459, %s4024
    %v4026 = vpop.permute.xlu0 %4025
    %s4028 = sor.u32 256, 48
    %4029 = vbcast.lane.b32.xlu0 %v1470, %s4028
    %v4030 = vpop.permute.xlu0 %4029
    %s4032 = sor.u32 256, 56
    %4033 = vbcast.lane.b32.xlu0 %v1470, %s4032
    %v4034 = vpop.permute.xlu0 %4033
    %s4036 = sor.u32 256, 48
    %4037 = vbcast.lane.b32.xlu0 %v1481, %s4036
    %v4038 = vpop.permute.xlu0 %4037
    %s4040 = sor.u32 256, 56
    %4041 = vbcast.lane.b32.xlu0 %v1481, %s4040
    %v4042 = vpop.permute.xlu0 %4041
    %s4044 = sor.u32 256, 48
    %4045 = vbcast.lane.b32.xlu0 %v1492, %s4044
    %v4046 = vpop.permute.xlu0 %4045
    %s4048 = sor.u32 256, 56
    %4049 = vbcast.lane.b32.xlu0 %v1492, %s4048
    %v4050 = vpop.permute.xlu0 %4049
    %s4052 = sor.u32 256, 48
    %4053 = vbcast.lane.b32.xlu0 %v1503, %s4052
    %v4054 = vpop.permute.xlu0 %4053
    %s4056 = sor.u32 256, 56
    %4057 = vbcast.lane.b32.xlu0 %v1503, %s4056
    %v4058 = vpop.permute.xlu0 %4057
    %s4060 = sor.u32 256, 48
    %4061 = vbcast.lane.b32.xlu0 %v1514, %s4060
    %v4062 = vpop.permute.xlu0 %4061
    %s4064 = sor.u32 256, 56
    %4065 = vbcast.lane.b32.xlu0 %v1514, %s4064
    %v4066 = vpop.permute.xlu0 %4065
    %v4067 = vmul.f32 %v3907, %v3942
    %v4068 = vmul.f32 %v3908, %v3946
    %v4069 = vmul.f32 %v3909, %v3950
    %v4070 = vmul.f32 %v3910, %v3954
    %v4071 = vmul.f32 %v3911, %v3958
    %v4072 = vmul.f32 %v3912, %v3962
    %v4073 = vmul.f32 %v3913, %v3966
    %v4074 = vmul.f32 %v3914, %v3970
    %v4075 = vmul.f32 %v3915, %v3974
    %v4076 = vmul.f32 %v3916, %v3978
    %v4077 = vmul.f32 %v3917, %v3982
    %v4078 = vmul.f32 %v3918, %v3986
    %v4079 = vmul.f32 %v3919, %v3990
    %v4080 = vmul.f32 %v3920, %v3994
    %v4081 = vmul.f32 %v3921, %v3998
    %v4082 = vmul.f32 %v3922, %v4002
    %v4083 = vmul.f32 %v3923, %v4006
    %v4084 = vmul.f32 %v3924, %v4010
    %v4085 = vmul.f32 %v3925, %v4014
    %v4086 = vmul.f32 %v3926, %v4018
    %v4087 = vmul.f32 %v3927, %v4022
    %v4088 = vmul.f32 %v3928, %v4026
    %v4089 = vmul.f32 %v3929, %v4030
    %v4090 = vmul.f32 %v3930, %v4034
    %v4091 = vmul.f32 %v3931, %v4038
    %v4092 = vmul.f32 %v3932, %v4042
    %v4093 = vmul.f32 %v3933, %v4046
    %v4094 = vmul.f32 %v3934, %v4050
    %v4095 = vmul.f32 %v3935, %v4054
    %v4096 = vmul.f32 %v3936, %v4058
    %v4097 = vmul.f32 %v3937, %v4062
    %v4098 = vmul.f32 %v3938, %v4066
    %v4099 = vsel %vm1554, %v4067, 0.0
    %v4100 = vsel %vm1554, %v4068, 0.0
    %v4101 = vadd.f32 %v4099, %v4100
    %v4102 = vrot.slane %v4101, 4
    %v4103 = vadd.f32 %v4101, %v4102
    %v4104 = vrot.slane %v4103, 2
    %v4105 = vadd.f32 %v4103, %v4104
    %v4106 = vrot.slane %v4105, 1
    %v4107 = vadd.f32 %v4105, %v4106
    %v4108 = vsel %vm1554, %v4069, 0.0
    %v4109 = vsel %vm1554, %v4070, 0.0
    %v4110 = vadd.f32 %v4108, %v4109
    %v4111 = vrot.slane %v4110, 4
    %v4112 = vadd.f32 %v4110, %v4111
    %v4113 = vrot.slane %v4112, 2
    %v4114 = vadd.f32 %v4112, %v4113
    %v4115 = vrot.slane %v4114, 1
    %v4116 = vadd.f32 %v4114, %v4115
    %v4117 = vsel %vm1554, %v4071, 0.0
    %v4118 = vsel %vm1554, %v4072, 0.0
    %v4119 = vadd.f32 %v4117, %v4118
    %v4120 = vrot.slane %v4119, 4
    %v4121 = vadd.f32 %v4119, %v4120
    %v4122 = vrot.slane %v4121, 2
    %v4123 = vadd.f32 %v4121, %v4122
    %v4124 = vrot.slane %v4123, 1
    %v4125 = vadd.f32 %v4123, %v4124
    %v4126 = vsel %vm1554, %v4073, 0.0
    %v4127 = vsel %vm1554, %v4074, 0.0
    %v4128 = vadd.f32 %v4126, %v4127
    %v4129 = vrot.slane %v4128, 4
    %v4130 = vadd.f32 %v4128, %v4129
    %v4131 = vrot.slane %v4130, 2
    %v4132 = vadd.f32 %v4130, %v4131
    %v4133 = vrot.slane %v4132, 1
    %v4134 = vadd.f32 %v4132, %v4133
    %v4135 = vsel %vm1554, %v4075, 0.0
    %v4136 = vsel %vm1554, %v4076, 0.0
    %v4137 = vadd.f32 %v4135, %v4136
    %v4138 = vrot.slane %v4137, 4
    %v4139 = vadd.f32 %v4137, %v4138
    %v4140 = vrot.slane %v4139, 2
    %v4141 = vadd.f32 %v4139, %v4140
    %v4142 = vrot.slane %v4141, 1
    %v4143 = vadd.f32 %v4141, %v4142
    %v4144 = vsel %vm1554, %v4077, 0.0
    %v4145 = vsel %vm1554, %v4078, 0.0
    %v4146 = vadd.f32 %v4144, %v4145
    %v4147 = vrot.slane %v4146, 4
    %v4148 = vadd.f32 %v4146, %v4147
    %v4149 = vrot.slane %v4148, 2
    %v4150 = vadd.f32 %v4148, %v4149
    %v4151 = vrot.slane %v4150, 1
    %v4152 = vadd.f32 %v4150, %v4151
    %v4153 = vsel %vm1554, %v4079, 0.0
    %v4154 = vsel %vm1554, %v4080, 0.0
    %v4155 = vadd.f32 %v4153, %v4154
    %v4156 = vrot.slane %v4155, 4
    %v4157 = vadd.f32 %v4155, %v4156
    %v4158 = vrot.slane %v4157, 2
    %v4159 = vadd.f32 %v4157, %v4158
    %v4160 = vrot.slane %v4159, 1
    %v4161 = vadd.f32 %v4159, %v4160
    %v4162 = vsel %vm1554, %v4081, 0.0
    %v4163 = vsel %vm1554, %v4082, 0.0
    %v4164 = vadd.f32 %v4162, %v4163
    %v4165 = vrot.slane %v4164, 4
    %v4166 = vadd.f32 %v4164, %v4165
    %v4167 = vrot.slane %v4166, 2
    %v4168 = vadd.f32 %v4166, %v4167
    %v4169 = vrot.slane %v4168, 1
    %v4170 = vadd.f32 %v4168, %v4169
    %v4171 = vsel %vm1554, %v4083, 0.0
    %v4172 = vsel %vm1554, %v4084, 0.0
    %v4173 = vadd.f32 %v4171, %v4172
    %v4174 = vrot.slane %v4173, 4
    %v4175 = vadd.f32 %v4173, %v4174
    %v4176 = vrot.slane %v4175, 2
    %v4177 = vadd.f32 %v4175, %v4176
    %v4178 = vrot.slane %v4177, 1
    %v4179 = vadd.f32 %v4177, %v4178
    %v4180 = vsel %vm1554, %v4085, 0.0
    %v4181 = vsel %vm1554, %v4086, 0.0
    %v4182 = vadd.f32 %v4180, %v4181
    %v4183 = vrot.slane %v4182, 4
    %v4184 = vadd.f32 %v4182, %v4183
    %v4185 = vrot.slane %v4184, 2
    %v4186 = vadd.f32 %v4184, %v4185
    %v4187 = vrot.slane %v4186, 1
    %v4188 = vadd.f32 %v4186, %v4187
    %v4189 = vsel %vm1554, %v4087, 0.0
    %v4190 = vsel %vm1554, %v4088, 0.0
    %v4191 = vadd.f32 %v4189, %v4190
    %v4192 = vrot.slane %v4191, 4
    %v4193 = vadd.f32 %v4191, %v4192
    %v4194 = vrot.slane %v4193, 2
    %v4195 = vadd.f32 %v4193, %v4194
    %v4196 = vrot.slane %v4195, 1
    %v4197 = vadd.f32 %v4195, %v4196
    %v4198 = vsel %vm1554, %v4089, 0.0
    %v4199 = vsel %vm1554, %v4090, 0.0
    %v4200 = vadd.f32 %v4198, %v4199
    %v4201 = vrot.slane %v4200, 4
    %v4202 = vadd.f32 %v4200, %v4201
    %v4203 = vrot.slane %v4202, 2
    %v4204 = vadd.f32 %v4202, %v4203
    %v4205 = vrot.slane %v4204, 1
    %v4206 = vadd.f32 %v4204, %v4205
    %v4207 = vsel %vm1554, %v4091, 0.0
    %v4208 = vsel %vm1554, %v4092, 0.0
    %v4209 = vadd.f32 %v4207, %v4208
    %v4210 = vrot.slane %v4209, 4
    %v4211 = vadd.f32 %v4209, %v4210
    %v4212 = vrot.slane %v4211, 2
    %v4213 = vadd.f32 %v4211, %v4212
    %v4214 = vrot.slane %v4213, 1
    %v4215 = vadd.f32 %v4213, %v4214
    %v4216 = vsel %vm1554, %v4093, 0.0
    %v4217 = vsel %vm1554, %v4094, 0.0
    %v4218 = vadd.f32 %v4216, %v4217
    %v4219 = vrot.slane %v4218, 4
    %v4220 = vadd.f32 %v4218, %v4219
    %v4221 = vrot.slane %v4220, 2
    %v4222 = vadd.f32 %v4220, %v4221
    %v4223 = vrot.slane %v4222, 1
    %v4224 = vadd.f32 %v4222, %v4223
    %v4225 = vsel %vm1554, %v4095, 0.0
    %v4226 = vsel %vm1554, %v4096, 0.0
    %v4227 = vadd.f32 %v4225, %v4226
    %v4228 = vrot.slane %v4227, 4
    %v4229 = vadd.f32 %v4227, %v4228
    %v4230 = vrot.slane %v4229, 2
    %v4231 = vadd.f32 %v4229, %v4230
    %v4232 = vrot.slane %v4231, 1
    %v4233 = vadd.f32 %v4231, %v4232
    %v4234 = vsel %vm1554, %v4097, 0.0
    %v4235 = vsel %vm1554, %v4098, 0.0
    %v4236 = vadd.f32 %v4234, %v4235
    %v4237 = vrot.slane %v4236, 4
    %v4238 = vadd.f32 %v4236, %v4237
    %v4239 = vrot.slane %v4238, 2
    %v4240 = vadd.f32 %v4238, %v4239
    %v4241 = vrot.slane %v4240, 1
    %v4242 = vadd.f32 %v4240, %v4241
    %v4243 = vld [vmem:[%s12] sm:$0xf]
    %v4244 = vld [vmem:[%s1] sm:$0xff]
    %v4245 = vld [vmem:[%s1 + $0x8] sm:$0xff]
    %v4246 = vld [vmem:[%s1 + $0x10] sm:$0xff]
    %v4247 = vld [vmem:[%s1 + $0x18] sm:$0xff]
    %v4248 = vld [vmem:[%s1 + $0x20] sm:$0xff]
    %v4249 = vld [vmem:[%s1 + $0x28] sm:$0xff]
    %v4250 = vld [vmem:[%s1 + $0x30] sm:$0xff]
    %v4251 = vld [vmem:[%s1 + $0x38] sm:$0xff]
    %v4252 = vld [vmem:[%s1 + $0x40] sm:$0xff]
    %v4253 = vld [vmem:[%s1 + $0x48] sm:$0xff]
    %v4254 = vld [vmem:[%s1 + $0x50] sm:$0xff]
    %v4255 = vld [vmem:[%s1 + $0x58] sm:$0xf]
    %v4256 = vld [vmem:[%s3] sm:$0xff]
    %v4257 = vld [vmem:[%s3 + $0x8] sm:$0xff]
    %v4258 = vld [vmem:[%s3 + $0x10] sm:$0xff]
    %v4259 = vld [vmem:[%s3 + $0x18] sm:$0xff]
    %v4260 = vld [vmem:[%s4] sm:$0x1]
    %v4262 = vlaneseq
    %v4263 = vshrl.u32 %v4262, 7
    %v4264 = vsub.s32 0, %v4263
    %v4265 = vrot.slane %v4260, %v4264
    %v4268 = vsel %vm69, %v4244, 0
    %v4271 = vsel %vm69, %v4245, 0
    %v4274 = vsel %vm69, %v4246, 0
    %v4277 = vsel %vm69, %v4247, 0
    %v4280 = vsel %vm69, %v4248, 0
    %v4283 = vsel %vm69, %v4249, 0
    %v4286 = vsel %vm69, %v4250, 0
    %v4289 = vsel %vm69, %v4251, 0
    %v4292 = vsel %vm69, %v4252, 0
    %v4295 = vsel %vm69, %v4253, 0
    %v4298 = vsel %vm69, %v4254, 0
    %v4301 = vsel %vm69, %v4255, 0
    %4303 = vmatprep.subr.mxu0 0.0
    %4304 = vmatpush1.msra.mxu0 %v4256
    %4305 = vmatprep.subr.mxu0 0.0
    %4306 = vmatpush1.msra.mxu0 %v4257
    %4307 = vmatprep.subr.mxu0 0.0
    %4308 = vmatpush1.msra.mxu0 %v4258
    %4309 = vmatprep.subr.mxu0 0.0
    %4310 = vmatpush1.msra.mxu0 %v4259
    %4311 = vmatprep.subr.mxu0 0.0
    %4312 = vmatpush1.msra.mxu0 0.0
    %4313 = vmatprep.subr.mxu0 0.0
    %4314 = vmatpush1.msra.mxu0 0.0
    %4315 = vmatprep.subr.mxu0 0.0
    %4316 = vmatpush1.msra.mxu0 0.0
    %4317 = vmatprep.subr.mxu0 0.0
    %4318 = vmatpush1.msra.mxu0 0.0
    %4319 = vmatprep.subr.mxu0 0.0
    %4320 = vmatpush1.msra.mxu0 0.0
    %4321 = vmatprep.subr.mxu0 0.0
    %4322 = vmatpush1.msra.mxu0 0.0
    %4323 = vmatprep.subr.mxu0 0.0
    %4324 = vmatpush1.msra.mxu0 0.0
    %4325 = vmatprep.subr.mxu0 0.0
    %4326 = vmatpush1.msra.mxu0 0.0
    %4327 = vmatprep.subr.mxu0 0.0
    %4328 = vmatpush1.msra.mxu0 0.0
    %4329 = vmatprep.subr.mxu0 0.0
    %4330 = vmatpush1.msra.mxu0 0.0
    %4331 = vmatprep.subr.mxu0 0.0
    %4332 = vmatpush1.msra.mxu0 0.0
    %4333 = vmatprep.subr.mxu0 0.0
    %4334 = vmatpush1.msra.mxu0 0.0
    %4335 = vmatprep.subr.mxu0 0.0
    %4336 = vmatpush1.msra.mxu0 0.0
    %4337 = vmatprep.subr.mxu0 0.0
    %4338 = vmatpush1.msra.mxu0 0.0
    %4339 = vmatprep.subr.mxu0 0.0
    %4340 = vmatpush1.msra.mxu0 0.0
    %4341 = vmatprep.subr.mxu0 0.0
    %4342 = vmatpush1.msra.mxu0 0.0
    %4343 = vmatprep.subr.mxu0 0.0
    %4344 = vmatpush1.msra.mxu0 0.0
    %4345 = vmatprep.subr.mxu0 0.0
    %4346 = vmatpush1.msra.mxu0 0.0
    %4347 = vmatprep.subr.mxu0 0.0
    %4348 = vmatpush1.msra.mxu0 0.0
    %4349 = vmatprep.subr.mxu0 0.0
    %4350 = vmatpush1.msra.mxu0 0.0
    %4351 = vmatprep.subr.mxu0 0.0
    %4352 = vmatpush1.msra.mxu0 0.0
    %4353 = vmatprep.subr.mxu0 0.0
    %4354 = vmatpush1.msra.mxu0 0.0
    %4355 = vmatprep.subr.mxu0 0.0
    %4356 = vmatpush1.msra.mxu0 0.0
    %4357 = vmatprep.subr.mxu0 0.0
    %4358 = vmatpush1.msra.mxu0 0.0
    %4359 = vmatprep.subr.mxu0 0.0
    %4360 = vmatpush1.msra.mxu0 0.0
    %4361 = vmatprep.subr.mxu0 0.0
    %4362 = vmatpush1.msra.mxu0 0.0
    %4363 = vmatprep.subr.mxu0 0.0
    %4364 = vmatpush1.msra.mxu0 0.0
    %4365 = vmatprep.subr.mxu0 0.0
    %4366 = vmatpush1.msra.mxu0 0.0
    %4367 = vmatprep.mubr.f32.mxu0 0.0
    %4368 = vmatmul.mubr.f32.gmra.mrb[0].mxu0 %v4268
    %v4369 = vpop.f32.mrb[0].mxu0
    %v4370 = vadd.f32 %v4265, %v4369
    %v4371 = vpop.f32.mrb[0].mxu0
    %4372 = vmatprep.mubr.f32.mxu0 0.0
    %4373 = vmatmul.mubr.f32.gmra.mrb[0].mxu0 %v4271
    %v4374 = vpop.f32.mrb[0].mxu0
    %v4375 = vadd.f32 %v4265, %v4374
    %v4376 = vpop.f32.mrb[0].mxu0
    %4377 = vmatprep.mubr.f32.mxu0 0.0
    %4378 = vmatmul.mubr.f32.gmra.mrb[0].mxu0 %v4274
    %v4379 = vpop.f32.mrb[0].mxu0
    %v4380 = vadd.f32 %v4265, %v4379
    %v4381 = vpop.f32.mrb[0].mxu0
    %4382 = vmatprep.mubr.f32.mxu0 0.0
    %4383 = vmatmul.mubr.f32.gmra.mrb[0].mxu0 %v4277
    %v4384 = vpop.f32.mrb[0].mxu0
    %v4385 = vadd.f32 %v4265, %v4384
    %v4386 = vpop.f32.mrb[0].mxu0
    %4387 = vmatprep.mubr.f32.mxu0 0.0
    %4388 = vmatmul.mubr.f32.gmra.mrb[0].mxu0 %v4280
    %v4389 = vpop.f32.mrb[0].mxu0
    %v4390 = vadd.f32 %v4265, %v4389
    %v4391 = vpop.f32.mrb[0].mxu0
    %4392 = vmatprep.mubr.f32.mxu0 0.0
    %4393 = vmatmul.mubr.f32.gmra.mrb[0].mxu0 %v4283
    %v4394 = vpop.f32.mrb[0].mxu0
    %v4395 = vadd.f32 %v4265, %v4394
    %v4396 = vpop.f32.mrb[0].mxu0
    %4397 = vmatprep.mubr.f32.mxu0 0.0
    %4398 = vmatmul.mubr.f32.gmra.mrb[0].mxu0 %v4286
    %v4399 = vpop.f32.mrb[0].mxu0
    %v4400 = vadd.f32 %v4265, %v4399
    %v4401 = vpop.f32.mrb[0].mxu0
    %4402 = vmatprep.mubr.f32.mxu0 0.0
    %4403 = vmatmul.mubr.f32.gmra.mrb[0].mxu0 %v4289
    %v4404 = vpop.f32.mrb[0].mxu0
    %v4405 = vadd.f32 %v4265, %v4404
    %v4406 = vpop.f32.mrb[0].mxu0
    %4407 = vmatprep.mubr.f32.mxu0 0.0
    %4408 = vmatmul.mubr.f32.gmra.mrb[0].mxu0 %v4292
    %v4409 = vpop.f32.mrb[0].mxu0
    %v4410 = vadd.f32 %v4265, %v4409
    %v4411 = vpop.f32.mrb[0].mxu0
    %4412 = vmatprep.mubr.f32.mxu0 0.0
    %4413 = vmatmul.mubr.f32.gmra.mrb[0].mxu0 %v4295
    %v4414 = vpop.f32.mrb[0].mxu0
    %v4415 = vadd.f32 %v4265, %v4414
    %v4416 = vpop.f32.mrb[0].mxu0
    %4417 = vmatprep.mubr.f32.mxu0 0.0
    %4418 = vmatmul.mubr.f32.gmra.mrb[0].mxu0 %v4298
    %v4419 = vpop.f32.mrb[0].mxu0
    %v4420 = vadd.f32 %v4265, %v4419
    %v4421 = vpop.f32.mrb[0].mxu0
    %4422 = vmatprep.mubr.f32.mxu0 0.0
    %4423 = vmatmul.mubr.f32.gmra.mrb[0].mxu0 %v4301
    %v4424 = vpop.f32.mrb[0].mxu0
    %v4425 = vadd.f32 %v4265, %v4424
    %v4426 = vpop.f32.mrb[0].mxu0
    %4427 = vdwg.mxu0
    %vm4436 = vcmask 1041409
    %v4437 = vsel %vm4436, %v1572, %v1563
    %vm4438 = vcmask 1042434
    %v4439 = vsel %vm4438, %v1581, %v4437
    %vm4440 = vcmask 1043459
    %v4441 = vsel %vm4440, %v1590, %v4439
    %vm4442 = vcmask 1044484
    %v4443 = vsel %vm4442, %v1599, %v4441
    %vm4444 = vcmask 1045509
    %v4445 = vsel %vm4444, %v1608, %v4443
    %vm4446 = vcmask 1046534
    %v4447 = vsel %vm4446, %v1617, %v4445
    %vm4448 = vcmask 1047559
    %v4449 = vsel %vm4448, %v1626, %v4447
    %v4458 = vsel %vm4436, %v2420, %v2411
    %v4459 = vsel %vm4438, %v2429, %v4458
    %v4460 = vsel %vm4440, %v2438, %v4459
    %v4461 = vsel %vm4442, %v2447, %v4460
    %v4462 = vsel %vm4444, %v2456, %v4461
    %v4463 = vsel %vm4446, %v2465, %v4462
    %v4464 = vsel %vm4448, %v2474, %v4463
    %v4473 = vsel %vm4436, %v3268, %v3259
    %v4474 = vsel %vm4438, %v3277, %v4473
    %v4475 = vsel %vm4440, %v3286, %v4474
    %v4476 = vsel %vm4442, %v3295, %v4475
    %v4477 = vsel %vm4444, %v3304, %v4476
    %v4478 = vsel %vm4446, %v3313, %v4477
    %v4479 = vsel %vm4448, %v3322, %v4478
    %v4488 = vsel %vm4436, %v4116, %v4107
    %v4489 = vsel %vm4438, %v4125, %v4488
    %v4490 = vsel %vm4440, %v4134, %v4489
    %v4491 = vsel %vm4442, %v4143, %v4490
    %v4492 = vsel %vm4444, %v4152, %v4491
    %v4493 = vsel %vm4446, %v4161, %v4492
    %v4494 = vsel %vm4448, %v4170, %v4493
    %v4495 = vsel %vm1554, %v4449, 0
    %v4497 = vsel %vm1554, %v4464, 0
    %v4499 = vsel %vm1554, %v4479, 0
    %v4501 = vsel %vm1554, %v4494, 0
    %vm4503 = vcmask 1043456
    %v4505 = vsel %vm4503, %v4425, 0
    %4507 = vmatprep.subr.mxu0 0.0
    %4508 = vmatpush1.msra.mxu0 %v4370
    %4509 = vmatprep.subr.mxu0 0.0
    %4510 = vmatpush1.msra.mxu0 %v4375
    %4511 = vmatprep.subr.mxu0 0.0
    %4512 = vmatpush1.msra.mxu0 %v4380
    %4513 = vmatprep.subr.mxu0 0.0
    %4514 = vmatpush1.msra.mxu0 %v4385
    %4515 = vmatprep.subr.mxu0 0.0
    %4516 = vmatpush1.msra.mxu0 %v4390
    %4517 = vmatprep.subr.mxu0 0.0
    %4518 = vmatpush1.msra.mxu0 %v4395
    %4519 = vmatprep.subr.mxu0 0.0
    %4520 = vmatpush1.msra.mxu0 %v4400
    %4521 = vmatprep.subr.mxu0 0.0
    %4522 = vmatpush1.msra.mxu0 %v4405
    %4523 = vmatprep.subr.mxu0 0.0
    %4524 = vmatpush1.msra.mxu0 %v4410
    %4525 = vmatprep.subr.mxu0 0.0
    %4526 = vmatpush1.msra.mxu0 %v4415
    %4527 = vmatprep.subr.mxu0 0.0
    %4528 = vmatpush1.msra.mxu0 %v4420
    %4529 = vmatprep.subr.mxu0 0.0
    %4530 = vmatpush1.msra.mxu0 %v4505
    %4531 = vmatprep.subr.mxu0 0.0
    %4532 = vmatpush1.msra.mxu0 0.0
    %4533 = vmatprep.subr.mxu0 0.0
    %4534 = vmatpush1.msra.mxu0 0.0
    %4535 = vmatprep.subr.mxu0 0.0
    %4536 = vmatpush1.msra.mxu0 0.0
    %4537 = vmatprep.subr.mxu0 0.0
    %4538 = vmatpush1.msra.mxu0 0.0
    %4539 = vmatprep.subr.mxu0 0.0
    %4540 = vmatpush1.msra.mxu0 0.0
    %4541 = vmatprep.subr.mxu0 0.0
    %4542 = vmatpush1.msra.mxu0 0.0
    %4543 = vmatprep.subr.mxu0 0.0
    %4544 = vmatpush1.msra.mxu0 0.0
    %4545 = vmatprep.subr.mxu0 0.0
    %4546 = vmatpush1.msra.mxu0 0.0
    %4547 = vmatprep.subr.mxu0 0.0
    %4548 = vmatpush1.msra.mxu0 0.0
    %4549 = vmatprep.subr.mxu0 0.0
    %4550 = vmatpush1.msra.mxu0 0.0
    %4551 = vmatprep.subr.mxu0 0.0
    %4552 = vmatpush1.msra.mxu0 0.0
    %4553 = vmatprep.subr.mxu0 0.0
    %4554 = vmatpush1.msra.mxu0 0.0
    %4555 = vmatprep.subr.mxu0 0.0
    %4556 = vmatpush1.msra.mxu0 0.0
    %4557 = vmatprep.subr.mxu0 0.0
    %4558 = vmatpush1.msra.mxu0 0.0
    %4559 = vmatprep.subr.mxu0 0.0
    %4560 = vmatpush1.msra.mxu0 0.0
    %4561 = vmatprep.subr.mxu0 0.0
    %4562 = vmatpush1.msra.mxu0 0.0
    %4563 = vmatprep.subr.mxu0 0.0
    %4564 = vmatpush1.msra.mxu0 0.0
    %4565 = vmatprep.subr.mxu0 0.0
    %4566 = vmatpush1.msra.mxu0 0.0
    %4567 = vmatprep.subr.mxu0 0.0
    %4568 = vmatpush1.msra.mxu0 0.0
    %4569 = vmatprep.subr.mxu0 0.0
    %4570 = vmatpush1.msra.mxu0 0.0
    %4571 = vmatprep.mubr.f32.mxu0 0.0
    %4572 = vmatmul.mubr.f32.gmra.mrb[0].mxu0 %v4495
    %v4573 = vpop.f32.mrb[0].mxu0
    %v4574 = vadd.f32 0.0, %v4573
    %v4575 = vpop.f32.mrb[0].mxu0
    %4576 = vmatprep.mubr.f32.mxu0 0.0
    %4577 = vmatmul.mubr.f32.gmra.mrb[0].mxu0 %v4497
    %v4578 = vpop.f32.mrb[0].mxu0
    %v4579 = vadd.f32 0.0, %v4578
    %v4580 = vpop.f32.mrb[0].mxu0
    %4581 = vmatprep.mubr.f32.mxu0 0.0
    %4582 = vmatmul.mubr.f32.gmra.mrb[0].mxu0 %v4499
    %v4583 = vpop.f32.mrb[0].mxu0
    %v4584 = vadd.f32 0.0, %v4583
    %v4585 = vpop.f32.mrb[0].mxu0
    %4586 = vmatprep.mubr.f32.mxu0 0.0
    %4587 = vmatmul.mubr.f32.gmra.mrb[0].mxu0 %v4501
    %v4588 = vpop.f32.mrb[0].mxu0
    %v4589 = vadd.f32 0.0, %v4588
    %v4590 = vpop.f32.mrb[0].mxu0
    %4591 = vdwg.mxu0
    %v4594 = vunpack.c.l.s4 1966171168
    %v4595 = vunpack.c.0.s8 %v4594
    %v4596 = vlaneseq
    %v4597 = vshrl.u32 %v4596, 7
    %v4598 = vsub.s32 %v4595, %v4597
    %v4599 = vrot.slane %v4243, %v4598
    %v4600 = vcombine.high %v4599, %v4599
    %v4602 = vunpack.c.l.s4 1966171168
    %v4603 = vunpack.c.0.s8 %v4602
    %v4604 = vlaneseq
    %v4605 = vshrl.u32 %v4604, 7
    %v4606 = vsub.s32 %v4603, %v4605
    %v4607 = vrot.slane %v4599, %v4606
    %v4609 = vunpack.c.l.s4 1966171168
    %v4610 = vunpack.c.0.s8 %v4609
    %v4611 = vlaneseq
    %v4612 = vshrl.u32 %v4611, 7
    %v4613 = vsub.s32 %v4610, %v4612
    %v4614 = vrot.slane %v4600, %v4613
    %v4615 = vcombine.high %v4607, %v4607
    %v4616 = vcombine.high %v4614, %v4614
    %v4617 = vlaneseq
    %v4618 = vshrl.u32 %v4617, 7
    %v4619 = vsub.s32 0, %v4618
    %v4620 = vrot.slane %v4607, %v4619
    %v4621 = vlaneseq
    %v4622 = vshrl.u32 %v4621, 7
    %v4623 = vsub.s32 0, %v4622
    %v4624 = vrot.slane %v4614, %v4623
    %v4625 = vlaneseq
    %v4626 = vshrl.u32 %v4625, 7
    %v4627 = vsub.s32 0, %v4626
    %v4628 = vrot.slane %v4615, %v4627
    %v4629 = vlaneseq
    %v4630 = vshrl.u32 %v4629, 7
    %v4631 = vsub.s32 0, %v4630
    %v4632 = vrot.slane %v4616, %v4631
    %v4637 = vmul.f32 %v4574, %v4620
    %v4638 = vmul.f32 %v4579, %v4624
    %v4639 = vmul.f32 %v4584, %v4628
    %v4640 = vmul.f32 %v4589, %v4632
    %v4641 = vsel %vm69, %v4637, 0.0
    %v4642 = vsel %vm69, %v4638, 0.0
    %v4643 = vadd.f32 %v4641, %v4642
    %v4644 = vsel %vm69, %v4639, 0.0
    %v4645 = vadd.f32 %v4643, %v4644
    %v4646 = vsel %vm69, %v4640, 0.0
    %v4647 = vadd.f32 %v4645, %v4646
    %s4648 = scalar_lea.vmem %s1, 96
    %v4649 = vld [vmem:[%s4648] sm:$0xff]
    %v4650 = vld [vmem:[%s4648 + $0x8] sm:$0xff]
    %v4651 = vld [vmem:[%s4648 + $0x10] sm:$0xff]
    %v4652 = vld [vmem:[%s4648 + $0x18] sm:$0xff]
    %v4653 = vld [vmem:[%s4648 + $0x20] sm:$0xff]
    %v4654 = vld [vmem:[%s4648 + $0x28] sm:$0xff]
    %v4655 = vld [vmem:[%s4648 + $0x30] sm:$0xff]
    %v4656 = vld [vmem:[%s4648 + $0x38] sm:$0xff]
    %v4657 = vld [vmem:[%s4648 + $0x40] sm:$0xff]
    %v4658 = vld [vmem:[%s4648 + $0x48] sm:$0xff]
    %v4659 = vld [vmem:[%s4648 + $0x50] sm:$0xff]
    %v4660 = vld [vmem:[%s4648 + $0x58] sm:$0xf]
    %v4662 = vsel %vm69, %v4649, 0
    %v4665 = vsel %vm69, %v4650, 0
    %v4668 = vsel %vm69, %v4651, 0
    %v4671 = vsel %vm69, %v4652, 0
    %v4674 = vsel %vm69, %v4653, 0
    %v4677 = vsel %vm69, %v4654, 0
    %v4680 = vsel %vm69, %v4655, 0
    %v4683 = vsel %vm69, %v4656, 0
    %v4686 = vsel %vm69, %v4657, 0
    %v4689 = vsel %vm69, %v4658, 0
    %v4692 = vsel %vm69, %v4659, 0
    %v4695 = vsel %vm69, %v4660, 0
    %4697 = vmatprep.subr.mxu0 0.0
    %4698 = vmatpush1.msra.mxu0 %v4256
    %4699 = vmatprep.subr.mxu0 0.0
    %4700 = vmatpush1.msra.mxu0 %v4257
    %4701 = vmatprep.subr.mxu0 0.0
    %4702 = vmatpush1.msra.mxu0 %v4258
    %4703 = vmatprep.subr.mxu0 0.0
    %4704 = vmatpush1.msra.mxu0 %v4259
    %4705 = vmatprep.subr.mxu0 0.0
    %4706 = vmatpush1.msra.mxu0 0.0
    %4707 = vmatprep.subr.mxu0 0.0
    %4708 = vmatpush1.msra.mxu0 0.0
    %4709 = vmatprep.subr.mxu0 0.0
    %4710 = vmatpush1.msra.mxu0 0.0
    %4711 = vmatprep.subr.mxu0 0.0
    %4712 = vmatpush1.msra.mxu0 0.0
    %4713 = vmatprep.subr.mxu0 0.0
    %4714 = vmatpush1.msra.mxu0 0.0
    %4715 = vmatprep.subr.mxu0 0.0
    %4716 = vmatpush1.msra.mxu0 0.0
    %4717 = vmatprep.subr.mxu0 0.0
    %4718 = vmatpush1.msra.mxu0 0.0
    %4719 = vmatprep.subr.mxu0 0.0
    %4720 = vmatpush1.msra.mxu0 0.0
    %4721 = vmatprep.subr.mxu0 0.0
    %4722 = vmatpush1.msra.mxu0 0.0
    %4723 = vmatprep.subr.mxu0 0.0
    %4724 = vmatpush1.msra.mxu0 0.0
    %4725 = vmatprep.subr.mxu0 0.0
    %4726 = vmatpush1.msra.mxu0 0.0
    %4727 = vmatprep.subr.mxu0 0.0
    %4728 = vmatpush1.msra.mxu0 0.0
    %4729 = vmatprep.subr.mxu0 0.0
    %4730 = vmatpush1.msra.mxu0 0.0
    %4731 = vmatprep.subr.mxu0 0.0
    %4732 = vmatpush1.msra.mxu0 0.0
    %4733 = vmatprep.subr.mxu0 0.0
    %4734 = vmatpush1.msra.mxu0 0.0
    %4735 = vmatprep.subr.mxu0 0.0
    %4736 = vmatpush1.msra.mxu0 0.0
    %4737 = vmatprep.subr.mxu0 0.0
    %4738 = vmatpush1.msra.mxu0 0.0
    %4739 = vmatprep.subr.mxu0 0.0
    %4740 = vmatpush1.msra.mxu0 0.0
    %4741 = vmatprep.subr.mxu0 0.0
    %4742 = vmatpush1.msra.mxu0 0.0
    %4743 = vmatprep.subr.mxu0 0.0
    %4744 = vmatpush1.msra.mxu0 0.0
    %4745 = vmatprep.subr.mxu0 0.0
    %4746 = vmatpush1.msra.mxu0 0.0
    %4747 = vmatprep.subr.mxu0 0.0
    %4748 = vmatpush1.msra.mxu0 0.0
    %4749 = vmatprep.subr.mxu0 0.0
    %4750 = vmatpush1.msra.mxu0 0.0
    %4751 = vmatprep.subr.mxu0 0.0
    %4752 = vmatpush1.msra.mxu0 0.0
    %4753 = vmatprep.subr.mxu0 0.0
    %4754 = vmatpush1.msra.mxu0 0.0
    %4755 = vmatprep.subr.mxu0 0.0
    %4756 = vmatpush1.msra.mxu0 0.0
    %4757 = vmatprep.subr.mxu0 0.0
    %4758 = vmatpush1.msra.mxu0 0.0
    %4759 = vmatprep.subr.mxu0 0.0
    %4760 = vmatpush1.msra.mxu0 0.0
    %4761 = vmatprep.mubr.f32.mxu0 0.0
    %4762 = vmatmul.mubr.f32.gmra.mrb[0].mxu0 %v4662
    %v4763 = vpop.f32.mrb[0].mxu0
    %v4764 = vadd.f32 %v4265, %v4763
    %v4765 = vpop.f32.mrb[0].mxu0
    %4766 = vmatprep.mubr.f32.mxu0 0.0
    %4767 = vmatmul.mubr.f32.gmra.mrb[0].mxu0 %v4665
    %v4768 = vpop.f32.mrb[0].mxu0
    %v4769 = vadd.f32 %v4265, %v4768
    %v4770 = vpop.f32.mrb[0].mxu0
    %4771 = vmatprep.mubr.f32.mxu0 0.0
    %4772 = vmatmul.mubr.f32.gmra.mrb[0].mxu0 %v4668
    %v4773 = vpop.f32.mrb[0].mxu0
    %v4774 = vadd.f32 %v4265, %v4773
    %v4775 = vpop.f32.mrb[0].mxu0
    %4776 = vmatprep.mubr.f32.mxu0 0.0
    %4777 = vmatmul.mubr.f32.gmra.mrb[0].mxu0 %v4671
    %v4778 = vpop.f32.mrb[0].mxu0
    %v4779 = vadd.f32 %v4265, %v4778
    %v4780 = vpop.f32.mrb[0].mxu0
    %4781 = vmatprep.mubr.f32.mxu0 0.0
    %4782 = vmatmul.mubr.f32.gmra.mrb[0].mxu0 %v4674
    %v4783 = vpop.f32.mrb[0].mxu0
    %v4784 = vadd.f32 %v4265, %v4783
    %v4785 = vpop.f32.mrb[0].mxu0
    %4786 = vmatprep.mubr.f32.mxu0 0.0
    %4787 = vmatmul.mubr.f32.gmra.mrb[0].mxu0 %v4677
    %v4788 = vpop.f32.mrb[0].mxu0
    %v4789 = vadd.f32 %v4265, %v4788
    %v4790 = vpop.f32.mrb[0].mxu0
    %4791 = vmatprep.mubr.f32.mxu0 0.0
    %4792 = vmatmul.mubr.f32.gmra.mrb[0].mxu0 %v4680
    %v4793 = vpop.f32.mrb[0].mxu0
    %v4794 = vadd.f32 %v4265, %v4793
    %v4795 = vpop.f32.mrb[0].mxu0
    %4796 = vmatprep.mubr.f32.mxu0 0.0
    %4797 = vmatmul.mubr.f32.gmra.mrb[0].mxu0 %v4683
    %v4798 = vpop.f32.mrb[0].mxu0
    %v4799 = vadd.f32 %v4265, %v4798
    %v4800 = vpop.f32.mrb[0].mxu0
    %4801 = vmatprep.mubr.f32.mxu0 0.0
    %4802 = vmatmul.mubr.f32.gmra.mrb[0].mxu0 %v4686
    %v4803 = vpop.f32.mrb[0].mxu0
    %v4804 = vadd.f32 %v4265, %v4803
    %v4805 = vpop.f32.mrb[0].mxu0
    %4806 = vmatprep.mubr.f32.mxu0 0.0
    %4807 = vmatmul.mubr.f32.gmra.mrb[0].mxu0 %v4689
    %v4808 = vpop.f32.mrb[0].mxu0
    %v4809 = vadd.f32 %v4265, %v4808
    %v4810 = vpop.f32.mrb[0].mxu0
    %4811 = vmatprep.mubr.f32.mxu0 0.0
    %4812 = vmatmul.mubr.f32.gmra.mrb[0].mxu0 %v4692
    %v4813 = vpop.f32.mrb[0].mxu0
    %v4814 = vadd.f32 %v4265, %v4813
    %v4815 = vpop.f32.mrb[0].mxu0
    %4816 = vmatprep.mubr.f32.mxu0 0.0
    %4817 = vmatmul.mubr.f32.gmra.mrb[0].mxu0 %v4695
    %v4818 = vpop.f32.mrb[0].mxu0
    %v4819 = vadd.f32 %v4265, %v4818
    %v4820 = vpop.f32.mrb[0].mxu0
    %4821 = vdwg.mxu0
    %v4830 = vsel %vm4436, %v1644, %v1635
    %v4831 = vsel %vm4438, %v1653, %v4830
    %v4832 = vsel %vm4440, %v1662, %v4831
    %v4833 = vsel %vm4442, %v1671, %v4832
    %v4834 = vsel %vm4444, %v1680, %v4833
    %v4835 = vsel %vm4446, %v1689, %v4834
    %v4836 = vsel %vm4448, %v1698, %v4835
    %v4845 = vsel %vm4436, %v2492, %v2483
    %v4846 = vsel %vm4438, %v2501, %v4845
    %v4847 = vsel %vm4440, %v2510, %v4846
    %v4848 = vsel %vm4442, %v2519, %v4847
    %v4849 = vsel %vm4444, %v2528, %v4848
    %v4850 = vsel %vm4446, %v2537, %v4849
    %v4851 = vsel %vm4448, %v2546, %v4850
    %v4860 = vsel %vm4436, %v3340, %v3331
    %v4861 = vsel %vm4438, %v3349, %v4860
    %v4862 = vsel %vm4440, %v3358, %v4861
    %v4863 = vsel %vm4442, %v3367, %v4862
    %v4864 = vsel %vm4444, %v3376, %v4863
    %v4865 = vsel %vm4446, %v3385, %v4864
    %v4866 = vsel %vm4448, %v3394, %v4865
    %v4875 = vsel %vm4436, %v4188, %v4179
    %v4876 = vsel %vm4438, %v4197, %v4875
    %v4877 = vsel %vm4440, %v4206, %v4876
    %v4878 = vsel %vm4442, %v4215, %v4877
    %v4879 = vsel %vm4444, %v4224, %v4878
    %v4880 = vsel %vm4446, %v4233, %v4879
    %v4881 = vsel %vm4448, %v4242, %v4880
    %v4882 = vsel %vm1554, %v4836, 0
    %v4884 = vsel %vm1554, %v4851, 0
    %v4886 = vsel %vm1554, %v4866, 0
    %v4888 = vsel %vm1554, %v4881, 0
    %v4891 = vsel %vm4503, %v4819, 0
    %4893 = vmatprep.subr.mxu0 0.0
    %4894 = vmatpush1.msra.mxu0 %v4764
    %4895 = vmatprep.subr.mxu0 0.0
    %4896 = vmatpush1.msra.mxu0 %v4769
    %4897 = vmatprep.subr.mxu0 0.0
    %4898 = vmatpush1.msra.mxu0 %v4774
    %4899 = vmatprep.subr.mxu0 0.0
    %4900 = vmatpush1.msra.mxu0 %v4779
    %4901 = vmatprep.subr.mxu0 0.0
    %4902 = vmatpush1.msra.mxu0 %v4784
    %4903 = vmatprep.subr.mxu0 0.0
    %4904 = vmatpush1.msra.mxu0 %v4789
    %4905 = vmatprep.subr.mxu0 0.0
    %4906 = vmatpush1.msra.mxu0 %v4794
    %4907 = vmatprep.subr.mxu0 0.0
    %4908 = vmatpush1.msra.mxu0 %v4799
    %4909 = vmatprep.subr.mxu0 0.0
    %4910 = vmatpush1.msra.mxu0 %v4804
    %4911 = vmatprep.subr.mxu0 0.0
    %4912 = vmatpush1.msra.mxu0 %v4809
    %4913 = vmatprep.subr.mxu0 0.0
    %4914 = vmatpush1.msra.mxu0 %v4814
    %4915 = vmatprep.subr.mxu0 0.0
    %4916 = vmatpush1.msra.mxu0 %v4891
    %4917 = vmatprep.subr.mxu0 0.0
    %4918 = vmatpush1.msra.mxu0 0.0
    %4919 = vmatprep.subr.mxu0 0.0
    %4920 = vmatpush1.msra.mxu0 0.0
    %4921 = vmatprep.subr.mxu0 0.0
    %4922 = vmatpush1.msra.mxu0 0.0
    %4923 = vmatprep.subr.mxu0 0.0
    %4924 = vmatpush1.msra.mxu0 0.0
    %4925 = vmatprep.subr.mxu0 0.0
    %4926 = vmatpush1.msra.mxu0 0.0
    %4927 = vmatprep.subr.mxu0 0.0
    %4928 = vmatpush1.msra.mxu0 0.0
    %4929 = vmatprep.subr.mxu0 0.0
    %4930 = vmatpush1.msra.mxu0 0.0
    %4931 = vmatprep.subr.mxu0 0.0
    %4932 = vmatpush1.msra.mxu0 0.0
    %4933 = vmatprep.subr.mxu0 0.0
    %4934 = vmatpush1.msra.mxu0 0.0
    %4935 = vmatprep.subr.mxu0 0.0
    %4936 = vmatpush1.msra.mxu0 0.0
    %4937 = vmatprep.subr.mxu0 0.0
    %4938 = vmatpush1.msra.mxu0 0.0
    %4939 = vmatprep.subr.mxu0 0.0
    %4940 = vmatpush1.msra.mxu0 0.0
    %4941 = vmatprep.subr.mxu0 0.0
    %4942 = vmatpush1.msra.mxu0 0.0
    %4943 = vmatprep.subr.mxu0 0.0
    %4944 = vmatpush1.msra.mxu0 0.0
    %4945 = vmatprep.subr.mxu0 0.0
    %4946 = vmatpush1.msra.mxu0 0.0
    %4947 = vmatprep.subr.mxu0 0.0
    %4948 = vmatpush1.msra.mxu0 0.0
    %4949 = vmatprep.subr.mxu0 0.0
    %4950 = vmatpush1.msra.mxu0 0.0
    %4951 = vmatprep.subr.mxu0 0.0
    %4952 = vmatpush1.msra.mxu0 0.0
    %4953 = vmatprep.subr.mxu0 0.0
    %4954 = vmatpush1.msra.mxu0 0.0
    %4955 = vmatprep.subr.mxu0 0.0
    %4956 = vmatpush1.msra.mxu0 0.0
    %4957 = vmatprep.mubr.f32.mxu0 0.0
    %4958 = vmatmul.mubr.f32.gmra.mrb[0].mxu0 %v4882
    %v4959 = vpop.f32.mrb[0].mxu0
    %v4960 = vadd.f32 0.0, %v4959
    %v4961 = vpop.f32.mrb[0].mxu0
    %4962 = vmatprep.mubr.f32.mxu0 0.0
    %4963 = vmatmul.mubr.f32.gmra.mrb[0].mxu0 %v4884
    %v4964 = vpop.f32.mrb[0].mxu0
    %v4965 = vadd.f32 0.0, %v4964
    %v4966 = vpop.f32.mrb[0].mxu0
    %4967 = vmatprep.mubr.f32.mxu0 0.0
    %4968 = vmatmul.mubr.f32.gmra.mrb[0].mxu0 %v4886
    %v4969 = vpop.f32.mrb[0].mxu0
    %v4970 = vadd.f32 0.0, %v4969
    %v4971 = vpop.f32.mrb[0].mxu0
    %4972 = vmatprep.mubr.f32.mxu0 0.0
    %4973 = vmatmul.mubr.f32.gmra.mrb[0].mxu0 %v4888
    %v4974 = vpop.f32.mrb[0].mxu0
    %v4975 = vadd.f32 0.0, %v4974
    %v4976 = vpop.f32.mrb[0].mxu0
    %4977 = vdwg.mxu0
    %v4978 = vmul.f32 %v4960, %v4620
    %v4979 = vmul.f32 %v4965, %v4624
    %v4980 = vmul.f32 %v4970, %v4628
    %v4981 = vmul.f32 %v4975, %v4632
    %v4982 = vsel %vm69, %v4978, 0.0
    %v4983 = vsel %vm69, %v4979, 0.0
    %v4984 = vadd.f32 %v4982, %v4983
    %v4985 = vsel %vm69, %v4980, 0.0
    %v4986 = vadd.f32 %v4984, %v4985
    %v4987 = vsel %vm69, %v4981, 0.0
    %v4988 = vadd.f32 %v4986, %v4987
    %v4989 = vld [vmem:[%s7] sm:$0xff]
    %v4990 = vld [vmem:[%s7 + $0x8] sm:$0xff]
    %v4991 = vld [vmem:[%s7 + $0x10] sm:$0xff]
    %v4992 = vld [vmem:[%s7 + $0x18] sm:$0xff]
    %v4993 = vld [vmem:[%s8] sm:$0x1]
    %v4995 = vlaneseq
    %v4996 = vshrl.u32 %v4995, 7
    %v4997 = vsub.s32 0, %v4996
    %v4998 = vrot.slane %v4993, %v4997
    %v5001 = vsel %vm69, %v4647, 0
    %v5004 = vsel %vm69, %v4988, 0
    %5006 = vmatprep.subr.mxu0 0.0
    %5007 = vmatpush1.msra.mxu0 %v4989
    %5008 = vmatprep.subr.mxu0 0.0
    %5009 = vmatpush1.msra.mxu0 %v4990
    %5010 = vmatprep.subr.mxu0 0.0
    %5011 = vmatpush1.msra.mxu0 %v4991
    %5012 = vmatprep.subr.mxu0 0.0
    %5013 = vmatpush1.msra.mxu0 %v4992
    %5014 = vmatprep.subr.mxu0 0.0
    %5015 = vmatpush1.msra.mxu0 0.0
    %5016 = vmatprep.subr.mxu0 0.0
    %5017 = vmatpush1.msra.mxu0 0.0
    %5018 = vmatprep.subr.mxu0 0.0
    %5019 = vmatpush1.msra.mxu0 0.0
    %5020 = vmatprep.subr.mxu0 0.0
    %5021 = vmatpush1.msra.mxu0 0.0
    %5022 = vmatprep.subr.mxu0 0.0
    %5023 = vmatpush1.msra.mxu0 0.0
    %5024 = vmatprep.subr.mxu0 0.0
    %5025 = vmatpush1.msra.mxu0 0.0
    %5026 = vmatprep.subr.mxu0 0.0
    %5027 = vmatpush1.msra.mxu0 0.0
    %5028 = vmatprep.subr.mxu0 0.0
    %5029 = vmatpush1.msra.mxu0 0.0
    %5030 = vmatprep.subr.mxu0 0.0
    %5031 = vmatpush1.msra.mxu0 0.0
    %5032 = vmatprep.subr.mxu0 0.0
    %5033 = vmatpush1.msra.mxu0 0.0
    %5034 = vmatprep.subr.mxu0 0.0
    %5035 = vmatpush1.msra.mxu0 0.0
    %5036 = vmatprep.subr.mxu0 0.0
    %5037 = vmatpush1.msra.mxu0 0.0
    %5038 = vmatprep.subr.mxu0 0.0
    %5039 = vmatpush1.msra.mxu0 0.0
    %5040 = vmatprep.subr.mxu0 0.0
    %5041 = vmatpush1.msra.mxu0 0.0
    %5042 = vmatprep.subr.mxu0 0.0
    %5043 = vmatpush1.msra.mxu0 0.0
    %5044 = vmatprep.subr.mxu0 0.0
    %5045 = vmatpush1.msra.mxu0 0.0
    %5046 = vmatprep.subr.mxu0 0.0
    %5047 = vmatpush1.msra.mxu0 0.0
    %5048 = vmatprep.subr.mxu0 0.0
    %5049 = vmatpush1.msra.mxu0 0.0
    %5050 = vmatprep.subr.mxu0 0.0
    %5051 = vmatpush1.msra.mxu0 0.0
    %5052 = vmatprep.subr.mxu0 0.0
    %5053 = vmatpush1.msra.mxu0 0.0
    %5054 = vmatprep.subr.mxu0 0.0
    %5055 = vmatpush1.msra.mxu0 0.0
    %5056 = vmatprep.subr.mxu0 0.0
    %5057 = vmatpush1.msra.mxu0 0.0
    %5058 = vmatprep.subr.mxu0 0.0
    %5059 = vmatpush1.msra.mxu0 0.0
    %5060 = vmatprep.subr.mxu0 0.0
    %5061 = vmatpush1.msra.mxu0 0.0
    %5062 = vmatprep.subr.mxu0 0.0
    %5063 = vmatpush1.msra.mxu0 0.0
    %5064 = vmatprep.subr.mxu0 0.0
    %5065 = vmatpush1.msra.mxu0 0.0
    %5066 = vmatprep.subr.mxu0 0.0
    %5067 = vmatpush1.msra.mxu0 0.0
    %5068 = vmatprep.subr.mxu0 0.0
    %5069 = vmatpush1.msra.mxu0 0.0
    %5070 = vmatprep.mubr.f32.mxu0 0.0
    %5071 = vmatmul.mubr.f32.gmra.mrb[0].mxu0 %v5001
    %v5072 = vpop.f32.mrb[0].mxu0
    %v5073 = vadd.f32 %v4998, %v5072
    %v5074 = vpop.f32.mrb[0].mxu0
    %5075 = vmatprep.mubr.f32.mxu0 0.0
    %5076 = vmatmul.mubr.f32.gmra.mrb[0].mxu0 %v5004
    %v5077 = vpop.f32.mrb[0].mxu0
    %v5078 = vadd.f32 %v4998, %v5077
    %v5079 = vpop.f32.mrb[0].mxu0
    %5080 = vdwg.mxu0
    %5081 = vst.msk [vmem:[#allocation2] sm:$0xff] %vm69, %v5073
    %5082 = vst.msk [vmem:[#allocation2 + $0x8] sm:$0xff] %vm69, %v5078
    // Predicated region
    $region54: #{tpu_custom_call.1} parent=1 // pred_check
      _
    $region55: #{tpu_custom_call.1} parent=1 // pred_check_branch
      %5084 = sbr.rel (0) target = $region57
    $region56: #{tpu_custom_call.1} parent=1 // pred_region
      %s5086 = ssub.s32 256, 256
      %5087 = vsyncadd [#allocation3], %s5086
      %s5088 = sshll.u32 [#allocation2], 4
      %s5089 = int_to_ptr.vmem [resolvable:$true] %s5088
      %5094 = dma.vmem_to_hbm [thread:$0]  %s5089, 256, %s13, [#allocation3], 128, 128, 8
    $region57: #{tpu_custom_call.1} parent=1 // pred_fallthru
      _
    // Predicated region
    $region58: #{tpu_custom_call.1} parent=1 // pred_check
      _
    $region59: #{tpu_custom_call.1} parent=1 // pred_check_branch
      %5096 = sbr.rel (0) target = $region61
    $region60: #{tpu_custom_call.1} parent=1 // pred_region
      %5097 = dma.done [#allocation3], 256
    $region61: #{tpu_custom_call.1} parent=1 // pred_fallthru
      _
    %5098 = vsyncpa [#allocation3], 1

</llo_original>
